<compile_context>
chip_gen: v6e
topology: v6e:2x2x1
jax: 0.10.0
libtpu: 0.0.40
codegen_flags: <defaults>
</compile_context>

<pallas_src>
import functools

import jax
import jax.numpy as jnp
from jax.experimental import pallas as pl
from jax.experimental.pallas import tpu as pltpu


IN_FEATURES = 3 * 100 * 100      # 30000 (hard-coded by the module)
HIDDEN = 512
N_CLASSES = 113
TK1 = 6016                       # 47 * 128 -> K1P = 30080, 5 K-steps, 80 pad rows
NSPLIT = 2                       # layer-1 output column halves (v7x megacore)
HALF = HIDDEN // NSPLIT          # 256


def _round_up(x, m):
    return (x + m - 1) // m * m


K1P = _round_up(IN_FEATURES, TK1)   # 30080
N3P = _round_up(N_CLASSES, 128)     # 128 (lane-dense output)


# --------------------------------------------------------------------------
# Kernel A: layer 1 (int8 w1 stream, folded BN), grid = (col-half, K-step)
# --------------------------------------------------------------------------
def _layer1_kernel(x_ref, w1_ref, s1_ref, sh1_ref, h1_ref, acc_ref):
    k = pl.program_id(1)

    @pl.when(k == 0)
    def _():
        acc_ref[...] = jnp.zeros_like(acc_ref)

    # int8 -> bf16 dequant on the VPU (per-column scale already folded into s1),
    # bf16 x bf16 on the MXU, f32 accumulation in VMEM scratch.
    w = w1_ref[...].astype(jnp.bfloat16)
    acc_ref[...] += jnp.dot(x_ref[...], w, preferred_element_type=jnp.float32)

    @pl.when(k == pl.num_programs(1) - 1)
    def _():
        # Folded BatchNorm + int8 dequant scale, shift.
        h1_ref[...] = acc_ref[...] * s1_ref[...] + sh1_ref[...]


def layer1_matmul(x_pad, w1q, s1_eff, sh1):
    """x_pad: (Mp, K1P) bf16; w1q: (K1P, H) int8; s1_eff/sh1: (1, H) f32.
    Returns h1: (Mp, H) f32."""
    Mp = x_pad.shape[0]
    assert K1P % TK1 == 0
    grid = (NSPLIT, K1P // TK1)

    return pl.pallas_call(
        _layer1_kernel,
        out_shape=jax.ShapeDtypeStruct((Mp, HIDDEN), jnp.float32),
        grid_spec=pltpu.PrefetchScalarGridSpec(
            num_scalar_prefetch=0,
            grid=grid,
            in_specs=[
                pl.BlockSpec((Mp, TK1), lambda c, k: (0, k)),    # x tile (bf16)
                pl.BlockSpec((TK1, HALF), lambda c, k: (k, c)),  # w1 tile (int8)
                pl.BlockSpec((1, HALF), lambda c, k: (0, c)),    # s1 (BN * dequant)
                pl.BlockSpec((1, HALF), lambda c, k: (0, c)),    # sh1
            ],
            out_specs=pl.BlockSpec((Mp, HALF), lambda c, k: (0, c)),
            scratch_shapes=[pltpu.VMEM((Mp, HALF), jnp.float32)],
        ),
        compiler_params=pltpu.CompilerParams(
            dimension_semantics=("parallel", "arbitrary"),
            vmem_limit_bytes=32 * 1024 * 1024,
        ),
    )(x_pad, w1q, s1_eff, sh1)


# --------------------------------------------------------------------------
# Kernel B: layers 2/3 + masked stable softmax (everything VMEM-resident)
# --------------------------------------------------------------------------
def _head_kernel(h1_ref, w2_ref, s2_ref, sh2_ref, w3_ref, s3_ref, sh3_ref,
                 o_ref, *, n_valid):
    h1 = h1_ref[...]
    h2 = jnp.dot(h1, w2_ref[...], preferred_element_type=jnp.float32)
    h2 = h2 * s2_ref[...] + sh2_ref[...]
    z = jnp.dot(h2, w3_ref[...], preferred_element_type=jnp.float32)
    z = z * s3_ref[...] + sh3_ref[...]
    # Mask padded class columns, numerically-stable softmax over dim 1.
    col = jax.lax.broadcasted_iota(jnp.int32, z.shape, 1)
    z = jnp.where(col < n_valid, z, -jnp.inf)
    z = z - jnp.max(z, axis=-1, keepdims=True)
    e = jnp.exp(z)
    o_ref[...] = (e / jnp.sum(e, axis=-1, keepdims=True)).astype(o_ref.dtype)


def head(h1, w2, s2, sh2, w3p, s3p, sh3p):
    Mp = h1.shape[0]
    kernel = functools.partial(_head_kernel, n_valid=N_CLASSES)
    return pl.pallas_call(
        kernel,
        out_shape=jax.ShapeDtypeStruct((Mp, N3P), jnp.float32),
        grid_spec=pltpu.PrefetchScalarGridSpec(
            num_scalar_prefetch=0,
            grid=(1,),
            in_specs=[
                pl.BlockSpec((Mp, HIDDEN), lambda i: (0, 0)),
                pl.BlockSpec((HIDDEN, HIDDEN), lambda i: (0, 0)),
                pl.BlockSpec((1, HIDDEN), lambda i: (0, 0)),
                pl.BlockSpec((1, HIDDEN), lambda i: (0, 0)),
                pl.BlockSpec((HIDDEN, N3P), lambda i: (0, 0)),
                pl.BlockSpec((1, N3P), lambda i: (0, 0)),
                pl.BlockSpec((1, N3P), lambda i: (0, 0)),
            ],
            out_specs=pl.BlockSpec((Mp, N3P), lambda i: (0, 0)),
        ),
        compiler_params=pltpu.CompilerParams(
            dimension_semantics=("arbitrary",),
        ),
    )(h1, w2, s2, sh2, w3p, s3p, sh3p)


# --------------------------------------------------------------------------
# Parameter preparation (one-time, outside the per-call jit)
# --------------------------------------------------------------------------
def _fold_bn(bias, gamma, beta, mean, var, eps=1e-5):
    scale = gamma / jnp.sqrt(var + eps)
    shift = (bias - mean) * scale + beta
    return scale[None, :].astype(jnp.float32), shift[None, :].astype(jnp.float32)


def _quantize_per_col(w):
    """Symmetric int8 quantization of w (K, N) with a per-output-column scale."""
    absmax = jnp.max(jnp.abs(w), axis=0)
    scale = jnp.where(absmax > 0, absmax / 127.0, 1.0).astype(jnp.float32)
    q = jnp.clip(jnp.round(w / scale[None, :]), -127, 127).astype(jnp.int8)
    return q, scale


def make_params(key):
    """Deterministic synthetic parameters for the 3 LinearWithBN layers."""
    dims = [(IN_FEATURES, HIDDEN), (HIDDEN, HIDDEN), (HIDDEN, N_CLASSES)]
    params = []
    for i, (din, dout) in enumerate(dims):
        ks = jax.random.split(jax.random.fold_in(key, i), 6)
        w = jax.random.normal(ks[0], (din, dout), jnp.float32) * 0.02
        b = jax.random.normal(ks[1], (dout,), jnp.float32) * 0.02
        gamma = 1.0 + 0.1 * jax.random.normal(ks[2], (dout,), jnp.float32)
        beta = 0.1 * jax.random.normal(ks[3], (dout,), jnp.float32)
        mean = 0.1 * jax.random.normal(ks[4], (dout,), jnp.float32)
        var = jnp.abs(jax.random.normal(ks[5], (dout,), jnp.float32)) + 0.5
        params.append((w, b, gamma, beta, mean, var))
    return params


def prepare_params(params):
    """One-time padding / quantization / BN folding (outside the hot path)."""
    (w1, b1, g1, be1, m1, v1) = params[0]
    (w2, b2, g2, be2, m2, v2) = params[1]
    (w3, b3, g3, be3, m3, v3) = params[2]

    # Layer 1: int8 weight, per-column dequant scale folded into BN scale.
    w1q, w1_colscale = _quantize_per_col(w1)
    w1q_pad = jnp.zeros((K1P, HIDDEN), jnp.int8).at[:IN_FEATURES, :].set(w1q)
    s1, sh1 = _fold_bn(b1, g1, be1, m1, v1)
    s1_eff = s1 * w1_colscale[None, :]

    # Layer 2 (f32 weights, tiny).
    s2, sh2 = _fold_bn(b2, g2, be2, m2, v2)

    # Layer 3: pad class columns to 128 (lane-dense output).
    w3p = jnp.zeros((HIDDEN, N3P), jnp.float32).at[:, :N_CLASSES].set(w3)
    s3, sh3 = _fold_bn(b3, g3, be3, m3, v3)
    s3p = jnp.zeros((1, N3P), jnp.float32).at[:, :N_CLASSES].set(s3)
    sh3p = jnp.zeros((1, N3P), jnp.float32).at[:, :N_CLASSES].set(sh3)

    return (w1q_pad, s1_eff, sh1, w2.astype(jnp.float32), s2, sh2, w3p, s3p, sh3p)


@jax.jit
def dense2hidden_tiny_forward(x_nchw, prepared):
    (w1q, s1_eff, sh1, w2, s2, sh2, w3p, s3p, sh3p) = prepared
    B = x_nchw.shape[0]
    Mp = max(_round_up(B, 8), 8)                      # sublane multiple
    x_flat = x_nchw.reshape(B, IN_FEATURES).astype(jnp.bfloat16)
    x_pad = jnp.zeros((Mp, K1P), jnp.bfloat16).at[:B, :IN_FEATURES].set(x_flat)
    h1 = layer1_matmul(x_pad, w1q, s1_eff, sh1)       # (Mp, 512) f32
    out = head(h1, w2, s2, sh2, w3p, s3p, sh3p)       # (Mp, 128) f32
    return out[:B, :N_CLASSES]                        # (B, 113)


# --------------------------------------------------------------------------
# Pure-JAX reference (emulates the kernel's bf16 input and int8 w1 storage)
# --------------------------------------------------------------------------
def _reference_forward(x_nchw, params):
    B = x_nchw.shape[0]
    h = x_nchw.reshape(B, -1).astype(jnp.float32)
    h = h.astype(jnp.bfloat16).astype(jnp.float32)
    for i, (w, b, g, be, m, v) in enumerate(params):
        if i == 0:
            q, scale = _quantize_per_col(w)           # same quant as the kernel
            z = (h @ q.astype(jnp.float32)) * scale[None, :] + b
        else:
            z = h @ w + b
        h = (z - m) / jnp.sqrt(v + 1e-5) * g + be
    return jax.nn.softmax(h, axis=1)


if __name__ == "__main__":
    key = jax.random.PRNGKey(0)
    kx, kp = jax.random.split(key)

    # Module hard-codes 3*100*100 input features; use a small batch.
    x = jax.random.normal(kx, (2, 3, 100, 100), jnp.float32)
    params = make_params(kp)
    prepared = prepare_params(params)        # one-time weight prep

    out = dense2hidden_tiny_forward(x, prepared)
    out = jax.block_until_ready(out)

    ref = _reference_forward(x, params)
    assert out.shape == (2, 113)
    assert jnp.allclose(jnp.sum(out, axis=1), 1.0, atol=1e-5)
    assert jnp.allclose(out, ref, rtol=1e-3, atol=1e-5)

    print("KERNEL_OK")
</pallas_src>

<mosaic_0001>
module attributes {stable_mosaic.version = 11 : i64} {
  func.func @_head_kernel(%arg0: i32, %arg1: memref<8x512xf32, #tpu.memory_space<vmem>>, %arg2: memref<512x512xf32, #tpu.memory_space<vmem>>, %arg3: memref<1x512xf32, #tpu.memory_space<vmem>>, %arg4: memref<1x512xf32, #tpu.memory_space<vmem>>, %arg5: memref<512x128xf32, #tpu.memory_space<vmem>>, %arg6: memref<1x128xf32, #tpu.memory_space<vmem>>, %arg7: memref<1x128xf32, #tpu.memory_space<vmem>>, %arg8: memref<8x128xf32, #tpu.memory_space<vmem>>) attributes {dimension_semantics = [#tpu.dimension_semantics<arbitrary>], iteration_bounds = array<i64: 1>, scalar_prefetch = 0 : i64, scratch_operands = 0 : i64, tpu.core_type = #tpu.core_type<tc>, window_params = [{pipeline_mode = #tpu.pipeline_mode<synchronous>, transform_indices = @transform_0, window_bounds = array<i64: 8, 512>}, {pipeline_mode = #tpu.pipeline_mode<synchronous>, transform_indices = @transform_1, window_bounds = array<i64: 512, 512>}, {pipeline_mode = #tpu.pipeline_mode<synchronous>, transform_indices = @transform_2, window_bounds = array<i64: 1, 512>}, {pipeline_mode = #tpu.pipeline_mode<synchronous>, transform_indices = @transform_3, window_bounds = array<i64: 1, 512>}, {pipeline_mode = #tpu.pipeline_mode<synchronous>, transform_indices = @transform_4, window_bounds = array<i64: 512, 128>}, {pipeline_mode = #tpu.pipeline_mode<synchronous>, transform_indices = @transform_5, window_bounds = array<i64: 1, 128>}, {pipeline_mode = #tpu.pipeline_mode<synchronous>, transform_indices = @transform_6, window_bounds = array<i64: 1, 128>}, {pipeline_mode = #tpu.pipeline_mode<synchronous>, transform_indices = @transform_7, window_bounds = array<i64: 8, 128>}]} {
    %c0 = arith.constant 0 : index
    %c0_0 = arith.constant 0 : index
    %0 = vector.load %arg1[%c0, %c0_0] : memref<8x512xf32, #tpu.memory_space<vmem>>, vector<8x512xf32>
    %c0_1 = arith.constant 0 : index
    %c0_2 = arith.constant 0 : index
    %1 = vector.load %arg2[%c0_1, %c0_2] : memref<512x512xf32, #tpu.memory_space<vmem>>, vector<512x512xf32>
    %cst = arith.constant dense<0.000000e+00> : vector<8x512xf32>
    %2 = tpu.matmul %0, %1, %cst {dimension_numbers = #tpu.dot_dimension_numbers<[1], [0], [0], [1], [0, 0, 1, 1], [], []>} : vector<8x512xf32>, vector<512x512xf32>, vector<8x512xf32> -> vector<8x512xf32>
    %c0_3 = arith.constant 0 : index
    %c0_4 = arith.constant 0 : index
    %3 = vector.load %arg3[%c0_3, %c0_4] : memref<1x512xf32, #tpu.memory_space<vmem>>, vector<1x512xf32>
    %4 = vector.broadcast %3 : vector<1x512xf32> to vector<8x512xf32>
    %5 = arith.mulf %2, %4 : vector<8x512xf32>
    %c0_5 = arith.constant 0 : index
    %c0_6 = arith.constant 0 : index
    %6 = vector.load %arg4[%c0_5, %c0_6] : memref<1x512xf32, #tpu.memory_space<vmem>>, vector<1x512xf32>
    %7 = vector.broadcast %6 : vector<1x512xf32> to vector<8x512xf32>
    %8 = arith.addf %5, %7 : vector<8x512xf32>
    %c0_7 = arith.constant 0 : index
    %c0_8 = arith.constant 0 : index
    %9 = vector.load %arg5[%c0_7, %c0_8] : memref<512x128xf32, #tpu.memory_space<vmem>>, vector<512x128xf32>
    %cst_9 = arith.constant dense<0.000000e+00> : vector<8x128xf32>
    %10 = tpu.matmul %8, %9, %cst_9 {dimension_numbers = #tpu.dot_dimension_numbers<[1], [0], [0], [1], [0, 0, 1, 1], [], []>} : vector<8x512xf32>, vector<512x128xf32>, vector<8x128xf32> -> vector<8x128xf32>
    %c0_10 = arith.constant 0 : index
    %c0_11 = arith.constant 0 : index
    %11 = vector.load %arg6[%c0_10, %c0_11] : memref<1x128xf32, #tpu.memory_space<vmem>>, vector<1x128xf32>
    %12 = vector.broadcast %11 : vector<1x128xf32> to vector<8x128xf32>
    %13 = arith.mulf %10, %12 : vector<8x128xf32>
    %c0_12 = arith.constant 0 : index
    %c0_13 = arith.constant 0 : index
    %14 = vector.load %arg7[%c0_12, %c0_13] : memref<1x128xf32, #tpu.memory_space<vmem>>, vector<1x128xf32>
    %15 = vector.broadcast %14 : vector<1x128xf32> to vector<8x128xf32>
    %16 = arith.addf %13, %15 : vector<8x128xf32>
    %17 = tpu.iota {dimensions = array<i32: 1>} : vector<8x128xi32>
    %c113_i32 = arith.constant 113 : i32
    %18 = vector.broadcast %c113_i32 : i32 to vector<8x128xi32>
    %19 = arith.cmpi slt, %17, %18 : vector<8x128xi32>
    %cst_14 = arith.constant 0xFF800000 : f32
    %20 = vector.broadcast %cst_14 : f32 to vector<8x128xf32>
    %21 = arith.select %19, %16, %20 : vector<8x128xi1>, vector<8x128xf32>
    %cst_15 = arith.constant dense<0xFF800000> : vector<8xf32>
    %22 = vector.multi_reduction <maximumf>, %21, %cst_15 [1] : vector<8x128xf32> to vector<8xf32>
    %23 = vector.shape_cast %22 : vector<8xf32> to vector<8x1xf32>
    %24 = vector.broadcast %23 : vector<8x1xf32> to vector<8x128xf32>
    %25 = arith.subf %21, %24 : vector<8x128xf32>
    %26 = math.exp %25 : vector<8x128xf32>
    %cst_16 = arith.constant dense<0.000000e+00> : vector<8xf32>
    %27 = vector.multi_reduction <add>, %26, %cst_16 [1] : vector<8x128xf32> to vector<8xf32>
    %28 = vector.shape_cast %27 : vector<8xf32> to vector<8x1xf32>
    %29 = vector.broadcast %28 : vector<8x1xf32> to vector<8x128xf32>
    %30 = arith.divf %26, %29 : vector<8x128xf32>
    %c0_17 = arith.constant 0 : index
    %c0_18 = arith.constant 0 : index
    %31 = vector.load %arg8[%c0_17, %c0_18] : memref<8x128xf32, #tpu.memory_space<vmem>>, vector<8x128xf32>
    tpu.vector_store %arg8[%c0_17, %c0_18], %30 {strides = array<i32>} : memref<8x128xf32, #tpu.memory_space<vmem>>, vector<8x128xf32>,
    return
  }
  func.func @transform_0(%arg0: i32) -> (i32, i32) {
    %c0_i32 = arith.constant 0 : i32
    %c0_i32_0 = arith.constant 0 : i32
    %c0_i32_1 = arith.constant 0 : i32
    return %c0_i32, %c0_i32_0 : i32, i32
  }
  func.func @transform_1(%arg0: i32) -> (i32, i32) {
    %c0_i32 = arith.constant 0 : i32
    %c0_i32_0 = arith.constant 0 : i32
    %c0_i32_1 = arith.constant 0 : i32
    return %c0_i32, %c0_i32_0 : i32, i32
  }
  func.func @transform_2(%arg0: i32) -> (i32, i32) {
    %c0_i32 = arith.constant 0 : i32
    %c0_i32_0 = arith.constant 0 : i32
    %c0_i32_1 = arith.constant 0 : i32
    return %c0_i32, %c0_i32_0 : i32, i32
  }
  func.func @transform_3(%arg0: i32) -> (i32, i32) {
    %c0_i32 = arith.constant 0 : i32
    %c0_i32_0 = arith.constant 0 : i32
    %c0_i32_1 = arith.constant 0 : i32
    return %c0_i32, %c0_i32_0 : i32, i32
  }
  func.func @transform_4(%arg0: i32) -> (i32, i32) {
    %c0_i32 = arith.constant 0 : i32
    %c0_i32_0 = arith.constant 0 : i32
    %c0_i32_1 = arith.constant 0 : i32
    return %c0_i32, %c0_i32_0 : i32, i32
  }
  func.func @transform_5(%arg0: i32) -> (i32, i32) {
    %c0_i32 = arith.constant 0 : i32
    %c0_i32_0 = arith.constant 0 : i32
    %c0_i32_1 = arith.constant 0 : i32
    return %c0_i32, %c0_i32_0 : i32, i32
  }
  func.func @transform_6(%arg0: i32) -> (i32, i32) {
    %c0_i32 = arith.constant 0 : i32
    %c0_i32_0 = arith.constant 0 : i32
    %c0_i32_1 = arith.constant 0 : i32
    return %c0_i32, %c0_i32_0 : i32, i32
  }
  func.func @transform_7(%arg0: i32) -> (i32, i32) {
    %c0_i32 = arith.constant 0 : i32
    %c0_i32_0 = arith.constant 0 : i32
    %c0_i32_1 = arith.constant 0 : i32
    return %c0_i32, %c0_i32_0 : i32, i32
  }
}

module attributes {stable_mosaic.version = 11 : i64} {
  func.func @_layer1_kernel(%arg0: i32, %arg1: i32, %arg2: memref<8x6016xbf16, #tpu.memory_space<vmem>>, %arg3: memref<6016x256xi8, #tpu.memory_space<vmem>>, %arg4: memref<1x256xf32, #tpu.memory_space<vmem>>, %arg5: memref<1x256xf32, #tpu.memory_space<vmem>>, %arg6: memref<8x256xf32, #tpu.memory_space<vmem>>, %arg7: memref<8x256xf32, #tpu.memory_space<vmem>>) attributes {dimension_semantics = [#tpu.dimension_semantics<parallel>, #tpu.dimension_semantics<arbitrary>], iteration_bounds = array<i64: 2, 5>, scalar_prefetch = 0 : i64, scratch_operands = 1 : i64, tpu.core_type = #tpu.core_type<tc>, window_params = [{transform_indices = @transform_0, window_bounds = array<i64: 8, 6016>}, {transform_indices = @transform_1, window_bounds = array<i64: 6016, 256>}, {transform_indices = @transform_2, window_bounds = array<i64: 1, 256>}, {transform_indices = @transform_3, window_bounds = array<i64: 1, 256>}, {transform_indices = @transform_4, window_bounds = array<i64: 8, 256>}]} {
    %c0_i32 = arith.constant 0 : i32
    %0 = arith.cmpi eq, %arg1, %c0_i32 : i32
    %1 = arith.extui %0 : i1 to i32
    %c0_i32_0 = arith.constant 0 : i32
    %2 = arith.cmpi ne, %1, %c0_i32_0 : i32
    scf.if %2 {
      %cst_9 = arith.constant 0.000000e+00 : f32
      %13 = vector.broadcast %cst_9 : f32 to vector<8x256xf32>
      %c0_10 = arith.constant 0 : index
      %c0_11 = arith.constant 0 : index
      %14 = vector.load %arg7[%c0_10, %c0_11] : memref<8x256xf32, #tpu.memory_space<vmem>>, vector<8x256xf32>
      tpu.vector_store %arg7[%c0_10, %c0_11], %13 {strides = array<i32>} : memref<8x256xf32, #tpu.memory_space<vmem>>, vector<8x256xf32>,
    } else {
    }
    %c0 = arith.constant 0 : index
    %c0_1 = arith.constant 0 : index
    %3 = vector.load %arg3[%c0, %c0_1] : memref<6016x256xi8, #tpu.memory_space<vmem>>, vector<6016x256xi8>
    %4 = arith.sitofp %3 : vector<6016x256xi8> to vector<6016x256xbf16>
    %c0_2 = arith.constant 0 : index
    %c0_3 = arith.constant 0 : index
    %5 = vector.load %arg7[%c0_2, %c0_3] : memref<8x256xf32, #tpu.memory_space<vmem>>, vector<8x256xf32>
    %c0_4 = arith.constant 0 : index
    %c0_5 = arith.constant 0 : index
    %6 = vector.load %arg2[%c0_4, %c0_5] : memref<8x6016xbf16, #tpu.memory_space<vmem>>, vector<8x6016xbf16>
    %cst = arith.constant dense<0.000000e+00> : vector<8x256xf32>
    %7 = tpu.matmul %6, %4, %cst {dimension_numbers = #tpu.dot_dimension_numbers<[1], [0], [0], [1], [0, 0, 1, 1], [], []>} : vector<8x6016xbf16>, vector<6016x256xbf16>, vector<8x256xf32> -> vector<8x256xf32>
    %8 = arith.addf %5, %7 : vector<8x256xf32>
    %c0_6 = arith.constant 0 : index
    %c0_7 = arith.constant 0 : index
    %9 = vector.load %arg7[%c0_6, %c0_7] : memref<8x256xf32, #tpu.memory_space<vmem>>, vector<8x256xf32>
    tpu.vector_store %arg7[%c0_6, %c0_7], %8 {strides = array<i32>} : memref<8x256xf32, #tpu.memory_space<vmem>>, vector<8x256xf32>,
    %c4_i32 = arith.constant 4 : i32
    %10 = arith.cmpi eq, %arg1, %c4_i32 : i32
    %11 = arith.extui %10 : i1 to i32
    %c0_i32_8 = arith.constant 0 : i32
    %12 = arith.cmpi ne, %11, %c0_i32_8 : i32
    scf.if %12 {
      %c0_9 = arith.constant 0 : index
      %c0_10 = arith.constant 0 : index
      %13 = vector.load %arg7[%c0_9, %c0_10] : memref<8x256xf32, #tpu.memory_space<vmem>>, vector<8x256xf32>
      %c0_11 = arith.constant 0 : index
      %c0_12 = arith.constant 0 : index
      %14 = vector.load %arg4[%c0_11, %c0_12] : memref<1x256xf32, #tpu.memory_space<vmem>>, vector<1x256xf32>
      %15 = vector.broadcast %14 : vector<1x256xf32> to vector<8x256xf32>
      %16 = arith.mulf %13, %15 : vector<8x256xf32>
      %c0_13 = arith.constant 0 : index
      %c0_14 = arith.constant 0 : index
      %17 = vector.load %arg5[%c0_13, %c0_14] : memref<1x256xf32, #tpu.memory_space<vmem>>, vector<1x256xf32>
      %18 = vector.broadcast %17 : vector<1x256xf32> to vector<8x256xf32>
      %19 = arith.addf %16, %18 : vector<8x256xf32>
      %c0_15 = arith.constant 0 : index
      %c0_16 = arith.constant 0 : index
      %20 = vector.load %arg6[%c0_15, %c0_16] : memref<8x256xf32, #tpu.memory_space<vmem>>, vector<8x256xf32>
      tpu.vector_store %arg6[%c0_15, %c0_16], %19 {strides = array<i32>} : memref<8x256xf32, #tpu.memory_space<vmem>>, vector<8x256xf32>,
    } else {
    }
    return
  }
  func.func @transform_0(%arg0: i32, %arg1: i32) -> (i32, i32) {
    %c0_i32 = arith.constant 0 : i32
    %c0_i32_0 = arith.constant 0 : i32
    return %c0_i32, %arg1 : i32, i32
  }
  func.func @transform_1(%arg0: i32, %arg1: i32) -> (i32, i32) {
    %c0_i32 = arith.constant 0 : i32
    return %arg1, %arg0 : i32, i32
  }
  func.func @transform_2(%arg0: i32, %arg1: i32) -> (i32, i32) {
    %c0_i32 = arith.constant 0 : i32
    %c0_i32_0 = arith.constant 0 : i32
    return %c0_i32, %arg0 : i32, i32
  }
  func.func @transform_3(%arg0: i32, %arg1: i32) -> (i32, i32) {
    %c0_i32 = arith.constant 0 : i32
    %c0_i32_0 = arith.constant 0 : i32
    return %c0_i32, %arg0 : i32, i32
  }
  func.func @transform_4(%arg0: i32, %arg1: i32) -> (i32, i32) {
    %c0_i32 = arith.constant 0 : i32
    %c0_i32_0 = arith.constant 0 : i32
    return %c0_i32, %arg0 : i32, i32
  }
}

</mosaic_0001>

<llo_original>
// kernel: dense2hidden_tiny_forward.3
$region0: #{dense2hidden_tiny_forward.3}
  #allocation0 [shape = 'u32[]', space=smem, size = 0x4, offset = 0x4, fixed_abs, tag = 'smem constant byte address 0x4 - core index']
  #allocation1 [shape = 'u32[144,128]{1,0:T(1,128)}', space=vmem, size = 0x12000, scoped, tag = 'internal scratch']
  %s0 = inlined_call_operand.vmem [shape: f32[8,512], index: 0, kind: input, shape index: {}]
  %s1 = inlined_call_operand.vmem [shape: f32[512,512], index: 1, kind: input, shape index: {}]
  %s2 = inlined_call_operand.vmem [shape: f32[1,512], index: 2, kind: input, shape index: {}]
  %s3 = inlined_call_operand.vmem [shape: f32[1,512], index: 3, kind: input, shape index: {}]
  %s4 = inlined_call_operand.vmem [shape: f32[512,128], index: 4, kind: input, shape index: {}]
  %s5 = inlined_call_operand.vmem [shape: f32[1,128], index: 5, kind: input, shape index: {}]
  %s6 = inlined_call_operand.vmem [shape: f32[1,128], index: 6, kind: input, shape index: {}]
  %s7 = inlined_call_operand.vmem [shape: f32[8,128], index: 7, kind: output, shape index: {}]
  %s8 = sld [smem:[#allocation0]]
  $region38: #{dense2hidden_tiny_forward.3} parent=0
    _
  %s10 = ssub.s32 1, %s8
  %s11 = scalar_select 0, %s10, %s8
  // Predicated region
  $region2: #{dense2hidden_tiny_forward.3} parent=0 // pred_check
    _
  $region3: #{dense2hidden_tiny_forward.3} parent=0 // pred_check_branch
    %13 = sbr.rel (0) target = $region5
  $region4: #{dense2hidden_tiny_forward.3} parent=0 // pred_region
    _
  $region5: #{dense2hidden_tiny_forward.3} parent=0 // pred_fallthru
    _
  // Predicated region
  $region6: #{dense2hidden_tiny_forward.3} parent=0 // pred_check
    _
  $region7: #{dense2hidden_tiny_forward.3} parent=0 // pred_check_branch
    %15 = sbr.rel (0) target = $region9
  $region8: #{dense2hidden_tiny_forward.3} parent=0 // pred_region
    _
  $region9: #{dense2hidden_tiny_forward.3} parent=0 // pred_fallthru
    _
  // Predicated region
  $region10: #{dense2hidden_tiny_forward.3} parent=0 // pred_check
    _
  $region11: #{dense2hidden_tiny_forward.3} parent=0 // pred_check_branch
    %17 = sbr.rel (0) target = $region13
  $region12: #{dense2hidden_tiny_forward.3} parent=0 // pred_region
    _
  $region13: #{dense2hidden_tiny_forward.3} parent=0 // pred_fallthru
    _
  // Predicated region
  $region14: #{dense2hidden_tiny_forward.3} parent=0 // pred_check
    _
  $region15: #{dense2hidden_tiny_forward.3} parent=0 // pred_check_branch
    %19 = sbr.rel (0) target = $region17
  $region16: #{dense2hidden_tiny_forward.3} parent=0 // pred_region
    _
  $region17: #{dense2hidden_tiny_forward.3} parent=0 // pred_fallthru
    _
  // Predicated region
  $region18: #{dense2hidden_tiny_forward.3} parent=0 // pred_check
    _
  $region19: #{dense2hidden_tiny_forward.3} parent=0 // pred_check_branch
    %21 = sbr.rel (0) target = $region21
  $region20: #{dense2hidden_tiny_forward.3} parent=0 // pred_region
    _
  $region21: #{dense2hidden_tiny_forward.3} parent=0 // pred_fallthru
    _
  // Predicated region
  $region22: #{dense2hidden_tiny_forward.3} parent=0 // pred_check
    _
  $region23: #{dense2hidden_tiny_forward.3} parent=0 // pred_check_branch
    %23 = sbr.rel (0) target = $region25
  $region24: #{dense2hidden_tiny_forward.3} parent=0 // pred_region
    _
  $region25: #{dense2hidden_tiny_forward.3} parent=0 // pred_fallthru
    _
  // Predicated region
  $region26: #{dense2hidden_tiny_forward.3} parent=0 // pred_check
    _
  $region27: #{dense2hidden_tiny_forward.3} parent=0 // pred_check_branch
    %25 = sbr.rel (0) target = $region29
  $region28: #{dense2hidden_tiny_forward.3} parent=0 // pred_region
    _
  $region29: #{dense2hidden_tiny_forward.3} parent=0 // pred_fallthru
    _
  %v26 = vld [vmem:[%s0] sm:$0xff]
  %v27 = vld [vmem:[%s0 + $0x8] sm:$0xff]
  %v28 = vld [vmem:[%s0 + $0x10] sm:$0xff]
  %v29 = vld [vmem:[%s0 + $0x18] sm:$0xff]
  %v30 = vld [vmem:[%s1] sm:$0xff]
  %v31 = vld [vmem:[%s1 + $0x8] sm:$0xff]
  %v32 = vld [vmem:[%s1 + $0x10] sm:$0xff]
  %v33 = vld [vmem:[%s1 + $0x18] sm:$0xff]
  %v34 = vld [vmem:[%s1 + $0x20] sm:$0xff]
  %v35 = vld [vmem:[%s1 + $0x28] sm:$0xff]
  %v36 = vld [vmem:[%s1 + $0x30] sm:$0xff]
  %v37 = vld [vmem:[%s1 + $0x38] sm:$0xff]
  %v38 = vld [vmem:[%s1 + $0x40] sm:$0xff]
  %v39 = vld [vmem:[%s1 + $0x48] sm:$0xff]
  %v40 = vld [vmem:[%s1 + $0x50] sm:$0xff]
  %v41 = vld [vmem:[%s1 + $0x58] sm:$0xff]
  %v42 = vld [vmem:[%s1 + $0x60] sm:$0xff]
  %v43 = vld [vmem:[%s1 + $0x68] sm:$0xff]
  %v44 = vld [vmem:[%s1 + $0x70] sm:$0xff]
  %v45 = vld [vmem:[%s1 + $0x78] sm:$0xff]
  %v46 = vld [vmem:[%s1 + $0x80] sm:$0xff]
  %v47 = vld [vmem:[%s1 + $0x88] sm:$0xff]
  %v48 = vld [vmem:[%s1 + $0x90] sm:$0xff]
  %v49 = vld [vmem:[%s1 + $0x98] sm:$0xff]
  %v50 = vld [vmem:[%s1 + $0xa0] sm:$0xff]
  %v51 = vld [vmem:[%s1 + $0xa8] sm:$0xff]
  %v52 = vld [vmem:[%s1 + $0xb0] sm:$0xff]
  %v53 = vld [vmem:[%s1 + $0xb8] sm:$0xff]
  %v54 = vld [vmem:[%s1 + $0xc0] sm:$0xff]
  %v55 = vld [vmem:[%s1 + $0xc8] sm:$0xff]
  %v56 = vld [vmem:[%s1 + $0xd0] sm:$0xff]
  %v57 = vld [vmem:[%s1 + $0xd8] sm:$0xff]
  %v58 = vld [vmem:[%s1 + $0xe0] sm:$0xff]
  %v59 = vld [vmem:[%s1 + $0xe8] sm:$0xff]
  %v60 = vld [vmem:[%s1 + $0xf0] sm:$0xff]
  %v61 = vld [vmem:[%s1 + $0xf8] sm:$0xff]
  %v62 = vld [vmem:[%s1 + $0x100] sm:$0xff]
  %v63 = vld [vmem:[%s1 + $0x108] sm:$0xff]
  %v64 = vld [vmem:[%s1 + $0x110] sm:$0xff]
  %v65 = vld [vmem:[%s1 + $0x118] sm:$0xff]
  %v66 = vld [vmem:[%s1 + $0x120] sm:$0xff]
  %v67 = vld [vmem:[%s1 + $0x128] sm:$0xff]
  %v68 = vld [vmem:[%s1 + $0x130] sm:$0xff]
  %v69 = vld [vmem:[%s1 + $0x138] sm:$0xff]
  %v70 = vld [vmem:[%s1 + $0x140] sm:$0xff]
  %v71 = vld [vmem:[%s1 + $0x148] sm:$0xff]
  %v72 = vld [vmem:[%s1 + $0x150] sm:$0xff]
  %v73 = vld [vmem:[%s1 + $0x158] sm:$0xff]
  %v74 = vld [vmem:[%s1 + $0x160] sm:$0xff]
  %v75 = vld [vmem:[%s1 + $0x168] sm:$0xff]
  %v76 = vld [vmem:[%s1 + $0x170] sm:$0xff]
  %v77 = vld [vmem:[%s1 + $0x178] sm:$0xff]
  %v78 = vld [vmem:[%s1 + $0x180] sm:$0xff]
  %v79 = vld [vmem:[%s1 + $0x188] sm:$0xff]
  %v80 = vld [vmem:[%s1 + $0x190] sm:$0xff]
  %v81 = vld [vmem:[%s1 + $0x198] sm:$0xff]
  %v82 = vld [vmem:[%s1 + $0x1a0] sm:$0xff]
  %v83 = vld [vmem:[%s1 + $0x1a8] sm:$0xff]
  %v84 = vld [vmem:[%s1 + $0x1b0] sm:$0xff]
  %v85 = vld [vmem:[%s1 + $0x1b8] sm:$0xff]
  %v86 = vld [vmem:[%s1 + $0x1c0] sm:$0xff]
  %v87 = vld [vmem:[%s1 + $0x1c8] sm:$0xff]
  %v88 = vld [vmem:[%s1 + $0x1d0] sm:$0xff]
  %v89 = vld [vmem:[%s1 + $0x1d8] sm:$0xff]
  %v90 = vld [vmem:[%s1 + $0x1e0] sm:$0xff]
  %v91 = vld [vmem:[%s1 + $0x1e8] sm:$0xff]
  %v92 = vld [vmem:[%s1 + $0x1f0] sm:$0xff]
  %v93 = vld [vmem:[%s1 + $0x1f8] sm:$0xff]
  %v94 = vld [vmem:[%s1 + $0x200] sm:$0xff]
  %v95 = vld [vmem:[%s1 + $0x208] sm:$0xff]
  %v96 = vld [vmem:[%s1 + $0x210] sm:$0xff]
  %v97 = vld [vmem:[%s1 + $0x218] sm:$0xff]
  %v98 = vld [vmem:[%s1 + $0x220] sm:$0xff]
  %v99 = vld [vmem:[%s1 + $0x228] sm:$0xff]
  %v100 = vld [vmem:[%s1 + $0x230] sm:$0xff]
  %v101 = vld [vmem:[%s1 + $0x238] sm:$0xff]
  %v102 = vld [vmem:[%s1 + $0x240] sm:$0xff]
  %v103 = vld [vmem:[%s1 + $0x248] sm:$0xff]
  %v104 = vld [vmem:[%s1 + $0x250] sm:$0xff]
  %v105 = vld [vmem:[%s1 + $0x258] sm:$0xff]
  %v106 = vld [vmem:[%s1 + $0x260] sm:$0xff]
  %v107 = vld [vmem:[%s1 + $0x268] sm:$0xff]
  %v108 = vld [vmem:[%s1 + $0x270] sm:$0xff]
  %v109 = vld [vmem:[%s1 + $0x278] sm:$0xff]
  %v110 = vld [vmem:[%s1 + $0x280] sm:$0xff]
  %v111 = vld [vmem:[%s1 + $0x288] sm:$0xff]
  %v112 = vld [vmem:[%s1 + $0x290] sm:$0xff]
  %v113 = vld [vmem:[%s1 + $0x298] sm:$0xff]
  %v114 = vld [vmem:[%s1 + $0x2a0] sm:$0xff]
  %v115 = vld [vmem:[%s1 + $0x2a8] sm:$0xff]
  %v116 = vld [vmem:[%s1 + $0x2b0] sm:$0xff]
  %v117 = vld [vmem:[%s1 + $0x2b8] sm:$0xff]
  %v118 = vld [vmem:[%s1 + $0x2c0] sm:$0xff]
  %v119 = vld [vmem:[%s1 + $0x2c8] sm:$0xff]
  %v120 = vld [vmem:[%s1 + $0x2d0] sm:$0xff]
  %v121 = vld [vmem:[%s1 + $0x2d8] sm:$0xff]
  %v122 = vld [vmem:[%s1 + $0x2e0] sm:$0xff]
  %v123 = vld [vmem:[%s1 + $0x2e8] sm:$0xff]
  %v124 = vld [vmem:[%s1 + $0x2f0] sm:$0xff]
  %v125 = vld [vmem:[%s1 + $0x2f8] sm:$0xff]
  %v126 = vld [vmem:[%s1 + $0x300] sm:$0xff]
  %v127 = vld [vmem:[%s1 + $0x308] sm:$0xff]
  %v128 = vld [vmem:[%s1 + $0x310] sm:$0xff]
  %v129 = vld [vmem:[%s1 + $0x318] sm:$0xff]
  %v130 = vld [vmem:[%s1 + $0x320] sm:$0xff]
  %v131 = vld [vmem:[%s1 + $0x328] sm:$0xff]
  %v132 = vld [vmem:[%s1 + $0x330] sm:$0xff]
  %v133 = vld [vmem:[%s1 + $0x338] sm:$0xff]
  %v134 = vld [vmem:[%s1 + $0x340] sm:$0xff]
  %v135 = vld [vmem:[%s1 + $0x348] sm:$0xff]
  %v136 = vld [vmem:[%s1 + $0x350] sm:$0xff]
  %v137 = vld [vmem:[%s1 + $0x358] sm:$0xff]
  %v138 = vld [vmem:[%s1 + $0x360] sm:$0xff]
  %v139 = vld [vmem:[%s1 + $0x368] sm:$0xff]
  %v140 = vld [vmem:[%s1 + $0x370] sm:$0xff]
  %v141 = vld [vmem:[%s1 + $0x378] sm:$0xff]
  %v142 = vld [vmem:[%s1 + $0x380] sm:$0xff]
  %v143 = vld [vmem:[%s1 + $0x388] sm:$0xff]
  %v144 = vld [vmem:[%s1 + $0x390] sm:$0xff]
  %v145 = vld [vmem:[%s1 + $0x398] sm:$0xff]
  %v146 = vld [vmem:[%s1 + $0x3a0] sm:$0xff]
  %v147 = vld [vmem:[%s1 + $0x3a8] sm:$0xff]
  %v148 = vld [vmem:[%s1 + $0x3b0] sm:$0xff]
  %v149 = vld [vmem:[%s1 + $0x3b8] sm:$0xff]
  %v150 = vld [vmem:[%s1 + $0x3c0] sm:$0xff]
  %v151 = vld [vmem:[%s1 + $0x3c8] sm:$0xff]
  %v152 = vld [vmem:[%s1 + $0x3d0] sm:$0xff]
  %v153 = vld [vmem:[%s1 + $0x3d8] sm:$0xff]
  %v154 = vld [vmem:[%s1 + $0x3e0] sm:$0xff]
  %v155 = vld [vmem:[%s1 + $0x3e8] sm:$0xff]
  %v156 = vld [vmem:[%s1 + $0x3f0] sm:$0xff]
  %v157 = vld [vmem:[%s1 + $0x3f8] sm:$0xff]
  %v158 = vld [vmem:[%s1 + $0x400] sm:$0xff]
  %v159 = vld [vmem:[%s1 + $0x408] sm:$0xff]
  %v160 = vld [vmem:[%s1 + $0x410] sm:$0xff]
  %v161 = vld [vmem:[%s1 + $0x418] sm:$0xff]
  %v162 = vld [vmem:[%s1 + $0x420] sm:$0xff]
  %v163 = vld [vmem:[%s1 + $0x428] sm:$0xff]
  %v164 = vld [vmem:[%s1 + $0x430] sm:$0xff]
  %v165 = vld [vmem:[%s1 + $0x438] sm:$0xff]
  %v166 = vld [vmem:[%s1 + $0x440] sm:$0xff]
  %v167 = vld [vmem:[%s1 + $0x448] sm:$0xff]
  %v168 = vld [vmem:[%s1 + $0x450] sm:$0xff]
  %v169 = vld [vmem:[%s1 + $0x458] sm:$0xff]
  %v170 = vld [vmem:[%s1 + $0x460] sm:$0xff]
  %v171 = vld [vmem:[%s1 + $0x468] sm:$0xff]
  %v172 = vld [vmem:[%s1 + $0x470] sm:$0xff]
  %v173 = vld [vmem:[%s1 + $0x478] sm:$0xff]
  %v174 = vld [vmem:[%s1 + $0x480] sm:$0xff]
  %v175 = vld [vmem:[%s1 + $0x488] sm:$0xff]
  %v176 = vld [vmem:[%s1 + $0x490] sm:$0xff]
  %v177 = vld [vmem:[%s1 + $0x498] sm:$0xff]
  %v178 = vld [vmem:[%s1 + $0x4a0] sm:$0xff]
  %v179 = vld [vmem:[%s1 + $0x4a8] sm:$0xff]
  %v180 = vld [vmem:[%s1 + $0x4b0] sm:$0xff]
  %v181 = vld [vmem:[%s1 + $0x4b8] sm:$0xff]
  %v182 = vld [vmem:[%s1 + $0x4c0] sm:$0xff]
  %v183 = vld [vmem:[%s1 + $0x4c8] sm:$0xff]
  %v184 = vld [vmem:[%s1 + $0x4d0] sm:$0xff]
  %v185 = vld [vmem:[%s1 + $0x4d8] sm:$0xff]
  %v186 = vld [vmem:[%s1 + $0x4e0] sm:$0xff]
  %v187 = vld [vmem:[%s1 + $0x4e8] sm:$0xff]
  %v188 = vld [vmem:[%s1 + $0x4f0] sm:$0xff]
  %v189 = vld [vmem:[%s1 + $0x4f8] sm:$0xff]
  %v190 = vld [vmem:[%s1 + $0x500] sm:$0xff]
  %v191 = vld [vmem:[%s1 + $0x508] sm:$0xff]
  %v192 = vld [vmem:[%s1 + $0x510] sm:$0xff]
  %v193 = vld [vmem:[%s1 + $0x518] sm:$0xff]
  %v194 = vld [vmem:[%s1 + $0x520] sm:$0xff]
  %v195 = vld [vmem:[%s1 + $0x528] sm:$0xff]
  %v196 = vld [vmem:[%s1 + $0x530] sm:$0xff]
  %v197 = vld [vmem:[%s1 + $0x538] sm:$0xff]
  %v198 = vld [vmem:[%s1 + $0x540] sm:$0xff]
  %v199 = vld [vmem:[%s1 + $0x548] sm:$0xff]
  %v200 = vld [vmem:[%s1 + $0x550] sm:$0xff]
  %v201 = vld [vmem:[%s1 + $0x558] sm:$0xff]
  %v202 = vld [vmem:[%s1 + $0x560] sm:$0xff]
  %v203 = vld [vmem:[%s1 + $0x568] sm:$0xff]
  %v204 = vld [vmem:[%s1 + $0x570] sm:$0xff]
  %v205 = vld [vmem:[%s1 + $0x578] sm:$0xff]
  %v206 = vld [vmem:[%s1 + $0x580] sm:$0xff]
  %v207 = vld [vmem:[%s1 + $0x588] sm:$0xff]
  %v208 = vld [vmem:[%s1 + $0x590] sm:$0xff]
  %v209 = vld [vmem:[%s1 + $0x598] sm:$0xff]
  %v210 = vld [vmem:[%s1 + $0x5a0] sm:$0xff]
  %v211 = vld [vmem:[%s1 + $0x5a8] sm:$0xff]
  %v212 = vld [vmem:[%s1 + $0x5b0] sm:$0xff]
  %v213 = vld [vmem:[%s1 + $0x5b8] sm:$0xff]
  %v214 = vld [vmem:[%s1 + $0x5c0] sm:$0xff]
  %v215 = vld [vmem:[%s1 + $0x5c8] sm:$0xff]
  %v216 = vld [vmem:[%s1 + $0x5d0] sm:$0xff]
  %v217 = vld [vmem:[%s1 + $0x5d8] sm:$0xff]
  %v218 = vld [vmem:[%s1 + $0x5e0] sm:$0xff]
  %v219 = vld [vmem:[%s1 + $0x5e8] sm:$0xff]
  %v220 = vld [vmem:[%s1 + $0x5f0] sm:$0xff]
  %v221 = vld [vmem:[%s1 + $0x5f8] sm:$0xff]
  %v222 = vld [vmem:[%s1 + $0x600] sm:$0xff]
  %v223 = vld [vmem:[%s1 + $0x608] sm:$0xff]
  %v224 = vld [vmem:[%s1 + $0x610] sm:$0xff]
  %v225 = vld [vmem:[%s1 + $0x618] sm:$0xff]
  %v226 = vld [vmem:[%s1 + $0x620] sm:$0xff]
  %v227 = vld [vmem:[%s1 + $0x628] sm:$0xff]
  %v228 = vld [vmem:[%s1 + $0x630] sm:$0xff]
  %v229 = vld [vmem:[%s1 + $0x638] sm:$0xff]
  %v230 = vld [vmem:[%s1 + $0x640] sm:$0xff]
  %v231 = vld [vmem:[%s1 + $0x648] sm:$0xff]
  %v232 = vld [vmem:[%s1 + $0x650] sm:$0xff]
  %v233 = vld [vmem:[%s1 + $0x658] sm:$0xff]
  %v234 = vld [vmem:[%s1 + $0x660] sm:$0xff]
  %v235 = vld [vmem:[%s1 + $0x668] sm:$0xff]
  %v236 = vld [vmem:[%s1 + $0x670] sm:$0xff]
  %v237 = vld [vmem:[%s1 + $0x678] sm:$0xff]
  %v238 = vld [vmem:[%s1 + $0x680] sm:$0xff]
  %v239 = vld [vmem:[%s1 + $0x688] sm:$0xff]
  %v240 = vld [vmem:[%s1 + $0x690] sm:$0xff]
  %v241 = vld [vmem:[%s1 + $0x698] sm:$0xff]
  %v242 = vld [vmem:[%s1 + $0x6a0] sm:$0xff]
  %v243 = vld [vmem:[%s1 + $0x6a8] sm:$0xff]
  %v244 = vld [vmem:[%s1 + $0x6b0] sm:$0xff]
  %v245 = vld [vmem:[%s1 + $0x6b8] sm:$0xff]
  %v246 = vld [vmem:[%s1 + $0x6c0] sm:$0xff]
  %v247 = vld [vmem:[%s1 + $0x6c8] sm:$0xff]
  %v248 = vld [vmem:[%s1 + $0x6d0] sm:$0xff]
  %v249 = vld [vmem:[%s1 + $0x6d8] sm:$0xff]
  %v250 = vld [vmem:[%s1 + $0x6e0] sm:$0xff]
  %v251 = vld [vmem:[%s1 + $0x6e8] sm:$0xff]
  %v252 = vld [vmem:[%s1 + $0x6f0] sm:$0xff]
  %v253 = vld [vmem:[%s1 + $0x6f8] sm:$0xff]
  %v254 = vld [vmem:[%s1 + $0x700] sm:$0xff]
  %v255 = vld [vmem:[%s1 + $0x708] sm:$0xff]
  %v256 = vld [vmem:[%s1 + $0x710] sm:$0xff]
  %v257 = vld [vmem:[%s1 + $0x718] sm:$0xff]
  %v258 = vld [vmem:[%s1 + $0x720] sm:$0xff]
  %v259 = vld [vmem:[%s1 + $0x728] sm:$0xff]
  %v260 = vld [vmem:[%s1 + $0x730] sm:$0xff]
  %v261 = vld [vmem:[%s1 + $0x738] sm:$0xff]
  %v262 = vld [vmem:[%s1 + $0x740] sm:$0xff]
  %v263 = vld [vmem:[%s1 + $0x748] sm:$0xff]
  %v264 = vld [vmem:[%s1 + $0x750] sm:$0xff]
  %v265 = vld [vmem:[%s1 + $0x758] sm:$0xff]
  %v266 = vld [vmem:[%s1 + $0x760] sm:$0xff]
  %v267 = vld [vmem:[%s1 + $0x768] sm:$0xff]
  %v268 = vld [vmem:[%s1 + $0x770] sm:$0xff]
  %v269 = vld [vmem:[%s1 + $0x778] sm:$0xff]
  %v270 = vld [vmem:[%s1 + $0x780] sm:$0xff]
  %v271 = vld [vmem:[%s1 + $0x788] sm:$0xff]
  %v272 = vld [vmem:[%s1 + $0x790] sm:$0xff]
  %v273 = vld [vmem:[%s1 + $0x798] sm:$0xff]
  %v274 = vld [vmem:[%s1 + $0x7a0] sm:$0xff]
  %v275 = vld [vmem:[%s1 + $0x7a8] sm:$0xff]
  %v276 = vld [vmem:[%s1 + $0x7b0] sm:$0xff]
  %v277 = vld [vmem:[%s1 + $0x7b8] sm:$0xff]
  %v278 = vld [vmem:[%s1 + $0x7c0] sm:$0xff]
  %v279 = vld [vmem:[%s1 + $0x7c8] sm:$0xff]
  %v280 = vld [vmem:[%s1 + $0x7d0] sm:$0xff]
  %v281 = vld [vmem:[%s1 + $0x7d8] sm:$0xff]
  %v282 = vld [vmem:[%s1 + $0x7e0] sm:$0xff]
  %v283 = vld [vmem:[%s1 + $0x7e8] sm:$0xff]
  %v284 = vld [vmem:[%s1 + $0x7f0] sm:$0xff]
  %v285 = vld [vmem:[%s1 + $0x7f8] sm:$0xff]
  %286 = vmatprep.subr.mxu0 %v91
  %287 = vmatpush1.msra.mxu0 %v90
  %288 = vmatprep.subr.mxu0 %v87
  %289 = vmatpush1.msra.mxu0 %v86
  %290 = vmatprep.subr.mxu0 %v83
  %291 = vmatpush1.msra.mxu0 %v82
  %292 = vmatprep.subr.mxu0 %v79
  %293 = vmatpush1.msra.mxu0 %v78
  %294 = vmatprep.subr.mxu0 %v75
  %295 = vmatpush1.msra.mxu0 %v74
  %296 = vmatprep.subr.mxu0 %v71
  %297 = vmatpush1.msra.mxu0 %v70
  %298 = vmatprep.subr.mxu0 %v67
  %299 = vmatpush1.msra.mxu0 %v66
  %300 = vmatprep.subr.mxu0 %v63
  %301 = vmatpush1.msra.mxu0 %v62
  %302 = vmatprep.subr.mxu0 %v59
  %303 = vmatpush1.msra.mxu0 %v58
  %304 = vmatprep.subr.mxu0 %v55
  %305 = vmatpush1.msra.mxu0 %v54
  %306 = vmatprep.subr.mxu0 %v51
  %307 = vmatpush1.msra.mxu0 %v50
  %308 = vmatprep.subr.mxu0 %v47
  %309 = vmatpush1.msra.mxu0 %v46
  %310 = vmatprep.subr.mxu0 %v43
  %311 = vmatpush1.msra.mxu0 %v42
  %312 = vmatprep.subr.mxu0 %v39
  %313 = vmatpush1.msra.mxu0 %v38
  %314 = vmatprep.subr.mxu0 %v35
  %315 = vmatpush1.msra.mxu0 %v34
  %316 = vmatprep.subr.mxu0 %v31
  %317 = vmatpush1.msra.mxu0 %v30
  %318 = vmatprep.subr.mxu0 %v155
  %319 = vmatpush2.msra.mxu0 %v154
  %320 = vmatprep.subr.mxu0 %v151
  %321 = vmatpush2.msra.mxu0 %v150
  %322 = vmatprep.subr.mxu0 %v147
  %323 = vmatpush2.msra.mxu0 %v146
  %324 = vmatprep.subr.mxu0 %v143
  %325 = vmatpush2.msra.mxu0 %v142
  %326 = vmatprep.subr.mxu0 %v139
  %327 = vmatpush2.msra.mxu0 %v138
  %328 = vmatprep.subr.mxu0 %v135
  %329 = vmatpush2.msra.mxu0 %v134
  %330 = vmatprep.subr.mxu0 %v131
  %331 = vmatpush2.msra.mxu0 %v130
  %332 = vmatprep.subr.mxu0 %v127
  %333 = vmatpush2.msra.mxu0 %v126
  %334 = vmatprep.subr.mxu0 %v123
  %335 = vmatpush2.msra.mxu0 %v122
  %336 = vmatprep.subr.mxu0 %v119
  %337 = vmatpush2.msra.mxu0 %v118
  %338 = vmatprep.subr.mxu0 %v115
  %339 = vmatpush2.msra.mxu0 %v114
  %340 = vmatprep.subr.mxu0 %v111
  %341 = vmatpush2.msra.mxu0 %v110
  %342 = vmatprep.subr.mxu0 %v107
  %343 = vmatpush2.msra.mxu0 %v106
  %344 = vmatprep.subr.mxu0 %v103
  %345 = vmatpush2.msra.mxu0 %v102
  %346 = vmatprep.subr.mxu0 %v99
  %347 = vmatpush2.msra.mxu0 %v98
  %348 = vmatprep.subr.mxu0 %v95
  %349 = vmatpush2.msra.mxu0 %v94
  %350 = vmatprep.mubr.f32.mxu0 %v27
  %351 = vmatmul.mubr.f32.gmra.mxu0 %v26
  %v352 = vpop.f32.mrf.mxu0
  %v353 = vadd.f32 0.0, %v352
  %v354 = vpop.f32.mrf.mxu0
  %v355 = vadd.f32 0.0, %v354
  %356 = vdwg.mxu0
  %357 = vmatprep.subr.mxu0 %v219
  %358 = vmatpush1.msra.mxu0 %v218
  %359 = vmatprep.subr.mxu0 %v215
  %360 = vmatpush1.msra.mxu0 %v214
  %361 = vmatprep.subr.mxu0 %v211
  %362 = vmatpush1.msra.mxu0 %v210
  %363 = vmatprep.subr.mxu0 %v207
  %364 = vmatpush1.msra.mxu0 %v206
  %365 = vmatprep.subr.mxu0 %v203
  %366 = vmatpush1.msra.mxu0 %v202
  %367 = vmatprep.subr.mxu0 %v199
  %368 = vmatpush1.msra.mxu0 %v198
  %369 = vmatprep.subr.mxu0 %v195
  %370 = vmatpush1.msra.mxu0 %v194
  %371 = vmatprep.subr.mxu0 %v191
  %372 = vmatpush1.msra.mxu0 %v190
  %373 = vmatprep.subr.mxu0 %v187
  %374 = vmatpush1.msra.mxu0 %v186
  %375 = vmatprep.subr.mxu0 %v183
  %376 = vmatpush1.msra.mxu0 %v182
  %377 = vmatprep.subr.mxu0 %v179
  %378 = vmatpush1.msra.mxu0 %v178
  %379 = vmatprep.subr.mxu0 %v175
  %380 = vmatpush1.msra.mxu0 %v174
  %381 = vmatprep.subr.mxu0 %v171
  %382 = vmatpush1.msra.mxu0 %v170
  %383 = vmatprep.subr.mxu0 %v167
  %384 = vmatpush1.msra.mxu0 %v166
  %385 = vmatprep.subr.mxu0 %v163
  %386 = vmatpush1.msra.mxu0 %v162
  %387 = vmatprep.subr.mxu0 %v159
  %388 = vmatpush1.msra.mxu0 %v158
  %389 = vmatprep.subr.mxu0 %v283
  %390 = vmatpush2.msra.mxu0 %v282
  %391 = vmatprep.subr.mxu0 %v279
  %392 = vmatpush2.msra.mxu0 %v278
  %393 = vmatprep.subr.mxu0 %v275
  %394 = vmatpush2.msra.mxu0 %v274
  %395 = vmatprep.subr.mxu0 %v271
  %396 = vmatpush2.msra.mxu0 %v270
  %397 = vmatprep.subr.mxu0 %v267
  %398 = vmatpush2.msra.mxu0 %v266
  %399 = vmatprep.subr.mxu0 %v263
  %400 = vmatpush2.msra.mxu0 %v262
  %401 = vmatprep.subr.mxu0 %v259
  %402 = vmatpush2.msra.mxu0 %v258
  %403 = vmatprep.subr.mxu0 %v255
  %404 = vmatpush2.msra.mxu0 %v254
  %405 = vmatprep.subr.mxu0 %v251
  %406 = vmatpush2.msra.mxu0 %v250
  %407 = vmatprep.subr.mxu0 %v247
  %408 = vmatpush2.msra.mxu0 %v246
  %409 = vmatprep.subr.mxu0 %v243
  %410 = vmatpush2.msra.mxu0 %v242
  %411 = vmatprep.subr.mxu0 %v239
  %412 = vmatpush2.msra.mxu0 %v238
  %413 = vmatprep.subr.mxu0 %v235
  %414 = vmatpush2.msra.mxu0 %v234
  %415 = vmatprep.subr.mxu0 %v231
  %416 = vmatpush2.msra.mxu0 %v230
  %417 = vmatprep.subr.mxu0 %v227
  %418 = vmatpush2.msra.mxu0 %v226
  %419 = vmatprep.subr.mxu0 %v223
  %420 = vmatpush2.msra.mxu0 %v222
  %421 = vmatprep.mubr.f32.mxu0 %v29
  %422 = vmatmul.mubr.f32.gmra.mxu0 %v28
  %v423 = vpop.f32.mrf.mxu0
  %v424 = vadd.f32 %v353, %v423
  %v425 = vpop.f32.mrf.mxu0
  %v426 = vadd.f32 %v355, %v425
  %427 = vdwg.mxu0
  %428 = vmatprep.subr.mxu0 %v93
  %429 = vmatpush1.msra.mxu0 %v92
  %430 = vmatprep.subr.mxu0 %v89
  %431 = vmatpush1.msra.mxu0 %v88
  %432 = vmatprep.subr.mxu0 %v85
  %433 = vmatpush1.msra.mxu0 %v84
  %434 = vmatprep.subr.mxu0 %v81
  %435 = vmatpush1.msra.mxu0 %v80
  %436 = vmatprep.subr.mxu0 %v77
  %437 = vmatpush1.msra.mxu0 %v76
  %438 = vmatprep.subr.mxu0 %v73
  %439 = vmatpush1.msra.mxu0 %v72
  %440 = vmatprep.subr.mxu0 %v69
  %441 = vmatpush1.msra.mxu0 %v68
  %442 = vmatprep.subr.mxu0 %v65
  %443 = vmatpush1.msra.mxu0 %v64
  %444 = vmatprep.subr.mxu0 %v61
  %445 = vmatpush1.msra.mxu0 %v60
  %446 = vmatprep.subr.mxu0 %v57
  %447 = vmatpush1.msra.mxu0 %v56
  %448 = vmatprep.subr.mxu0 %v53
  %449 = vmatpush1.msra.mxu0 %v52
  %450 = vmatprep.subr.mxu0 %v49
  %451 = vmatpush1.msra.mxu0 %v48
  %452 = vmatprep.subr.mxu0 %v45
  %453 = vmatpush1.msra.mxu0 %v44
  %454 = vmatprep.subr.mxu0 %v41
  %455 = vmatpush1.msra.mxu0 %v40
  %456 = vmatprep.subr.mxu0 %v37
  %457 = vmatpush1.msra.mxu0 %v36
  %458 = vmatprep.subr.mxu0 %v33
  %459 = vmatpush1.msra.mxu0 %v32
  %460 = vmatprep.subr.mxu0 %v157
  %461 = vmatpush2.msra.mxu0 %v156
  %462 = vmatprep.subr.mxu0 %v153
  %463 = vmatpush2.msra.mxu0 %v152
  %464 = vmatprep.subr.mxu0 %v149
  %465 = vmatpush2.msra.mxu0 %v148
  %466 = vmatprep.subr.mxu0 %v145
  %467 = vmatpush2.msra.mxu0 %v144
  %468 = vmatprep.subr.mxu0 %v141
  %469 = vmatpush2.msra.mxu0 %v140
  %470 = vmatprep.subr.mxu0 %v137
  %471 = vmatpush2.msra.mxu0 %v136
  %472 = vmatprep.subr.mxu0 %v133
  %473 = vmatpush2.msra.mxu0 %v132
  %474 = vmatprep.subr.mxu0 %v129
  %475 = vmatpush2.msra.mxu0 %v128
  %476 = vmatprep.subr.mxu0 %v125
  %477 = vmatpush2.msra.mxu0 %v124
  %478 = vmatprep.subr.mxu0 %v121
  %479 = vmatpush2.msra.mxu0 %v120
  %480 = vmatprep.subr.mxu0 %v117
  %481 = vmatpush2.msra.mxu0 %v116
  %482 = vmatprep.subr.mxu0 %v113
  %483 = vmatpush2.msra.mxu0 %v112
  %484 = vmatprep.subr.mxu0 %v109
  %485 = vmatpush2.msra.mxu0 %v108
  %486 = vmatprep.subr.mxu0 %v105
  %487 = vmatpush2.msra.mxu0 %v104
  %488 = vmatprep.subr.mxu0 %v101
  %489 = vmatpush2.msra.mxu0 %v100
  %490 = vmatprep.subr.mxu0 %v97
  %491 = vmatpush2.msra.mxu0 %v96
  %492 = vmatprep.mubr.f32.mxu0 %v27
  %493 = vmatmul.mubr.f32.gmra.mxu0 %v26
  %v494 = vpop.f32.mrf.mxu0
  %v495 = vadd.f32 0.0, %v494
  %v496 = vpop.f32.mrf.mxu0
  %v497 = vadd.f32 0.0, %v496
  %498 = vdwg.mxu0
  %499 = vmatprep.subr.mxu0 %v221
  %500 = vmatpush1.msra.mxu0 %v220
  %501 = vmatprep.subr.mxu0 %v217
  %502 = vmatpush1.msra.mxu0 %v216
  %503 = vmatprep.subr.mxu0 %v213
  %504 = vmatpush1.msra.mxu0 %v212
  %505 = vmatprep.subr.mxu0 %v209
  %506 = vmatpush1.msra.mxu0 %v208
  %507 = vmatprep.subr.mxu0 %v205
  %508 = vmatpush1.msra.mxu0 %v204
  %509 = vmatprep.subr.mxu0 %v201
  %510 = vmatpush1.msra.mxu0 %v200
  %511 = vmatprep.subr.mxu0 %v197
  %512 = vmatpush1.msra.mxu0 %v196
  %513 = vmatprep.subr.mxu0 %v193
  %514 = vmatpush1.msra.mxu0 %v192
  %515 = vmatprep.subr.mxu0 %v189
  %516 = vmatpush1.msra.mxu0 %v188
  %517 = vmatprep.subr.mxu0 %v185
  %518 = vmatpush1.msra.mxu0 %v184
  %519 = vmatprep.subr.mxu0 %v181
  %520 = vmatpush1.msra.mxu0 %v180
  %521 = vmatprep.subr.mxu0 %v177
  %522 = vmatpush1.msra.mxu0 %v176
  %523 = vmatprep.subr.mxu0 %v173
  %524 = vmatpush1.msra.mxu0 %v172
  %525 = vmatprep.subr.mxu0 %v169
  %526 = vmatpush1.msra.mxu0 %v168
  %527 = vmatprep.subr.mxu0 %v165
  %528 = vmatpush1.msra.mxu0 %v164
  %529 = vmatprep.subr.mxu0 %v161
  %530 = vmatpush1.msra.mxu0 %v160
  %531 = vmatprep.subr.mxu0 %v285
  %532 = vmatpush2.msra.mxu0 %v284
  %533 = vmatprep.subr.mxu0 %v281
  %534 = vmatpush2.msra.mxu0 %v280
  %535 = vmatprep.subr.mxu0 %v277
  %536 = vmatpush2.msra.mxu0 %v276
  %537 = vmatprep.subr.mxu0 %v273
  %538 = vmatpush2.msra.mxu0 %v272
  %539 = vmatprep.subr.mxu0 %v269
  %540 = vmatpush2.msra.mxu0 %v268
  %541 = vmatprep.subr.mxu0 %v265
  %542 = vmatpush2.msra.mxu0 %v264
  %543 = vmatprep.subr.mxu0 %v261
  %544 = vmatpush2.msra.mxu0 %v260
  %545 = vmatprep.subr.mxu0 %v257
  %546 = vmatpush2.msra.mxu0 %v256
  %547 = vmatprep.subr.mxu0 %v253
  %548 = vmatpush2.msra.mxu0 %v252
  %549 = vmatprep.subr.mxu0 %v249
  %550 = vmatpush2.msra.mxu0 %v248
  %551 = vmatprep.subr.mxu0 %v245
  %552 = vmatpush2.msra.mxu0 %v244
  %553 = vmatprep.subr.mxu0 %v241
  %554 = vmatpush2.msra.mxu0 %v240
  %555 = vmatprep.subr.mxu0 %v237
  %556 = vmatpush2.msra.mxu0 %v236
  %557 = vmatprep.subr.mxu0 %v233
  %558 = vmatpush2.msra.mxu0 %v232
  %559 = vmatprep.subr.mxu0 %v229
  %560 = vmatpush2.msra.mxu0 %v228
  %561 = vmatprep.subr.mxu0 %v225
  %562 = vmatpush2.msra.mxu0 %v224
  %563 = vmatprep.mubr.f32.mxu0 %v29
  %564 = vmatmul.mubr.f32.gmra.mxu0 %v28
  %v565 = vpop.f32.mrf.mxu0
  %v566 = vadd.f32 %v495, %v565
  %v567 = vpop.f32.mrf.mxu0
  %v568 = vadd.f32 %v497, %v567
  %569 = vdwg.mxu0
  %v570 = vld [vmem:[%s2] sm:$0xf]
  %v572 = vlaneseq
  %v573 = vshrl.u32 %v572, 7
  %v574 = vsub.s32 0, %v573
  %v575 = vrot.slane %v570, %v574
  %v576 = vlaneseq
  %v577 = vshrl.u32 %v576, 7
  %v578 = vsub.s32 1, %v577
  %v579 = vrot.slane %v570, %v578
  %v580 = vlaneseq
  %v581 = vshrl.u32 %v580, 7
  %v582 = vsub.s32 2, %v581
  %v583 = vrot.slane %v570, %v582
  %v584 = vlaneseq
  %v585 = vshrl.u32 %v584, 7
  %v586 = vsub.s32 3, %v585
  %v587 = vrot.slane %v570, %v586
  %v592 = vmul.f32 %v424, %v575
  %v593 = vmul.f32 %v426, %v579
  %v594 = vmul.f32 %v566, %v583
  %v595 = vmul.f32 %v568, %v587
  %v596 = vld [vmem:[%s3] sm:$0xf]
  %v598 = vlaneseq
  %v599 = vshrl.u32 %v598, 7
  %v600 = vsub.s32 0, %v599
  %v601 = vrot.slane %v596, %v600
  %v602 = vlaneseq
  %v603 = vshrl.u32 %v602, 7
  %v604 = vsub.s32 1, %v603
  %v605 = vrot.slane %v596, %v604
  %v606 = vlaneseq
  %v607 = vshrl.u32 %v606, 7
  %v608 = vsub.s32 2, %v607
  %v609 = vrot.slane %v596, %v608
  %v610 = vlaneseq
  %v611 = vshrl.u32 %v610, 7
  %v612 = vsub.s32 3, %v611
  %v613 = vrot.slane %v596, %v612
  %v618 = vadd.f32 %v592, %v601
  %v619 = vadd.f32 %v593, %v605
  %v620 = vadd.f32 %v594, %v609
  %v621 = vadd.f32 %v595, %v613
  %v622 = vld [vmem:[%s4] sm:$0xff]
  %v623 = vld [vmem:[%s4 + $0x8] sm:$0xff]
  %v624 = vld [vmem:[%s4 + $0x10] sm:$0xff]
  %v625 = vld [vmem:[%s4 + $0x18] sm:$0xff]
  %v626 = vld [vmem:[%s4 + $0x20] sm:$0xff]
  %v627 = vld [vmem:[%s4 + $0x28] sm:$0xff]
  %v628 = vld [vmem:[%s4 + $0x30] sm:$0xff]
  %v629 = vld [vmem:[%s4 + $0x38] sm:$0xff]
  %v630 = vld [vmem:[%s4 + $0x40] sm:$0xff]
  %v631 = vld [vmem:[%s4 + $0x48] sm:$0xff]
  %v632 = vld [vmem:[%s4 + $0x50] sm:$0xff]
  %v633 = vld [vmem:[%s4 + $0x58] sm:$0xff]
  %v634 = vld [vmem:[%s4 + $0x60] sm:$0xff]
  %v635 = vld [vmem:[%s4 + $0x68] sm:$0xff]
  %v636 = vld [vmem:[%s4 + $0x70] sm:$0xff]
  %v637 = vld [vmem:[%s4 + $0x78] sm:$0xff]
  %v638 = vld [vmem:[%s4 + $0x80] sm:$0xff]
  %v639 = vld [vmem:[%s4 + $0x88] sm:$0xff]
  %v640 = vld [vmem:[%s4 + $0x90] sm:$0xff]
  %v641 = vld [vmem:[%s4 + $0x98] sm:$0xff]
  %v642 = vld [vmem:[%s4 + $0xa0] sm:$0xff]
  %v643 = vld [vmem:[%s4 + $0xa8] sm:$0xff]
  %v644 = vld [vmem:[%s4 + $0xb0] sm:$0xff]
  %v645 = vld [vmem:[%s4 + $0xb8] sm:$0xff]
  %v646 = vld [vmem:[%s4 + $0xc0] sm:$0xff]
  %v647 = vld [vmem:[%s4 + $0xc8] sm:$0xff]
  %v648 = vld [vmem:[%s4 + $0xd0] sm:$0xff]
  %v649 = vld [vmem:[%s4 + $0xd8] sm:$0xff]
  %v650 = vld [vmem:[%s4 + $0xe0] sm:$0xff]
  %v651 = vld [vmem:[%s4 + $0xe8] sm:$0xff]
  %v652 = vld [vmem:[%s4 + $0xf0] sm:$0xff]
  %v653 = vld [vmem:[%s4 + $0xf8] sm:$0xff]
  %v654 = vld [vmem:[%s4 + $0x100] sm:$0xff]
  %v655 = vld [vmem:[%s4 + $0x108] sm:$0xff]
  %v656 = vld [vmem:[%s4 + $0x110] sm:$0xff]
  %v657 = vld [vmem:[%s4 + $0x118] sm:$0xff]
  %v658 = vld [vmem:[%s4 + $0x120] sm:$0xff]
  %v659 = vld [vmem:[%s4 + $0x128] sm:$0xff]
  %v660 = vld [vmem:[%s4 + $0x130] sm:$0xff]
  %v661 = vld [vmem:[%s4 + $0x138] sm:$0xff]
  %v662 = vld [vmem:[%s4 + $0x140] sm:$0xff]
  %v663 = vld [vmem:[%s4 + $0x148] sm:$0xff]
  %v664 = vld [vmem:[%s4 + $0x150] sm:$0xff]
  %v665 = vld [vmem:[%s4 + $0x158] sm:$0xff]
  %v666 = vld [vmem:[%s4 + $0x160] sm:$0xff]
  %v667 = vld [vmem:[%s4 + $0x168] sm:$0xff]
  %v668 = vld [vmem:[%s4 + $0x170] sm:$0xff]
  %v669 = vld [vmem:[%s4 + $0x178] sm:$0xff]
  %v670 = vld [vmem:[%s4 + $0x180] sm:$0xff]
  %v671 = vld [vmem:[%s4 + $0x188] sm:$0xff]
  %v672 = vld [vmem:[%s4 + $0x190] sm:$0xff]
  %v673 = vld [vmem:[%s4 + $0x198] sm:$0xff]
  %v674 = vld [vmem:[%s4 + $0x1a0] sm:$0xff]
  %v675 = vld [vmem:[%s4 + $0x1a8] sm:$0xff]
  %v676 = vld [vmem:[%s4 + $0x1b0] sm:$0xff]
  %v677 = vld [vmem:[%s4 + $0x1b8] sm:$0xff]
  %v678 = vld [vmem:[%s4 + $0x1c0] sm:$0xff]
  %v679 = vld [vmem:[%s4 + $0x1c8] sm:$0xff]
  %v680 = vld [vmem:[%s4 + $0x1d0] sm:$0xff]
  %v681 = vld [vmem:[%s4 + $0x1d8] sm:$0xff]
  %v682 = vld [vmem:[%s4 + $0x1e0] sm:$0xff]
  %v683 = vld [vmem:[%s4 + $0x1e8] sm:$0xff]
  %v684 = vld [vmem:[%s4 + $0x1f0] sm:$0xff]
  %v685 = vld [vmem:[%s4 + $0x1f8] sm:$0xff]
  %686 = vmatprep.subr.mxu0 0.0
  %687 = vmatpush1.msra.mxu0 %v637
  %688 = vmatprep.subr.mxu0 0.0
  %689 = vmatpush1.msra.mxu0 %v636
  %690 = vmatprep.subr.mxu0 0.0
  %691 = vmatpush1.msra.mxu0 %v635
  %692 = vmatprep.subr.mxu0 0.0
  %693 = vmatpush1.msra.mxu0 %v634
  %694 = vmatprep.subr.mxu0 0.0
  %695 = vmatpush1.msra.mxu0 %v633
  %696 = vmatprep.subr.mxu0 0.0
  %697 = vmatpush1.msra.mxu0 %v632
  %698 = vmatprep.subr.mxu0 0.0
  %699 = vmatpush1.msra.mxu0 %v631
  %700 = vmatprep.subr.mxu0 0.0
  %701 = vmatpush1.msra.mxu0 %v630
  %702 = vmatprep.subr.mxu0 0.0
  %703 = vmatpush1.msra.mxu0 %v629
  %704 = vmatprep.subr.mxu0 0.0
  %705 = vmatpush1.msra.mxu0 %v628
  %706 = vmatprep.subr.mxu0 0.0
  %707 = vmatpush1.msra.mxu0 %v627
  %708 = vmatprep.subr.mxu0 0.0
  %709 = vmatpush1.msra.mxu0 %v626
  %710 = vmatprep.subr.mxu0 0.0
  %711 = vmatpush1.msra.mxu0 %v625
  %712 = vmatprep.subr.mxu0 0.0
  %713 = vmatpush1.msra.mxu0 %v624
  %714 = vmatprep.subr.mxu0 0.0
  %715 = vmatpush1.msra.mxu0 %v623
  %716 = vmatprep.subr.mxu0 0.0
  %717 = vmatpush1.msra.mxu0 %v622
  %718 = vmatprep.subr.mxu0 0.0
  %719 = vmatpush2.msra.mxu0 %v653
  %720 = vmatprep.subr.mxu0 0.0
  %721 = vmatpush2.msra.mxu0 %v652
  %722 = vmatprep.subr.mxu0 0.0
  %723 = vmatpush2.msra.mxu0 %v651
  %724 = vmatprep.subr.mxu0 0.0
  %725 = vmatpush2.msra.mxu0 %v650
  %726 = vmatprep.subr.mxu0 0.0
  %727 = vmatpush2.msra.mxu0 %v649
  %728 = vmatprep.subr.mxu0 0.0
  %729 = vmatpush2.msra.mxu0 %v648
  %730 = vmatprep.subr.mxu0 0.0
  %731 = vmatpush2.msra.mxu0 %v647
  %732 = vmatprep.subr.mxu0 0.0
  %733 = vmatpush2.msra.mxu0 %v646
  %734 = vmatprep.subr.mxu0 0.0
  %735 = vmatpush2.msra.mxu0 %v645
  %736 = vmatprep.subr.mxu0 0.0
  %737 = vmatpush2.msra.mxu0 %v644
  %738 = vmatprep.subr.mxu0 0.0
  %739 = vmatpush2.msra.mxu0 %v643
  %740 = vmatprep.subr.mxu0 0.0
  %741 = vmatpush2.msra.mxu0 %v642
  %742 = vmatprep.subr.mxu0 0.0
  %743 = vmatpush2.msra.mxu0 %v641
  %744 = vmatprep.subr.mxu0 0.0
  %745 = vmatpush2.msra.mxu0 %v640
  %746 = vmatprep.subr.mxu0 0.0
  %747 = vmatpush2.msra.mxu0 %v639
  %748 = vmatprep.subr.mxu0 0.0
  %749 = vmatpush2.msra.mxu0 %v638
  %750 = vmatprep.mubr.f32.mxu0 %v619
  %751 = vmatmul.mubr.f32.gmra.mxu0 %v618
  %v752 = vpop.f32.mrf.mxu0
  %v753 = vadd.f32 0.0, %v752
  %v754 = vpop.f32.mrf.mxu0
  %755 = vdwg.mxu0
  %756 = vmatprep.subr.mxu0 0.0
  %757 = vmatpush1.msra.mxu0 %v669
  %758 = vmatprep.subr.mxu0 0.0
  %759 = vmatpush1.msra.mxu0 %v668
  %760 = vmatprep.subr.mxu0 0.0
  %761 = vmatpush1.msra.mxu0 %v667
  %762 = vmatprep.subr.mxu0 0.0
  %763 = vmatpush1.msra.mxu0 %v666
  %764 = vmatprep.subr.mxu0 0.0
  %765 = vmatpush1.msra.mxu0 %v665
  %766 = vmatprep.subr.mxu0 0.0
  %767 = vmatpush1.msra.mxu0 %v664
  %768 = vmatprep.subr.mxu0 0.0
  %769 = vmatpush1.msra.mxu0 %v663
  %770 = vmatprep.subr.mxu0 0.0
  %771 = vmatpush1.msra.mxu0 %v662
  %772 = vmatprep.subr.mxu0 0.0
  %773 = vmatpush1.msra.mxu0 %v661
  %774 = vmatprep.subr.mxu0 0.0
  %775 = vmatpush1.msra.mxu0 %v660
  %776 = vmatprep.subr.mxu0 0.0
  %777 = vmatpush1.msra.mxu0 %v659
  %778 = vmatprep.subr.mxu0 0.0
  %779 = vmatpush1.msra.mxu0 %v658
  %780 = vmatprep.subr.mxu0 0.0
  %781 = vmatpush1.msra.mxu0 %v657
  %782 = vmatprep.subr.mxu0 0.0
  %783 = vmatpush1.msra.mxu0 %v656
  %784 = vmatprep.subr.mxu0 0.0
  %785 = vmatpush1.msra.mxu0 %v655
  %786 = vmatprep.subr.mxu0 0.0
  %787 = vmatpush1.msra.mxu0 %v654
  %788 = vmatprep.subr.mxu0 0.0
  %789 = vmatpush2.msra.mxu0 %v685
  %790 = vmatprep.subr.mxu0 0.0
  %791 = vmatpush2.msra.mxu0 %v684
  %792 = vmatprep.subr.mxu0 0.0
  %793 = vmatpush2.msra.mxu0 %v683
  %794 = vmatprep.subr.mxu0 0.0
  %795 = vmatpush2.msra.mxu0 %v682
  %796 = vmatprep.subr.mxu0 0.0
  %797 = vmatpush2.msra.mxu0 %v681
  %798 = vmatprep.subr.mxu0 0.0
  %799 = vmatpush2.msra.mxu0 %v680
  %800 = vmatprep.subr.mxu0 0.0
  %801 = vmatpush2.msra.mxu0 %v679
  %802 = vmatprep.subr.mxu0 0.0
  %803 = vmatpush2.msra.mxu0 %v678
  %804 = vmatprep.subr.mxu0 0.0
  %805 = vmatpush2.msra.mxu0 %v677
  %806 = vmatprep.subr.mxu0 0.0
  %807 = vmatpush2.msra.mxu0 %v676
  %808 = vmatprep.subr.mxu0 0.0
  %809 = vmatpush2.msra.mxu0 %v675
  %810 = vmatprep.subr.mxu0 0.0
  %811 = vmatpush2.msra.mxu0 %v674
  %812 = vmatprep.subr.mxu0 0.0
  %813 = vmatpush2.msra.mxu0 %v673
  %814 = vmatprep.subr.mxu0 0.0
  %815 = vmatpush2.msra.mxu0 %v672
  %816 = vmatprep.subr.mxu0 0.0
  %817 = vmatpush2.msra.mxu0 %v671
  %818 = vmatprep.subr.mxu0 0.0
  %819 = vmatpush2.msra.mxu0 %v670
  %820 = vmatprep.mubr.f32.mxu0 %v621
  %821 = vmatmul.mubr.f32.gmra.mxu0 %v620
  %v822 = vpop.f32.mrf.mxu0
  %v823 = vadd.f32 %v753, %v822
  %v824 = vpop.f32.mrf.mxu0
  %825 = vdwg.mxu0
  %v826 = vld [vmem:[%s5] sm:$0x1]
  %v828 = vlaneseq
  %v829 = vshrl.u32 %v828, 7
  %v830 = vsub.s32 0, %v829
  %v831 = vrot.slane %v826, %v830
  %v833 = vmul.f32 %v823, %v831
  %v834 = vld [vmem:[%s6] sm:$0x1]
  %v836 = vlaneseq
  %v837 = vshrl.u32 %v836, 7
  %v838 = vsub.s32 0, %v837
  %v839 = vrot.slane %v834, %v838
  %v841 = vadd.f32 %v833, %v839
  %v842 = vlaneseq
  %v843 = vand.u32 %v842, 127
  %vm844 = vcmp.lt.s32.totalorder %v843, 113
  %v845 = vsel %vm844, %v841, -inf
  %846 = vmax.xlane.f32.xlu0 %v845
  %v847 = vpop.xlane.xlu0 %846
  %v848 = vsub.f32 %v845, %v847
  %v849 = vmul.f32 %v848, 1.442695
  %v850 = vpow.pop %v849
  %851 = vadd.xlane.f32.xlu0 %v850
  %v852 = vpop.xlane.xlu0 %851
  %v853 = vrcp.pop %v852
  %v854 = vmul.f32 %v850, %v853
  %855 = vst [vmem:[%s7] sm:$0xff] %v854
  // Predicated region
  $region30: #{dense2hidden_tiny_forward.3} parent=0 // pred_check
    _
  $region31: #{dense2hidden_tiny_forward.3} parent=0 // pred_check_branch
    %857 = sbr.rel (0) target = $region33
  $region32: #{dense2hidden_tiny_forward.3} parent=0 // pred_region
    _
  $region33: #{dense2hidden_tiny_forward.3} parent=0 // pred_fallthru
    _
  // Predicated region
  $region34: #{dense2hidden_tiny_forward.3} parent=0 // pred_check
    _
  $region35: #{dense2hidden_tiny_forward.3} parent=0 // pred_check_branch
    %859 = sbr.rel (0) target = $region37
  $region36: #{dense2hidden_tiny_forward.3} parent=0 // pred_region
    _
  $region37: #{dense2hidden_tiny_forward.3} parent=0 // pred_fallthru
    _

// kernel: dense2hidden_tiny_forward.2
$region0: #{dense2hidden_tiny_forward.2}
  #allocation0 [shape = 'u32[]', space=smem, size = 0x4, offset = 0x4, fixed_abs, tag = 'smem constant byte address 0x4 - core index']
  #allocation1 [shape = 'u32[144,128]{1,0:T(1,128)}', space=vmem, size = 0x12000, scoped, tag = 'internal scratch']
  #allocation2 [shape = 'f32[8,256]{1,0:T(8,128)}', space=vmem, size = 0x2000, scoped, tag = 'scratch operand']
  %s0 = inlined_call_operand.vmem [shape: bf16[8,30080], index: 0, kind: input, shape index: {}]
  %s1 = inlined_call_operand.hbm [shape: s8[30080,512], index: 1, kind: input, shape index: {}]
  %s2 = inlined_call_operand.hbm [shape: f32[1,512], index: 2, kind: input, shape index: {}]
  %s3 = inlined_call_operand.hbm [shape: f32[1,512], index: 3, kind: input, shape index: {}]
  %s4 = inlined_call_operand.vmem [shape: f32[8,512], index: 4, kind: output, shape index: {}]
  %s5 = sld [smem:[#allocation0]]
  $region69: #{dense2hidden_tiny_forward.2} parent=0
    _
  %s7 = ssub.s32 1, %s5
  %s8 = scalar_select 0, %s7, %s5
  $region1: #{dense2hidden_tiny_forward.2} parent=0
    #allocation3 [shape = 'u8[3080192]{0}', space=vmem, size = 0x2f0000, scoped, tag = 'input window, operand 1']
    #allocation4 [shape = 's32[2]{0}', space=sflag, size = 0x8, scoped, tag = 'scoped memory for dense2hidden_tiny_forward.2']
    #allocation5 [shape = 'u8[2048]{0}', space=vmem, size = 0x800, scoped, tag = 'input window, operand 2']
    #allocation6 [shape = 's32[2]{0}', space=sflag, size = 0x8, scoped, tag = 'scoped memory for dense2hidden_tiny_forward.2']
    #allocation7 [shape = 'u8[2048]{0}', space=vmem, size = 0x800, scoped, tag = 'input window, operand 3']
    %9 = vsyncpa [#allocation4], 0
    %s10 = scalar_lea.sflag [#allocation4], 1
    %11 = vsyncpa %s10, 0
    %12 = vsyncpa [#allocation6], 0
    %s13 = scalar_lea.sflag [#allocation6], 1
    %14 = vsyncpa %s13, 0
    loop: start=0, step=1, limit=12
    $region2: #{dense2hidden_tiny_forward.2} parent=1 // loop_pre_header
      _
    $region3: #{dense2hidden_tiny_forward.2} parent=1 // loop_header
      %s16 = sphi 0, %s20
      %p17 = scmp.ge.s32.totalorder %s16, 12
      %s23 = sphi 0, %s35
      %s24 = sphi 0, %s31
      %s25 = sphi 0, %s23
      %s26 = sphi 0, %s24
      %s27 = sphi 0, %s25
      %s28 = sphi 0, %s26
      %s38 = sphi 0, %s40
      %s41 = sphi 0, %s38
      %s42 = sphi 0, %s41
      %s58 = sphi 0, %s42
      %s66 = sphi 0, %s68
      %s69 = sphi 0, %s66
      %s70 = sphi 0, %s69
      %s86 = sphi 0, %s70
      %s92 = sphi 0, %s94
      %s95 = sphi 0, %s92
      %s96 = sphi 0, %s95
      %s112 = sphi 0, %s96
      %s118 = sphi 0, %s120
      %s121 = sphi 0, %s118
      %s122 = sphi 0, %s121
      %s138 = sphi 0, %s122
      %s144 = sphi 0, %s146
      %s147 = sphi 0, %s144
      %s148 = sphi 0, %s147
      %s164 = sphi 0, %s148
    $region4: #{dense2hidden_tiny_forward.2} parent=1 // loop_header_branch
      %19 = sbr.rel (%p17) target = $region8
    $region5: #{dense2hidden_tiny_forward.2} parent=1 // loop_body
      %s21 = ssub.s32 %s16, 1
      %s22 = ssub.s32 %s16, 2
      %s29 = sadd.s32 1, %s24
      %p30 = scmp.ge.s32.totalorder %s29, 5
      %s31 = scalar_select %p30, 0, %s29
      %s32 = sadd.s32 1, %s23
      %s33 = scalar_select %p30, %s32, %s23
      %p34 = scmp.ge.s32.totalorder %s33, 2
      %s35 = scalar_select %p34, 0, %s33
      %s36 = ssub.s32 %s24, %s31
      %p37 = scmp.eq.s32.totalorder %s36, 0
      %s39 = sadd.s32 %s38, 1
      %s40 = scalar_select %p37, %s38, %s39
      %p43 = pneg %p37
      %p44 = scmp.eq.s32.totalorder %s16, 9
      %p45 = por %p43, %p44
      %p46 = scmp.ne.s32.totalorder %s38, %s41
      %p47 = scmp.eq.s32.totalorder %s16, 0
      %p48 = por %p46, %p47
      %p49 = scmp.ne.s32.totalorder %s38, %s41
      %p50 = scmp.eq.s32.totalorder %s21, 9
      %p51 = por %p49, %p50
      %p52 = scmp.ne.s32.totalorder %s41, %s42
      %p53 = scmp.eq.s32.totalorder %s21, 0
      %p54 = por %p52, %p53
      %p55 = scmp.ne.s32.totalorder %s41, %s42
      %p56 = scmp.eq.s32.totalorder %s22, 9
      %p57 = por %p55, %p56
      %p59 = scmp.ne.s32.totalorder %s42, %s58
      %p60 = scmp.eq.s32.totalorder %s22, 0
      %p61 = por %p59, %p60
      %s62 = ssub.s32 %s24, %s31
      %s63 = ssub.s32 %s23, %s35
      %s64 = sor.u32 %s62, %s63
      %p65 = scmp.eq.s32.totalorder %s64, 0
      %s67 = sadd.s32 %s66, 1
      %s68 = scalar_select %p65, %s66, %s67
      %p71 = pneg %p65
      %p72 = scmp.eq.s32.totalorder %s16, 9
      %p73 = por %p71, %p72
      %p74 = scmp.ne.s32.totalorder %s66, %s69
      %p75 = scmp.eq.s32.totalorder %s16, 0
      %p76 = por %p74, %p75
      %p77 = scmp.ne.s32.totalorder %s66, %s69
      %p78 = scmp.eq.s32.totalorder %s21, 9
      %p79 = por %p77, %p78
      %p80 = scmp.ne.s32.totalorder %s69, %s70
      %p81 = scmp.eq.s32.totalorder %s21, 0
      %p82 = por %p80, %p81
      %p83 = scmp.ne.s32.totalorder %s69, %s70
      %p84 = scmp.eq.s32.totalorder %s22, 9
      %p85 = por %p83, %p84
      %p87 = scmp.ne.s32.totalorder %s70, %s86
      %p88 = scmp.eq.s32.totalorder %s22, 0
      %p89 = por %p87, %p88
      %s90 = ssub.s32 %s23, %s35
      %p91 = scmp.eq.s32.totalorder %s90, 0
      %s93 = sadd.s32 %s92, 1
      %s94 = scalar_select %p91, %s92, %s93
      %p97 = pneg %p91
      %p98 = scmp.eq.s32.totalorder %s16, 9
      %p99 = por %p97, %p98
      %p100 = scmp.ne.s32.totalorder %s92, %s95
      %p101 = scmp.eq.s32.totalorder %s16, 0
      %p102 = por %p100, %p101
      %p103 = scmp.ne.s32.totalorder %s92, %s95
      %p104 = scmp.eq.s32.totalorder %s21, 9
      %p105 = por %p103, %p104
      %p106 = scmp.ne.s32.totalorder %s95, %s96
      %p107 = scmp.eq.s32.totalorder %s21, 0
      %p108 = por %p106, %p107
      %p109 = scmp.ne.s32.totalorder %s95, %s96
      %p110 = scmp.eq.s32.totalorder %s22, 9
      %p111 = por %p109, %p110
      %p113 = scmp.ne.s32.totalorder %s96, %s112
      %p114 = scmp.eq.s32.totalorder %s22, 0
      %p115 = por %p113, %p114
      %s116 = ssub.s32 %s23, %s35
      %p117 = scmp.eq.s32.totalorder %s116, 0
      %s119 = sadd.s32 %s118, 1
      %s120 = scalar_select %p117, %s118, %s119
      %p123 = pneg %p117
      %p124 = scmp.eq.s32.totalorder %s16, 9
      %p125 = por %p123, %p124
      %p126 = scmp.ne.s32.totalorder %s118, %s121
      %p127 = scmp.eq.s32.totalorder %s16, 0
      %p128 = por %p126, %p127
      %p129 = scmp.ne.s32.totalorder %s118, %s121
      %p130 = scmp.eq.s32.totalorder %s21, 9
      %p131 = por %p129, %p130
      %p132 = scmp.ne.s32.totalorder %s121, %s122
      %p133 = scmp.eq.s32.totalorder %s21, 0
      %p134 = por %p132, %p133
      %p135 = scmp.ne.s32.totalorder %s121, %s122
      %p136 = scmp.eq.s32.totalorder %s22, 9
      %p137 = por %p135, %p136
      %p139 = scmp.ne.s32.totalorder %s122, %s138
      %p140 = scmp.eq.s32.totalorder %s22, 0
      %p141 = por %p139, %p140
      %s142 = ssub.s32 %s23, %s35
      %p143 = scmp.eq.s32.totalorder %s142, 0
      %s145 = sadd.s32 %s144, 1
      %s146 = scalar_select %p143, %s144, %s145
      %p149 = pneg %p143
      %p150 = scmp.eq.s32.totalorder %s16, 9
      %p151 = por %p149, %p150
      %p152 = scmp.ne.s32.totalorder %s144, %s147
      %p153 = scmp.eq.s32.totalorder %s16, 0
      %p154 = por %p152, %p153
      %p155 = scmp.ne.s32.totalorder %s144, %s147
      %p156 = scmp.eq.s32.totalorder %s21, 9
      %p157 = por %p155, %p156
      %p158 = scmp.ne.s32.totalorder %s147, %s148
      %p159 = scmp.eq.s32.totalorder %s21, 0
      %p160 = por %p158, %p159
      %p161 = scmp.ne.s32.totalorder %s147, %s148
      %p162 = scmp.eq.s32.totalorder %s22, 9
      %p163 = por %p161, %p162
      %p165 = scmp.ne.s32.totalorder %s148, %s164
      %p166 = scmp.eq.s32.totalorder %s22, 0
      %p167 = por %p165, %p166
      %p168 = scmp.le.s32.totalorder 1, %s16
      %p169 = scmp.lt.s32.totalorder %s16, 11
      %p170 = pnand %p168, %p169
      %p171 = pneg %p170
      // Predicated region
      $region9: #{dense2hidden_tiny_forward.2} parent=5 // pred_check
        _
      $region10: #{dense2hidden_tiny_forward.2} parent=5 // pred_check_branch
        %173 = sbr.rel (%p170) target = $region12
      $region11: #{dense2hidden_tiny_forward.2} parent=5 // pred_region
        %s174 = ssub.s32 %s16, 1
      $region12: #{dense2hidden_tiny_forward.2} parent=5 // pred_fallthru
        _
      %p175 = scmp.lt.s32.totalorder %s16, 10
      // Predicated region
      $region13: #{dense2hidden_tiny_forward.2} parent=5 // pred_check
        %p176 = pneg %p175
      $region14: #{dense2hidden_tiny_forward.2} parent=5 // pred_check_branch
        %178 = sbr.rel (%p176) target = $region16
      $region15: #{dense2hidden_tiny_forward.2} parent=5 // pred_region
        // Predicated region
        $region17: #{dense2hidden_tiny_forward.2} parent=15 // pred_check
          %p179 = pneg %p48
        $region18: #{dense2hidden_tiny_forward.2} parent=15 // pred_check_branch
          %181 = sbr.rel (%p179) target = $region20
        $region19: #{dense2hidden_tiny_forward.2} parent=15 // pred_region
          %s182 = smul.u32 47, %s24
          %p183 = scmp.lt.s32.totalorder %s182, 234
          %s184 = scalar_select %p183, %s182, 234
          %s185 = smul.addr %s184, 4
          %s186 = scalar_lea.vmem %s0, %s185
          %s187 = smul.u32 47, %s24
        $region20: #{dense2hidden_tiny_forward.2} parent=15 // pred_fallthru
          _
        // Predicated region
        $region21: #{dense2hidden_tiny_forward.2} parent=15 // pred_check
          %p188 = pneg %p76
        $region22: #{dense2hidden_tiny_forward.2} parent=15 // pred_check_branch
          %190 = sbr.rel (%p188) target = $region24
        $region23: #{dense2hidden_tiny_forward.2} parent=15 // pred_region
          %s191 = sand.u32 %s66, 1
          %s192 = scalar_lea.sflag [#allocation4], %s191
          %s193 = sand.u32 %s66, 1
          %s194 = smul.addr %s193, 3008
          %s195 = scalar_lea.vmem [#allocation3], %s194
          %s196 = smul.u32 188, %s24
          %s197 = smul.u32 2, %s23
          %s199 = ssub.s32 48128, 48128
          %200 = vsyncadd %s192, %s199
          %s201 = smul.addr %s196, 4
          %s202 = sadd.s32 %s197, %s201
          %s203 = smul.addr %s202, 128
          %s204 = scalar_lea.hbm %s1, %s203
          %s205 = sshll.u32 %s195, 4
          %s206 = int_to_ptr.vmem [resolvable:$true] %s205
          %211 = dma.hbm_to_vmem [thread:$0]  %s204, 48128, %s206, %s192, 512, 256, 16
        $region24: #{dense2hidden_tiny_forward.2} parent=15 // pred_fallthru
          _
        // Predicated region
        $region25: #{dense2hidden_tiny_forward.2} parent=15 // pred_check
          %p212 = pneg %p102
        $region26: #{dense2hidden_tiny_forward.2} parent=15 // pred_check_branch
          %214 = sbr.rel (%p212) target = $region28
        $region27: #{dense2hidden_tiny_forward.2} parent=15 // pred_region
          %s215 = sand.u32 %s16, 1
          %s216 = scalar_lea.sflag [#allocation6], %s215
          %s217 = sand.u32 %s92, 1
          %s218 = smul.addr %s217, 2
          %s219 = scalar_lea.vmem [#allocation5], %s218
          %s220 = smul.u32 2, %s23
          %s222 = ssub.s32 32, 32
          %223 = vsyncadd %s216, %s222
          %s224 = smul.addr %s220, 16
          %s225 = scalar_lea.hbm %s2, %s224
          %s227 = sshll.u32 %s219, 4
          %s228 = int_to_ptr.vmem [resolvable:$true] %s227
          %230 = dma.hbm_to_vmem [thread:$0]  %s225, 32, %s228, %s216
        $region28: #{dense2hidden_tiny_forward.2} parent=15 // pred_fallthru
          _
        // Predicated region
        $region29: #{dense2hidden_tiny_forward.2} parent=15 // pred_check
          %p231 = pneg %p128
        $region30: #{dense2hidden_tiny_forward.2} parent=15 // pred_check_branch
          %233 = sbr.rel (%p231) target = $region32
        $region31: #{dense2hidden_tiny_forward.2} parent=15 // pred_region
          %s234 = sand.u32 %s16, 1
          %s235 = scalar_lea.sflag [#allocation6], %s234
          %s236 = sand.u32 %s118, 1
          %s237 = smul.addr %s236, 2
          %s238 = scalar_lea.vmem [#allocation7], %s237
          %s239 = smul.u32 2, %s23
          %s241 = ssub.s32 32, 32
          %242 = vsyncadd %s235, %s241
          %s243 = smul.addr %s239, 16
          %s244 = scalar_lea.hbm %s3, %s243
          %s246 = sshll.u32 %s238, 4
          %s247 = int_to_ptr.vmem [resolvable:$true] %s246
          %249 = dma.hbm_to_vmem [thread:$0]  %s244, 32, %s247, %s235
        $region32: #{dense2hidden_tiny_forward.2} parent=15 // pred_fallthru
          _
      $region16: #{dense2hidden_tiny_forward.2} parent=5 // pred_fallthru
        _
      %p250 = scmp.le.s32.totalorder 1, %s16
      %p251 = scmp.lt.s32.totalorder %s16, 11
      %p252 = pnand %p250, %p251
      %p253 = pneg %p252
      // Predicated region
      $region33: #{dense2hidden_tiny_forward.2} parent=5 // pred_check
        _
      $region34: #{dense2hidden_tiny_forward.2} parent=5 // pred_check_branch
        %255 = sbr.rel (%p252) target = $region36
      $region35: #{dense2hidden_tiny_forward.2} parent=5 // pred_region
        %s256 = ssub.s32 %s16, 1
        %s257 = sand.u32 %s69, 1
        %s258 = scalar_lea.sflag [#allocation4], %s257
        %s259 = sand.u32 %s69, 1
        %s260 = smul.addr %s259, 3008
        %s261 = scalar_lea.vmem [#allocation3], %s260
        // Predicated region
        $region37: #{dense2hidden_tiny_forward.2} parent=35 // pred_check
          %p262 = pneg %p82
        $region38: #{dense2hidden_tiny_forward.2} parent=35 // pred_check_branch
          %264 = sbr.rel (%p262) target = $region40
        $region39: #{dense2hidden_tiny_forward.2} parent=35 // pred_region
          %265 = dma.done %s258, 48128
        $region40: #{dense2hidden_tiny_forward.2} parent=35 // pred_fallthru
          _
        %s266 = sand.u32 %s21, 1
        %s267 = scalar_lea.sflag [#allocation6], %s266
        %s268 = sand.u32 %s95, 1
        %s269 = smul.addr %s268, 2
        %s270 = scalar_lea.vmem [#allocation5], %s269
        // Predicated region
        $region41: #{dense2hidden_tiny_forward.2} parent=35 // pred_check
          %p271 = pneg %p108
        $region42: #{dense2hidden_tiny_forward.2} parent=35 // pred_check_branch
          %273 = sbr.rel (%p271) target = $region44
        $region43: #{dense2hidden_tiny_forward.2} parent=35 // pred_region
          %274 = dma.done %s267, 32
        $region44: #{dense2hidden_tiny_forward.2} parent=35 // pred_fallthru
          _
        %s275 = sand.u32 %s21, 1
        %s276 = scalar_lea.sflag [#allocation6], %s275
        %s277 = sand.u32 %s121, 1
        %s278 = smul.addr %s277, 2
        %s279 = scalar_lea.vmem [#allocation7], %s278
        // Predicated region
        $region45: #{dense2hidden_tiny_forward.2} parent=35 // pred_check
          %p280 = pneg %p134
        $region46: #{dense2hidden_tiny_forward.2} parent=35 // pred_check_branch
          %282 = sbr.rel (%p280) target = $region48
        $region47: #{dense2hidden_tiny_forward.2} parent=35 // pred_region
          %283 = dma.done %s276, 32
        $region48: #{dense2hidden_tiny_forward.2} parent=35 // pred_fallthru
          _
        %s284 = smul.u32 47, %s26
        %p285 = scmp.lt.s32.totalorder %s284, 234
        %s286 = scalar_select %p285, %s284, 234
        %s287 = smul.addr %s286, 4
        %s288 = scalar_lea.vmem %s0, %s287
        %p289 = pneg %p54
        %p290 = pneg %p51
        %s291 = sand.u32 %s69, 1
        %s292 = scalar_lea.sflag [#allocation4], %s291
        %s293 = sand.u32 %s69, 1
        %s294 = smul.addr %s293, 3008
        %s295 = scalar_lea.vmem [#allocation3], %s294
        %p296 = pneg %p82
        %p297 = pneg %p79
        %s298 = sand.u32 %s21, 1
        %s299 = scalar_lea.sflag [#allocation6], %s298
        %s300 = sand.u32 %s95, 1
        %s301 = smul.addr %s300, 2
        %s302 = scalar_lea.vmem [#allocation5], %s301
        %p303 = pneg %p108
        %p304 = pneg %p105
        %s305 = sand.u32 %s21, 1
        %s306 = scalar_lea.sflag [#allocation6], %s305
        %s307 = sand.u32 %s121, 1
        %s308 = smul.addr %s307, 2
        %s309 = scalar_lea.vmem [#allocation7], %s308
        %p310 = pneg %p134
        %p311 = pneg %p131
        %p312 = pneg %p160
        %p313 = pneg %p157
        %s314 = smul.u32 2, %s25
        %p315 = scmp.lt.s32.totalorder %s314, 3
        %s316 = scalar_select %p315, %s314, 3
        %s317 = smul.addr %s316, 8
        %s318 = scalar_lea.vmem %s4, %s317
        %s319 = smul.u32 47, %s26
        %p320 = scmp.lt.s32.totalorder %s319, 234
        %s321 = scalar_select %p320, %s319, 234
        %s322 = smul.addr %s321, 4
        %s323 = scalar_lea.vmem %s0, %s322
        %s324 = smul.u32 47, %s26
        %s325 = smul.u32 188, %s26
        %s326 = smul.u32 2, %s25
        %s327 = smul.u32 2, %s25
        %s328 = smul.u32 2, %s25
        %s329 = smul.u32 2, %s25
        %p330 = scmp.lt.s32.totalorder %s329, 3
        %s331 = scalar_select %p330, %s329, 3
        %s332 = smul.addr %s331, 8
        %s333 = scalar_lea.vmem %s4, %s332
        %s334 = smul.u32 2, %s25
        %p336 = scmp.eq.s32.totalorder %s26, 0
        // Predicated region
        $region49: #{dense2hidden_tiny_forward.2} parent=35 // pred_check
          %p337 = pneg %p336
        $region50: #{dense2hidden_tiny_forward.2} parent=35 // pred_check_branch
          %339 = sbr.rel (%p337) target = $region52
        $region51: #{dense2hidden_tiny_forward.2} parent=35 // pred_region
          %340 = vst [vmem:[#allocation2] sm:$0xff] 0.0
          %341 = vst [vmem:[#allocation2 + $0x8] sm:$0xff] 0.0
        $region52: #{dense2hidden_tiny_forward.2} parent=35 // pred_fallthru
          _
        %v342 = vld [vmem:[%s261] sm:$0xff]
        %v343 = vld [vmem:[%s261 + $0x8] sm:$0xff]
        %v344 = vld [vmem:[%s261 + $0x10] sm:$0xff]
        %v345 = vld [vmem:[%s261 + $0x18] sm:$0xff]
        %v346 = vld [vmem:[%s261 + $0x20] sm:$0xff]
        %v347 = vld [vmem:[%s261 + $0x28] sm:$0xff]
        %v348 = vld [vmem:[%s261 + $0x30] sm:$0xff]
        %v349 = vld [vmem:[%s261 + $0x38] sm:$0xff]
        %v350 = vld [vmem:[%s261 + $0x40] sm:$0xff]
        %v351 = vld [vmem:[%s261 + $0x48] sm:$0xff]
        %v352 = vld [vmem:[%s261 + $0x50] sm:$0xff]
        %v353 = vld [vmem:[%s261 + $0x58] sm:$0xff]
        %v354 = vld [vmem:[%s261 + $0x60] sm:$0xff]
        %v355 = vld [vmem:[%s261 + $0x68] sm:$0xff]
        %v356 = vld [vmem:[%s261 + $0x70] sm:$0xff]
        %v357 = vld [vmem:[%s261 + $0x78] sm:$0xff]
        %v358 = vld [vmem:[%s261 + $0x80] sm:$0xff]
        %v359 = vld [vmem:[%s261 + $0x88] sm:$0xff]
        %v360 = vld [vmem:[%s261 + $0x90] sm:$0xff]
        %v361 = vld [vmem:[%s261 + $0x98] sm:$0xff]
        %v362 = vld [vmem:[%s261 + $0xa0] sm:$0xff]
        %v363 = vld [vmem:[%s261 + $0xa8] sm:$0xff]
        %v364 = vld [vmem:[%s261 + $0xb0] sm:$0xff]
        %v365 = vld [vmem:[%s261 + $0xb8] sm:$0xff]
        %v366 = vld [vmem:[%s261 + $0xc0] sm:$0xff]
        %v367 = vld [vmem:[%s261 + $0xc8] sm:$0xff]
        %v368 = vld [vmem:[%s261 + $0xd0] sm:$0xff]
        %v369 = vld [vmem:[%s261 + $0xd8] sm:$0xff]
        %v370 = vld [vmem:[%s261 + $0xe0] sm:$0xff]
        %v371 = vld [vmem:[%s261 + $0xe8] sm:$0xff]
        %v372 = vld [vmem:[%s261 + $0xf0] sm:$0xff]
        %v373 = vld [vmem:[%s261 + $0xf8] sm:$0xff]
        %v374 = vld [vmem:[%s261 + $0x100] sm:$0xff]
        %v375 = vld [vmem:[%s261 + $0x108] sm:$0xff]
        %v376 = vld [vmem:[%s261 + $0x110] sm:$0xff]
        %v377 = vld [vmem:[%s261 + $0x118] sm:$0xff]
        %v378 = vld [vmem:[%s261 + $0x120] sm:$0xff]
        %v379 = vld [vmem:[%s261 + $0x128] sm:$0xff]
        %v380 = vld [vmem:[%s261 + $0x130] sm:$0xff]
        %v381 = vld [vmem:[%s261 + $0x138] sm:$0xff]
        %v382 = vld [vmem:[%s261 + $0x140] sm:$0xff]
        %v383 = vld [vmem:[%s261 + $0x148] sm:$0xff]
        %v384 = vld [vmem:[%s261 + $0x150] sm:$0xff]
        %v385 = vld [vmem:[%s261 + $0x158] sm:$0xff]
        %v386 = vld [vmem:[%s261 + $0x160] sm:$0xff]
        %v387 = vld [vmem:[%s261 + $0x168] sm:$0xff]
        %v388 = vld [vmem:[%s261 + $0x170] sm:$0xff]
        %v389 = vld [vmem:[%s261 + $0x178] sm:$0xff]
        %v390 = vld [vmem:[%s261 + $0x180] sm:$0xff]
        %v391 = vld [vmem:[%s261 + $0x188] sm:$0xff]
        %v392 = vld [vmem:[%s261 + $0x190] sm:$0xff]
        %v393 = vld [vmem:[%s261 + $0x198] sm:$0xff]
        %v394 = vld [vmem:[%s261 + $0x1a0] sm:$0xff]
        %v395 = vld [vmem:[%s261 + $0x1a8] sm:$0xff]
        %v396 = vld [vmem:[%s261 + $0x1b0] sm:$0xff]
        %v397 = vld [vmem:[%s261 + $0x1b8] sm:$0xff]
        %v398 = vld [vmem:[%s261 + $0x1c0] sm:$0xff]
        %v399 = vld [vmem:[%s261 + $0x1c8] sm:$0xff]
        %v400 = vld [vmem:[%s261 + $0x1d0] sm:$0xff]
        %v401 = vld [vmem:[%s261 + $0x1d8] sm:$0xff]
        %v402 = vld [vmem:[%s261 + $0x1e0] sm:$0xff]
        %v403 = vld [vmem:[%s261 + $0x1e8] sm:$0xff]
        %v404 = vld [vmem:[%s261 + $0x1f0] sm:$0xff]
        %v405 = vld [vmem:[%s261 + $0x1f8] sm:$0xff]
        %v406 = vld [vmem:[%s261 + $0x200] sm:$0xff]
        %v407 = vld [vmem:[%s261 + $0x208] sm:$0xff]
        %v408 = vld [vmem:[%s261 + $0x210] sm:$0xff]
        %v409 = vld [vmem:[%s261 + $0x218] sm:$0xff]
        %v410 = vld [vmem:[%s261 + $0x220] sm:$0xff]
        %v411 = vld [vmem:[%s261 + $0x228] sm:$0xff]
        %v412 = vld [vmem:[%s261 + $0x230] sm:$0xff]
        %v413 = vld [vmem:[%s261 + $0x238] sm:$0xff]
        %v414 = vld [vmem:[%s261 + $0x240] sm:$0xff]
        %v415 = vld [vmem:[%s261 + $0x248] sm:$0xff]
        %v416 = vld [vmem:[%s261 + $0x250] sm:$0xff]
        %v417 = vld [vmem:[%s261 + $0x258] sm:$0xff]
        %v418 = vld [vmem:[%s261 + $0x260] sm:$0xff]
        %v419 = vld [vmem:[%s261 + $0x268] sm:$0xff]
        %v420 = vld [vmem:[%s261 + $0x270] sm:$0xff]
        %v421 = vld [vmem:[%s261 + $0x278] sm:$0xff]
        %v422 = vld [vmem:[%s261 + $0x280] sm:$0xff]
        %v423 = vld [vmem:[%s261 + $0x288] sm:$0xff]
        %v424 = vld [vmem:[%s261 + $0x290] sm:$0xff]
        %v425 = vld [vmem:[%s261 + $0x298] sm:$0xff]
        %v426 = vld [vmem:[%s261 + $0x2a0] sm:$0xff]
        %v427 = vld [vmem:[%s261 + $0x2a8] sm:$0xff]
        %v428 = vld [vmem:[%s261 + $0x2b0] sm:$0xff]
        %v429 = vld [vmem:[%s261 + $0x2b8] sm:$0xff]
        %v430 = vld [vmem:[%s261 + $0x2c0] sm:$0xff]
        %v431 = vld [vmem:[%s261 + $0x2c8] sm:$0xff]
        %v432 = vld [vmem:[%s261 + $0x2d0] sm:$0xff]
        %v433 = vld [vmem:[%s261 + $0x2d8] sm:$0xff]
        %v434 = vld [vmem:[%s261 + $0x2e0] sm:$0xff]
        %v435 = vld [vmem:[%s261 + $0x2e8] sm:$0xff]
        %v436 = vld [vmem:[%s261 + $0x2f0] sm:$0xff]
        %v437 = vld [vmem:[%s261 + $0x2f8] sm:$0xff]
        %v438 = vld [vmem:[%s261 + $0x300] sm:$0xff]
        %v439 = vld [vmem:[%s261 + $0x308] sm:$0xff]
        %v440 = vld [vmem:[%s261 + $0x310] sm:$0xff]
        %v441 = vld [vmem:[%s261 + $0x318] sm:$0xff]
        %v442 = vld [vmem:[%s261 + $0x320] sm:$0xff]
        %v443 = vld [vmem:[%s261 + $0x328] sm:$0xff]
        %v444 = vld [vmem:[%s261 + $0x330] sm:$0xff]
        %v445 = vld [vmem:[%s261 + $0x338] sm:$0xff]
        %v446 = vld [vmem:[%s261 + $0x340] sm:$0xff]
        %v447 = vld [vmem:[%s261 + $0x348] sm:$0xff]
        %v448 = vld [vmem:[%s261 + $0x350] sm:$0xff]
        %v449 = vld [vmem:[%s261 + $0x358] sm:$0xff]
        %v450 = vld [vmem:[%s261 + $0x360] sm:$0xff]
        %v451 = vld [vmem:[%s261 + $0x368] sm:$0xff]
        %v452 = vld [vmem:[%s261 + $0x370] sm:$0xff]
        %v453 = vld [vmem:[%s261 + $0x378] sm:$0xff]
        %v454 = vld [vmem:[%s261 + $0x380] sm:$0xff]
        %v455 = vld [vmem:[%s261 + $0x388] sm:$0xff]
        %v456 = vld [vmem:[%s261 + $0x390] sm:$0xff]
        %v457 = vld [vmem:[%s261 + $0x398] sm:$0xff]
        %v458 = vld [vmem:[%s261 + $0x3a0] sm:$0xff]
        %v459 = vld [vmem:[%s261 + $0x3a8] sm:$0xff]
        %v460 = vld [vmem:[%s261 + $0x3b0] sm:$0xff]
        %v461 = vld [vmem:[%s261 + $0x3b8] sm:$0xff]
        %v462 = vld [vmem:[%s261 + $0x3c0] sm:$0xff]
        %v463 = vld [vmem:[%s261 + $0x3c8] sm:$0xff]
        %v464 = vld [vmem:[%s261 + $0x3d0] sm:$0xff]
        %v465 = vld [vmem:[%s261 + $0x3d8] sm:$0xff]
        %v466 = vld [vmem:[%s261 + $0x3e0] sm:$0xff]
        %v467 = vld [vmem:[%s261 + $0x3e8] sm:$0xff]
        %v468 = vld [vmem:[%s261 + $0x3f0] sm:$0xff]
        %v469 = vld [vmem:[%s261 + $0x3f8] sm:$0xff]
        %v470 = vld [vmem:[%s261 + $0x400] sm:$0xff]
        %v471 = vld [vmem:[%s261 + $0x408] sm:$0xff]
        %v472 = vld [vmem:[%s261 + $0x410] sm:$0xff]
        %v473 = vld [vmem:[%s261 + $0x418] sm:$0xff]
        %v474 = vld [vmem:[%s261 + $0x420] sm:$0xff]
        %v475 = vld [vmem:[%s261 + $0x428] sm:$0xff]
        %v476 = vld [vmem:[%s261 + $0x430] sm:$0xff]
        %v477 = vld [vmem:[%s261 + $0x438] sm:$0xff]
        %v478 = vld [vmem:[%s261 + $0x440] sm:$0xff]
        %v479 = vld [vmem:[%s261 + $0x448] sm:$0xff]
        %v480 = vld [vmem:[%s261 + $0x450] sm:$0xff]
        %v481 = vld [vmem:[%s261 + $0x458] sm:$0xff]
        %v482 = vld [vmem:[%s261 + $0x460] sm:$0xff]
        %v483 = vld [vmem:[%s261 + $0x468] sm:$0xff]
        %v484 = vld [vmem:[%s261 + $0x470] sm:$0xff]
        %v485 = vld [vmem:[%s261 + $0x478] sm:$0xff]
        %v486 = vld [vmem:[%s261 + $0x480] sm:$0xff]
        %v487 = vld [vmem:[%s261 + $0x488] sm:$0xff]
        %v488 = vld [vmem:[%s261 + $0x490] sm:$0xff]
        %v489 = vld [vmem:[%s261 + $0x498] sm:$0xff]
        %v490 = vld [vmem:[%s261 + $0x4a0] sm:$0xff]
        %v491 = vld [vmem:[%s261 + $0x4a8] sm:$0xff]
        %v492 = vld [vmem:[%s261 + $0x4b0] sm:$0xff]
        %v493 = vld [vmem:[%s261 + $0x4b8] sm:$0xff]
        %v494 = vld [vmem:[%s261 + $0x4c0] sm:$0xff]
        %v495 = vld [vmem:[%s261 + $0x4c8] sm:$0xff]
        %v496 = vld [vmem:[%s261 + $0x4d0] sm:$0xff]
        %v497 = vld [vmem:[%s261 + $0x4d8] sm:$0xff]
        %v498 = vld [vmem:[%s261 + $0x4e0] sm:$0xff]
        %v499 = vld [vmem:[%s261 + $0x4e8] sm:$0xff]
        %v500 = vld [vmem:[%s261 + $0x4f0] sm:$0xff]
        %v501 = vld [vmem:[%s261 + $0x4f8] sm:$0xff]
        %v502 = vld [vmem:[%s261 + $0x500] sm:$0xff]
        %v503 = vld [vmem:[%s261 + $0x508] sm:$0xff]
        %v504 = vld [vmem:[%s261 + $0x510] sm:$0xff]
        %v505 = vld [vmem:[%s261 + $0x518] sm:$0xff]
        %v506 = vld [vmem:[%s261 + $0x520] sm:$0xff]
        %v507 = vld [vmem:[%s261 + $0x528] sm:$0xff]
        %v508 = vld [vmem:[%s261 + $0x530] sm:$0xff]
        %v509 = vld [vmem:[%s261 + $0x538] sm:$0xff]
        %v510 = vld [vmem:[%s261 + $0x540] sm:$0xff]
        %v511 = vld [vmem:[%s261 + $0x548] sm:$0xff]
        %v512 = vld [vmem:[%s261 + $0x550] sm:$0xff]
        %v513 = vld [vmem:[%s261 + $0x558] sm:$0xff]
        %v514 = vld [vmem:[%s261 + $0x560] sm:$0xff]
        %v515 = vld [vmem:[%s261 + $0x568] sm:$0xff]
        %v516 = vld [vmem:[%s261 + $0x570] sm:$0xff]
        %v517 = vld [vmem:[%s261 + $0x578] sm:$0xff]
        %v518 = vld [vmem:[%s261 + $0x580] sm:$0xff]
        %v519 = vld [vmem:[%s261 + $0x588] sm:$0xff]
        %v520 = vld [vmem:[%s261 + $0x590] sm:$0xff]
        %v521 = vld [vmem:[%s261 + $0x598] sm:$0xff]
        %v522 = vld [vmem:[%s261 + $0x5a0] sm:$0xff]
        %v523 = vld [vmem:[%s261 + $0x5a8] sm:$0xff]
        %v524 = vld [vmem:[%s261 + $0x5b0] sm:$0xff]
        %v525 = vld [vmem:[%s261 + $0x5b8] sm:$0xff]
        %v526 = vld [vmem:[%s261 + $0x5c0] sm:$0xff]
        %v527 = vld [vmem:[%s261 + $0x5c8] sm:$0xff]
        %v528 = vld [vmem:[%s261 + $0x5d0] sm:$0xff]
        %v529 = vld [vmem:[%s261 + $0x5d8] sm:$0xff]
        %v530 = vld [vmem:[%s261 + $0x5e0] sm:$0xff]
        %v531 = vld [vmem:[%s261 + $0x5e8] sm:$0xff]
        %v532 = vld [vmem:[%s261 + $0x5f0] sm:$0xff]
        %v533 = vld [vmem:[%s261 + $0x5f8] sm:$0xff]
        %v534 = vld [vmem:[%s261 + $0x600] sm:$0xff]
        %v535 = vld [vmem:[%s261 + $0x608] sm:$0xff]
        %v536 = vld [vmem:[%s261 + $0x610] sm:$0xff]
        %v537 = vld [vmem:[%s261 + $0x618] sm:$0xff]
        %v538 = vld [vmem:[%s261 + $0x620] sm:$0xff]
        %v539 = vld [vmem:[%s261 + $0x628] sm:$0xff]
        %v540 = vld [vmem:[%s261 + $0x630] sm:$0xff]
        %v541 = vld [vmem:[%s261 + $0x638] sm:$0xff]
        %v542 = vld [vmem:[%s261 + $0x640] sm:$0xff]
        %v543 = vld [vmem:[%s261 + $0x648] sm:$0xff]
        %v544 = vld [vmem:[%s261 + $0x650] sm:$0xff]
        %v545 = vld [vmem:[%s261 + $0x658] sm:$0xff]
        %v546 = vld [vmem:[%s261 + $0x660] sm:$0xff]
        %v547 = vld [vmem:[%s261 + $0x668] sm:$0xff]
        %v548 = vld [vmem:[%s261 + $0x670] sm:$0xff]
        %v549 = vld [vmem:[%s261 + $0x678] sm:$0xff]
        %v550 = vld [vmem:[%s261 + $0x680] sm:$0xff]
        %v551 = vld [vmem:[%s261 + $0x688] sm:$0xff]
        %v552 = vld [vmem:[%s261 + $0x690] sm:$0xff]
        %v553 = vld [vmem:[%s261 + $0x698] sm:$0xff]
        %v554 = vld [vmem:[%s261 + $0x6a0] sm:$0xff]
        %v555 = vld [vmem:[%s261 + $0x6a8] sm:$0xff]
        %v556 = vld [vmem:[%s261 + $0x6b0] sm:$0xff]
        %v557 = vld [vmem:[%s261 + $0x6b8] sm:$0xff]
        %v558 = vld [vmem:[%s261 + $0x6c0] sm:$0xff]
        %v559 = vld [vmem:[%s261 + $0x6c8] sm:$0xff]
        %v560 = vld [vmem:[%s261 + $0x6d0] sm:$0xff]
        %v561 = vld [vmem:[%s261 + $0x6d8] sm:$0xff]
        %v562 = vld [vmem:[%s261 + $0x6e0] sm:$0xff]
        %v563 = vld [vmem:[%s261 + $0x6e8] sm:$0xff]
        %v564 = vld [vmem:[%s261 + $0x6f0] sm:$0xff]
        %v565 = vld [vmem:[%s261 + $0x6f8] sm:$0xff]
        %v566 = vld [vmem:[%s261 + $0x700] sm:$0xff]
        %v567 = vld [vmem:[%s261 + $0x708] sm:$0xff]
        %v568 = vld [vmem:[%s261 + $0x710] sm:$0xff]
        %v569 = vld [vmem:[%s261 + $0x718] sm:$0xff]
        %v570 = vld [vmem:[%s261 + $0x720] sm:$0xff]
        %v571 = vld [vmem:[%s261 + $0x728] sm:$0xff]
        %v572 = vld [vmem:[%s261 + $0x730] sm:$0xff]
        %v573 = vld [vmem:[%s261 + $0x738] sm:$0xff]
        %v574 = vld [vmem:[%s261 + $0x740] sm:$0xff]
        %v575 = vld [vmem:[%s261 + $0x748] sm:$0xff]
        %v576 = vld [vmem:[%s261 + $0x750] sm:$0xff]
        %v577 = vld [vmem:[%s261 + $0x758] sm:$0xff]
        %v578 = vld [vmem:[%s261 + $0x760] sm:$0xff]
        %v579 = vld [vmem:[%s261 + $0x768] sm:$0xff]
        %v580 = vld [vmem:[%s261 + $0x770] sm:$0xff]
        %v581 = vld [vmem:[%s261 + $0x778] sm:$0xff]
        %v582 = vld [vmem:[%s261 + $0x780] sm:$0xff]
        %v583 = vld [vmem:[%s261 + $0x788] sm:$0xff]
        %v584 = vld [vmem:[%s261 + $0x790] sm:$0xff]
        %v585 = vld [vmem:[%s261 + $0x798] sm:$0xff]
        %v586 = vld [vmem:[%s261 + $0x7a0] sm:$0xff]
        %v587 = vld [vmem:[%s261 + $0x7a8] sm:$0xff]
        %v588 = vld [vmem:[%s261 + $0x7b0] sm:$0xff]
        %v589 = vld [vmem:[%s261 + $0x7b8] sm:$0xff]
        %v590 = vld [vmem:[%s261 + $0x7c0] sm:$0xff]
        %v591 = vld [vmem:[%s261 + $0x7c8] sm:$0xff]
        %v592 = vld [vmem:[%s261 + $0x7d0] sm:$0xff]
        %v593 = vld [vmem:[%s261 + $0x7d8] sm:$0xff]
        %v594 = vld [vmem:[%s261 + $0x7e0] sm:$0xff]
        %v595 = vld [vmem:[%s261 + $0x7e8] sm:$0xff]
        %v596 = vld [vmem:[%s261 + $0x7f0] sm:$0xff]
        %v597 = vld [vmem:[%s261 + $0x7f8] sm:$0xff]
        %v598 = vld [vmem:[%s261 + $0x800] sm:$0xff]
        %v599 = vld [vmem:[%s261 + $0x808] sm:$0xff]
        %v600 = vld [vmem:[%s261 + $0x810] sm:$0xff]
        %v601 = vld [vmem:[%s261 + $0x818] sm:$0xff]
        %v602 = vld [vmem:[%s261 + $0x820] sm:$0xff]
        %v603 = vld [vmem:[%s261 + $0x828] sm:$0xff]
        %v604 = vld [vmem:[%s261 + $0x830] sm:$0xff]
        %v605 = vld [vmem:[%s261 + $0x838] sm:$0xff]
        %v606 = vld [vmem:[%s261 + $0x840] sm:$0xff]
        %v607 = vld [vmem:[%s261 + $0x848] sm:$0xff]
        %v608 = vld [vmem:[%s261 + $0x850] sm:$0xff]
        %v609 = vld [vmem:[%s261 + $0x858] sm:$0xff]
        %v610 = vld [vmem:[%s261 + $0x860] sm:$0xff]
        %v611 = vld [vmem:[%s261 + $0x868] sm:$0xff]
        %v612 = vld [vmem:[%s261 + $0x870] sm:$0xff]
        %v613 = vld [vmem:[%s261 + $0x878] sm:$0xff]
        %v614 = vld [vmem:[%s261 + $0x880] sm:$0xff]
        %v615 = vld [vmem:[%s261 + $0x888] sm:$0xff]
        %v616 = vld [vmem:[%s261 + $0x890] sm:$0xff]
        %v617 = vld [vmem:[%s261 + $0x898] sm:$0xff]
        %v618 = vld [vmem:[%s261 + $0x8a0] sm:$0xff]
        %v619 = vld [vmem:[%s261 + $0x8a8] sm:$0xff]
        %v620 = vld [vmem:[%s261 + $0x8b0] sm:$0xff]
        %v621 = vld [vmem:[%s261 + $0x8b8] sm:$0xff]
        %v622 = vld [vmem:[%s261 + $0x8c0] sm:$0xff]
        %v623 = vld [vmem:[%s261 + $0x8c8] sm:$0xff]
        %v624 = vld [vmem:[%s261 + $0x8d0] sm:$0xff]
        %v625 = vld [vmem:[%s261 + $0x8d8] sm:$0xff]
        %v626 = vld [vmem:[%s261 + $0x8e0] sm:$0xff]
        %v627 = vld [vmem:[%s261 + $0x8e8] sm:$0xff]
        %v628 = vld [vmem:[%s261 + $0x8f0] sm:$0xff]
        %v629 = vld [vmem:[%s261 + $0x8f8] sm:$0xff]
        %v630 = vld [vmem:[%s261 + $0x900] sm:$0xff]
        %v631 = vld [vmem:[%s261 + $0x908] sm:$0xff]
        %v632 = vld [vmem:[%s261 + $0x910] sm:$0xff]
        %v633 = vld [vmem:[%s261 + $0x918] sm:$0xff]
        %v634 = vld [vmem:[%s261 + $0x920] sm:$0xff]
        %v635 = vld [vmem:[%s261 + $0x928] sm:$0xff]
        %v636 = vld [vmem:[%s261 + $0x930] sm:$0xff]
        %v637 = vld [vmem:[%s261 + $0x938] sm:$0xff]
        %v638 = vld [vmem:[%s261 + $0x940] sm:$0xff]
        %v639 = vld [vmem:[%s261 + $0x948] sm:$0xff]
        %v640 = vld [vmem:[%s261 + $0x950] sm:$0xff]
        %v641 = vld [vmem:[%s261 + $0x958] sm:$0xff]
        %v642 = vld [vmem:[%s261 + $0x960] sm:$0xff]
        %v643 = vld [vmem:[%s261 + $0x968] sm:$0xff]
        %v644 = vld [vmem:[%s261 + $0x970] sm:$0xff]
        %v645 = vld [vmem:[%s261 + $0x978] sm:$0xff]
        %v646 = vld [vmem:[%s261 + $0x980] sm:$0xff]
        %v647 = vld [vmem:[%s261 + $0x988] sm:$0xff]
        %v648 = vld [vmem:[%s261 + $0x990] sm:$0xff]
        %v649 = vld [vmem:[%s261 + $0x998] sm:$0xff]
        %v650 = vld [vmem:[%s261 + $0x9a0] sm:$0xff]
        %v651 = vld [vmem:[%s261 + $0x9a8] sm:$0xff]
        %v652 = vld [vmem:[%s261 + $0x9b0] sm:$0xff]
        %v653 = vld [vmem:[%s261 + $0x9b8] sm:$0xff]
        %v654 = vld [vmem:[%s261 + $0x9c0] sm:$0xff]
        %v655 = vld [vmem:[%s261 + $0x9c8] sm:$0xff]
        %v656 = vld [vmem:[%s261 + $0x9d0] sm:$0xff]
        %v657 = vld [vmem:[%s261 + $0x9d8] sm:$0xff]
        %v658 = vld [vmem:[%s261 + $0x9e0] sm:$0xff]
        %v659 = vld [vmem:[%s261 + $0x9e8] sm:$0xff]
        %v660 = vld [vmem:[%s261 + $0x9f0] sm:$0xff]
        %v661 = vld [vmem:[%s261 + $0x9f8] sm:$0xff]
        %v662 = vld [vmem:[%s261 + $0xa00] sm:$0xff]
        %v663 = vld [vmem:[%s261 + $0xa08] sm:$0xff]
        %v664 = vld [vmem:[%s261 + $0xa10] sm:$0xff]
        %v665 = vld [vmem:[%s261 + $0xa18] sm:$0xff]
        %v666 = vld [vmem:[%s261 + $0xa20] sm:$0xff]
        %v667 = vld [vmem:[%s261 + $0xa28] sm:$0xff]
        %v668 = vld [vmem:[%s261 + $0xa30] sm:$0xff]
        %v669 = vld [vmem:[%s261 + $0xa38] sm:$0xff]
        %v670 = vld [vmem:[%s261 + $0xa40] sm:$0xff]
        %v671 = vld [vmem:[%s261 + $0xa48] sm:$0xff]
        %v672 = vld [vmem:[%s261 + $0xa50] sm:$0xff]
        %v673 = vld [vmem:[%s261 + $0xa58] sm:$0xff]
        %v674 = vld [vmem:[%s261 + $0xa60] sm:$0xff]
        %v675 = vld [vmem:[%s261 + $0xa68] sm:$0xff]
        %v676 = vld [vmem:[%s261 + $0xa70] sm:$0xff]
        %v677 = vld [vmem:[%s261 + $0xa78] sm:$0xff]
        %v678 = vld [vmem:[%s261 + $0xa80] sm:$0xff]
        %v679 = vld [vmem:[%s261 + $0xa88] sm:$0xff]
        %v680 = vld [vmem:[%s261 + $0xa90] sm:$0xff]
        %v681 = vld [vmem:[%s261 + $0xa98] sm:$0xff]
        %v682 = vld [vmem:[%s261 + $0xaa0] sm:$0xff]
        %v683 = vld [vmem:[%s261 + $0xaa8] sm:$0xff]
        %v684 = vld [vmem:[%s261 + $0xab0] sm:$0xff]
        %v685 = vld [vmem:[%s261 + $0xab8] sm:$0xff]
        %v686 = vld [vmem:[%s261 + $0xac0] sm:$0xff]
        %v687 = vld [vmem:[%s261 + $0xac8] sm:$0xff]
        %v688 = vld [vmem:[%s261 + $0xad0] sm:$0xff]
        %v689 = vld [vmem:[%s261 + $0xad8] sm:$0xff]
        %v690 = vld [vmem:[%s261 + $0xae0] sm:$0xff]
        %v691 = vld [vmem:[%s261 + $0xae8] sm:$0xff]
        %v692 = vld [vmem:[%s261 + $0xaf0] sm:$0xff]
        %v693 = vld [vmem:[%s261 + $0xaf8] sm:$0xff]
        %v694 = vld [vmem:[%s261 + $0xb00] sm:$0xff]
        %v695 = vld [vmem:[%s261 + $0xb08] sm:$0xff]
        %v696 = vld [vmem:[%s261 + $0xb10] sm:$0xff]
        %v697 = vld [vmem:[%s261 + $0xb18] sm:$0xff]
        %v698 = vld [vmem:[%s261 + $0xb20] sm:$0xff]
        %v699 = vld [vmem:[%s261 + $0xb28] sm:$0xff]
        %v700 = vld [vmem:[%s261 + $0xb30] sm:$0xff]
        %v701 = vld [vmem:[%s261 + $0xb38] sm:$0xff]
        %v702 = vld [vmem:[%s261 + $0xb40] sm:$0xff]
        %v703 = vld [vmem:[%s261 + $0xb48] sm:$0xff]
        %v704 = vld [vmem:[%s261 + $0xb50] sm:$0xff]
        %v705 = vld [vmem:[%s261 + $0xb58] sm:$0xff]
        %v706 = vld [vmem:[%s261 + $0xb60] sm:$0xff]
        %v707 = vld [vmem:[%s261 + $0xb68] sm:$0xff]
        %v708 = vld [vmem:[%s261 + $0xb70] sm:$0xff]
        %v709 = vld [vmem:[%s261 + $0xb78] sm:$0xff]
        %v710 = vld [vmem:[%s261 + $0xb80] sm:$0xff]
        %v711 = vld [vmem:[%s261 + $0xb88] sm:$0xff]
        %v712 = vld [vmem:[%s261 + $0xb90] sm:$0xff]
        %v713 = vld [vmem:[%s261 + $0xb98] sm:$0xff]
        %v714 = vld [vmem:[%s261 + $0xba0] sm:$0xff]
        %v715 = vld [vmem:[%s261 + $0xba8] sm:$0xff]
        %v716 = vld [vmem:[%s261 + $0xbb0] sm:$0xff]
        %v717 = vld [vmem:[%s261 + $0xbb8] sm:$0xff]
        %v718 = vunpack.c.l.s8.bf16 %v342
        %v719 = vunpack.c.l.s8.bf16 %v343
        %v720 = vunpack.c.h.s8.bf16 %v342
        %v721 = vunpack.c.h.s8.bf16 %v343
        %v722 = vunpack.c.l.s8.bf16 %v344
        %v723 = vunpack.c.l.s8.bf16 %v345
        %v724 = vunpack.c.h.s8.bf16 %v344
        %v725 = vunpack.c.h.s8.bf16 %v345
        %v726 = vunpack.c.l.s8.bf16 %v346
        %v727 = vunpack.c.l.s8.bf16 %v347
        %v728 = vunpack.c.h.s8.bf16 %v346
        %v729 = vunpack.c.h.s8.bf16 %v347
        %v730 = vunpack.c.l.s8.bf16 %v348
        %v731 = vunpack.c.l.s8.bf16 %v349
        %v732 = vunpack.c.h.s8.bf16 %v348
        %v733 = vunpack.c.h.s8.bf16 %v349
        %v734 = vunpack.c.l.s8.bf16 %v350
        %v735 = vunpack.c.l.s8.bf16 %v351
        %v736 = vunpack.c.h.s8.bf16 %v350
        %v737 = vunpack.c.h.s8.bf16 %v351
        %v738 = vunpack.c.l.s8.bf16 %v352
        %v739 = vunpack.c.l.s8.bf16 %v353
        %v740 = vunpack.c.h.s8.bf16 %v352
        %v741 = vunpack.c.h.s8.bf16 %v353
        %v742 = vunpack.c.l.s8.bf16 %v354
        %v743 = vunpack.c.l.s8.bf16 %v355
        %v744 = vunpack.c.h.s8.bf16 %v354
        %v745 = vunpack.c.h.s8.bf16 %v355
        %v746 = vunpack.c.l.s8.bf16 %v356
        %v747 = vunpack.c.l.s8.bf16 %v357
        %v748 = vunpack.c.h.s8.bf16 %v356
        %v749 = vunpack.c.h.s8.bf16 %v357
        %v750 = vunpack.c.l.s8.bf16 %v358
        %v751 = vunpack.c.l.s8.bf16 %v359
        %v752 = vunpack.c.h.s8.bf16 %v358
        %v753 = vunpack.c.h.s8.bf16 %v359
        %v754 = vunpack.c.l.s8.bf16 %v360
        %v755 = vunpack.c.l.s8.bf16 %v361
        %v756 = vunpack.c.h.s8.bf16 %v360
        %v757 = vunpack.c.h.s8.bf16 %v361
        %v758 = vunpack.c.l.s8.bf16 %v362
        %v759 = vunpack.c.l.s8.bf16 %v363
        %v760 = vunpack.c.h.s8.bf16 %v362
        %v761 = vunpack.c.h.s8.bf16 %v363
        %v762 = vunpack.c.l.s8.bf16 %v364
        %v763 = vunpack.c.l.s8.bf16 %v365
        %v764 = vunpack.c.h.s8.bf16 %v364
        %v765 = vunpack.c.h.s8.bf16 %v365
        %v766 = vunpack.c.l.s8.bf16 %v366
        %v767 = vunpack.c.l.s8.bf16 %v367
        %v768 = vunpack.c.h.s8.bf16 %v366
        %v769 = vunpack.c.h.s8.bf16 %v367
        %v770 = vunpack.c.l.s8.bf16 %v368
        %v771 = vunpack.c.l.s8.bf16 %v369
        %v772 = vunpack.c.h.s8.bf16 %v368
        %v773 = vunpack.c.h.s8.bf16 %v369
        %v774 = vunpack.c.l.s8.bf16 %v370
        %v775 = vunpack.c.l.s8.bf16 %v371
        %v776 = vunpack.c.h.s8.bf16 %v370
        %v777 = vunpack.c.h.s8.bf16 %v371
        %v778 = vunpack.c.l.s8.bf16 %v372
        %v779 = vunpack.c.l.s8.bf16 %v373
        %v780 = vunpack.c.h.s8.bf16 %v372
        %v781 = vunpack.c.h.s8.bf16 %v373
        %v782 = vunpack.c.l.s8.bf16 %v374
        %v783 = vunpack.c.l.s8.bf16 %v375
        %v784 = vunpack.c.h.s8.bf16 %v374
        %v785 = vunpack.c.h.s8.bf16 %v375
        %v786 = vunpack.c.l.s8.bf16 %v376
        %v787 = vunpack.c.l.s8.bf16 %v377
        %v788 = vunpack.c.h.s8.bf16 %v376
        %v789 = vunpack.c.h.s8.bf16 %v377
        %v790 = vunpack.c.l.s8.bf16 %v378
        %v791 = vunpack.c.l.s8.bf16 %v379
        %v792 = vunpack.c.h.s8.bf16 %v378
        %v793 = vunpack.c.h.s8.bf16 %v379
        %v794 = vunpack.c.l.s8.bf16 %v380
        %v795 = vunpack.c.l.s8.bf16 %v381
        %v796 = vunpack.c.h.s8.bf16 %v380
        %v797 = vunpack.c.h.s8.bf16 %v381
        %v798 = vunpack.c.l.s8.bf16 %v382
        %v799 = vunpack.c.l.s8.bf16 %v383
        %v800 = vunpack.c.h.s8.bf16 %v382
        %v801 = vunpack.c.h.s8.bf16 %v383
        %v802 = vunpack.c.l.s8.bf16 %v384
        %v803 = vunpack.c.l.s8.bf16 %v385
        %v804 = vunpack.c.h.s8.bf16 %v384
        %v805 = vunpack.c.h.s8.bf16 %v385
        %v806 = vunpack.c.l.s8.bf16 %v386
        %v807 = vunpack.c.l.s8.bf16 %v387
        %v808 = vunpack.c.h.s8.bf16 %v386
        %v809 = vunpack.c.h.s8.bf16 %v387
        %v810 = vunpack.c.l.s8.bf16 %v388
        %v811 = vunpack.c.l.s8.bf16 %v389
        %v812 = vunpack.c.h.s8.bf16 %v388
        %v813 = vunpack.c.h.s8.bf16 %v389
        %v814 = vunpack.c.l.s8.bf16 %v390
        %v815 = vunpack.c.l.s8.bf16 %v391
        %v816 = vunpack.c.h.s8.bf16 %v390
        %v817 = vunpack.c.h.s8.bf16 %v391
        %v818 = vunpack.c.l.s8.bf16 %v392
        %v819 = vunpack.c.l.s8.bf16 %v393
        %v820 = vunpack.c.h.s8.bf16 %v392
        %v821 = vunpack.c.h.s8.bf16 %v393
        %v822 = vunpack.c.l.s8.bf16 %v394
        %v823 = vunpack.c.l.s8.bf16 %v395
        %v824 = vunpack.c.h.s8.bf16 %v394
        %v825 = vunpack.c.h.s8.bf16 %v395
        %v826 = vunpack.c.l.s8.bf16 %v396
        %v827 = vunpack.c.l.s8.bf16 %v397
        %v828 = vunpack.c.h.s8.bf16 %v396
        %v829 = vunpack.c.h.s8.bf16 %v397
        %v830 = vunpack.c.l.s8.bf16 %v398
        %v831 = vunpack.c.l.s8.bf16 %v399
        %v832 = vunpack.c.h.s8.bf16 %v398
        %v833 = vunpack.c.h.s8.bf16 %v399
        %v834 = vunpack.c.l.s8.bf16 %v400
        %v835 = vunpack.c.l.s8.bf16 %v401
        %v836 = vunpack.c.h.s8.bf16 %v400
        %v837 = vunpack.c.h.s8.bf16 %v401
        %v838 = vunpack.c.l.s8.bf16 %v402
        %v839 = vunpack.c.l.s8.bf16 %v403
        %v840 = vunpack.c.h.s8.bf16 %v402
        %v841 = vunpack.c.h.s8.bf16 %v403
        %v842 = vunpack.c.l.s8.bf16 %v404
        %v843 = vunpack.c.l.s8.bf16 %v405
        %v844 = vunpack.c.h.s8.bf16 %v404
        %v845 = vunpack.c.h.s8.bf16 %v405
        %v846 = vunpack.c.l.s8.bf16 %v406
        %v847 = vunpack.c.l.s8.bf16 %v407
        %v848 = vunpack.c.h.s8.bf16 %v406
        %v849 = vunpack.c.h.s8.bf16 %v407
        %v850 = vunpack.c.l.s8.bf16 %v408
        %v851 = vunpack.c.l.s8.bf16 %v409
        %v852 = vunpack.c.h.s8.bf16 %v408
        %v853 = vunpack.c.h.s8.bf16 %v409
        %v854 = vunpack.c.l.s8.bf16 %v410
        %v855 = vunpack.c.l.s8.bf16 %v411
        %v856 = vunpack.c.h.s8.bf16 %v410
        %v857 = vunpack.c.h.s8.bf16 %v411
        %v858 = vunpack.c.l.s8.bf16 %v412
        %v859 = vunpack.c.l.s8.bf16 %v413
        %v860 = vunpack.c.h.s8.bf16 %v412
        %v861 = vunpack.c.h.s8.bf16 %v413
        %v862 = vunpack.c.l.s8.bf16 %v414
        %v863 = vunpack.c.l.s8.bf16 %v415
        %v864 = vunpack.c.h.s8.bf16 %v414
        %v865 = vunpack.c.h.s8.bf16 %v415
        %v866 = vunpack.c.l.s8.bf16 %v416
        %v867 = vunpack.c.l.s8.bf16 %v417
        %v868 = vunpack.c.h.s8.bf16 %v416
        %v869 = vunpack.c.h.s8.bf16 %v417
        %v870 = vunpack.c.l.s8.bf16 %v418
        %v871 = vunpack.c.l.s8.bf16 %v419
        %v872 = vunpack.c.h.s8.bf16 %v418
        %v873 = vunpack.c.h.s8.bf16 %v419
        %v874 = vunpack.c.l.s8.bf16 %v420
        %v875 = vunpack.c.l.s8.bf16 %v421
        %v876 = vunpack.c.h.s8.bf16 %v420
        %v877 = vunpack.c.h.s8.bf16 %v421
        %v878 = vunpack.c.l.s8.bf16 %v422
        %v879 = vunpack.c.l.s8.bf16 %v423
        %v880 = vunpack.c.h.s8.bf16 %v422
        %v881 = vunpack.c.h.s8.bf16 %v423
        %v882 = vunpack.c.l.s8.bf16 %v424
        %v883 = vunpack.c.l.s8.bf16 %v425
        %v884 = vunpack.c.h.s8.bf16 %v424
        %v885 = vunpack.c.h.s8.bf16 %v425
        %v886 = vunpack.c.l.s8.bf16 %v426
        %v887 = vunpack.c.l.s8.bf16 %v427
        %v888 = vunpack.c.h.s8.bf16 %v426
        %v889 = vunpack.c.h.s8.bf16 %v427
        %v890 = vunpack.c.l.s8.bf16 %v428
        %v891 = vunpack.c.l.s8.bf16 %v429
        %v892 = vunpack.c.h.s8.bf16 %v428
        %v893 = vunpack.c.h.s8.bf16 %v429
        %v894 = vunpack.c.l.s8.bf16 %v430
        %v895 = vunpack.c.l.s8.bf16 %v431
        %v896 = vunpack.c.h.s8.bf16 %v430
        %v897 = vunpack.c.h.s8.bf16 %v431
        %v898 = vunpack.c.l.s8.bf16 %v432
        %v899 = vunpack.c.l.s8.bf16 %v433
        %v900 = vunpack.c.h.s8.bf16 %v432
        %v901 = vunpack.c.h.s8.bf16 %v433
        %v902 = vunpack.c.l.s8.bf16 %v434
        %v903 = vunpack.c.l.s8.bf16 %v435
        %v904 = vunpack.c.h.s8.bf16 %v434
        %v905 = vunpack.c.h.s8.bf16 %v435
        %v906 = vunpack.c.l.s8.bf16 %v436
        %v907 = vunpack.c.l.s8.bf16 %v437
        %v908 = vunpack.c.h.s8.bf16 %v436
        %v909 = vunpack.c.h.s8.bf16 %v437
        %v910 = vunpack.c.l.s8.bf16 %v438
        %v911 = vunpack.c.l.s8.bf16 %v439
        %v912 = vunpack.c.h.s8.bf16 %v438
        %v913 = vunpack.c.h.s8.bf16 %v439
        %v914 = vunpack.c.l.s8.bf16 %v440
        %v915 = vunpack.c.l.s8.bf16 %v441
        %v916 = vunpack.c.h.s8.bf16 %v440
        %v917 = vunpack.c.h.s8.bf16 %v441
        %v918 = vunpack.c.l.s8.bf16 %v442
        %v919 = vunpack.c.l.s8.bf16 %v443
        %v920 = vunpack.c.h.s8.bf16 %v442
        %v921 = vunpack.c.h.s8.bf16 %v443
        %v922 = vunpack.c.l.s8.bf16 %v444
        %v923 = vunpack.c.l.s8.bf16 %v445
        %v924 = vunpack.c.h.s8.bf16 %v444
        %v925 = vunpack.c.h.s8.bf16 %v445
        %v926 = vunpack.c.l.s8.bf16 %v446
        %v927 = vunpack.c.l.s8.bf16 %v447
        %v928 = vunpack.c.h.s8.bf16 %v446
        %v929 = vunpack.c.h.s8.bf16 %v447
        %v930 = vunpack.c.l.s8.bf16 %v448
        %v931 = vunpack.c.l.s8.bf16 %v449
        %v932 = vunpack.c.h.s8.bf16 %v448
        %v933 = vunpack.c.h.s8.bf16 %v449
        %v934 = vunpack.c.l.s8.bf16 %v450
        %v935 = vunpack.c.l.s8.bf16 %v451
        %v936 = vunpack.c.h.s8.bf16 %v450
        %v937 = vunpack.c.h.s8.bf16 %v451
        %v938 = vunpack.c.l.s8.bf16 %v452
        %v939 = vunpack.c.l.s8.bf16 %v453
        %v940 = vunpack.c.h.s8.bf16 %v452
        %v941 = vunpack.c.h.s8.bf16 %v453
        %v942 = vunpack.c.l.s8.bf16 %v454
        %v943 = vunpack.c.l.s8.bf16 %v455
        %v944 = vunpack.c.h.s8.bf16 %v454
        %v945 = vunpack.c.h.s8.bf16 %v455
        %v946 = vunpack.c.l.s8.bf16 %v456
        %v947 = vunpack.c.l.s8.bf16 %v457
        %v948 = vunpack.c.h.s8.bf16 %v456
        %v949 = vunpack.c.h.s8.bf16 %v457
        %v950 = vunpack.c.l.s8.bf16 %v458
        %v951 = vunpack.c.l.s8.bf16 %v459
        %v952 = vunpack.c.h.s8.bf16 %v458
        %v953 = vunpack.c.h.s8.bf16 %v459
        %v954 = vunpack.c.l.s8.bf16 %v460
        %v955 = vunpack.c.l.s8.bf16 %v461
        %v956 = vunpack.c.h.s8.bf16 %v460
        %v957 = vunpack.c.h.s8.bf16 %v461
        %v958 = vunpack.c.l.s8.bf16 %v462
        %v959 = vunpack.c.l.s8.bf16 %v463
        %v960 = vunpack.c.h.s8.bf16 %v462
        %v961 = vunpack.c.h.s8.bf16 %v463
        %v962 = vunpack.c.l.s8.bf16 %v464
        %v963 = vunpack.c.l.s8.bf16 %v465
        %v964 = vunpack.c.h.s8.bf16 %v464
        %v965 = vunpack.c.h.s8.bf16 %v465
        %v966 = vunpack.c.l.s8.bf16 %v466
        %v967 = vunpack.c.l.s8.bf16 %v467
        %v968 = vunpack.c.h.s8.bf16 %v466
        %v969 = vunpack.c.h.s8.bf16 %v467
        %v970 = vunpack.c.l.s8.bf16 %v468
        %v971 = vunpack.c.l.s8.bf16 %v469
        %v972 = vunpack.c.h.s8.bf16 %v468
        %v973 = vunpack.c.h.s8.bf16 %v469
        %v974 = vunpack.c.l.s8.bf16 %v470
        %v975 = vunpack.c.l.s8.bf16 %v471
        %v976 = vunpack.c.h.s8.bf16 %v470
        %v977 = vunpack.c.h.s8.bf16 %v471
        %v978 = vunpack.c.l.s8.bf16 %v472
        %v979 = vunpack.c.l.s8.bf16 %v473
        %v980 = vunpack.c.h.s8.bf16 %v472
        %v981 = vunpack.c.h.s8.bf16 %v473
        %v982 = vunpack.c.l.s8.bf16 %v474
        %v983 = vunpack.c.l.s8.bf16 %v475
        %v984 = vunpack.c.h.s8.bf16 %v474
        %v985 = vunpack.c.h.s8.bf16 %v475
        %v986 = vunpack.c.l.s8.bf16 %v476
        %v987 = vunpack.c.l.s8.bf16 %v477
        %v988 = vunpack.c.h.s8.bf16 %v476
        %v989 = vunpack.c.h.s8.bf16 %v477
        %v990 = vunpack.c.l.s8.bf16 %v478
        %v991 = vunpack.c.l.s8.bf16 %v479
        %v992 = vunpack.c.h.s8.bf16 %v478
        %v993 = vunpack.c.h.s8.bf16 %v479
        %v994 = vunpack.c.l.s8.bf16 %v480
        %v995 = vunpack.c.l.s8.bf16 %v481
        %v996 = vunpack.c.h.s8.bf16 %v480
        %v997 = vunpack.c.h.s8.bf16 %v481
        %v998 = vunpack.c.l.s8.bf16 %v482
        %v999 = vunpack.c.l.s8.bf16 %v483
        %v1000 = vunpack.c.h.s8.bf16 %v482
        %v1001 = vunpack.c.h.s8.bf16 %v483
        %v1002 = vunpack.c.l.s8.bf16 %v484
        %v1003 = vunpack.c.l.s8.bf16 %v485
        %v1004 = vunpack.c.h.s8.bf16 %v484
        %v1005 = vunpack.c.h.s8.bf16 %v485
        %v1006 = vunpack.c.l.s8.bf16 %v486
        %v1007 = vunpack.c.l.s8.bf16 %v487
        %v1008 = vunpack.c.h.s8.bf16 %v486
        %v1009 = vunpack.c.h.s8.bf16 %v487
        %v1010 = vunpack.c.l.s8.bf16 %v488
        %v1011 = vunpack.c.l.s8.bf16 %v489
        %v1012 = vunpack.c.h.s8.bf16 %v488
        %v1013 = vunpack.c.h.s8.bf16 %v489
        %v1014 = vunpack.c.l.s8.bf16 %v490
        %v1015 = vunpack.c.l.s8.bf16 %v491
        %v1016 = vunpack.c.h.s8.bf16 %v490
        %v1017 = vunpack.c.h.s8.bf16 %v491
        %v1018 = vunpack.c.l.s8.bf16 %v492
        %v1019 = vunpack.c.l.s8.bf16 %v493
        %v1020 = vunpack.c.h.s8.bf16 %v492
        %v1021 = vunpack.c.h.s8.bf16 %v493
        %v1022 = vunpack.c.l.s8.bf16 %v494
        %v1023 = vunpack.c.l.s8.bf16 %v495
        %v1024 = vunpack.c.h.s8.bf16 %v494
        %v1025 = vunpack.c.h.s8.bf16 %v495
        %v1026 = vunpack.c.l.s8.bf16 %v496
        %v1027 = vunpack.c.l.s8.bf16 %v497
        %v1028 = vunpack.c.h.s8.bf16 %v496
        %v1029 = vunpack.c.h.s8.bf16 %v497
        %v1030 = vunpack.c.l.s8.bf16 %v498
        %v1031 = vunpack.c.l.s8.bf16 %v499
        %v1032 = vunpack.c.h.s8.bf16 %v498
        %v1033 = vunpack.c.h.s8.bf16 %v499
        %v1034 = vunpack.c.l.s8.bf16 %v500
        %v1035 = vunpack.c.l.s8.bf16 %v501
        %v1036 = vunpack.c.h.s8.bf16 %v500
        %v1037 = vunpack.c.h.s8.bf16 %v501
        %v1038 = vunpack.c.l.s8.bf16 %v502
        %v1039 = vunpack.c.l.s8.bf16 %v503
        %v1040 = vunpack.c.h.s8.bf16 %v502
        %v1041 = vunpack.c.h.s8.bf16 %v503
        %v1042 = vunpack.c.l.s8.bf16 %v504
        %v1043 = vunpack.c.l.s8.bf16 %v505
        %v1044 = vunpack.c.h.s8.bf16 %v504
        %v1045 = vunpack.c.h.s8.bf16 %v505
        %v1046 = vunpack.c.l.s8.bf16 %v506
        %v1047 = vunpack.c.l.s8.bf16 %v507
        %v1048 = vunpack.c.h.s8.bf16 %v506
        %v1049 = vunpack.c.h.s8.bf16 %v507
        %v1050 = vunpack.c.l.s8.bf16 %v508
        %v1051 = vunpack.c.l.s8.bf16 %v509
        %v1052 = vunpack.c.h.s8.bf16 %v508
        %v1053 = vunpack.c.h.s8.bf16 %v509
        %v1054 = vunpack.c.l.s8.bf16 %v510
        %v1055 = vunpack.c.l.s8.bf16 %v511
        %v1056 = vunpack.c.h.s8.bf16 %v510
        %v1057 = vunpack.c.h.s8.bf16 %v511
        %v1058 = vunpack.c.l.s8.bf16 %v512
        %v1059 = vunpack.c.l.s8.bf16 %v513
        %v1060 = vunpack.c.h.s8.bf16 %v512
        %v1061 = vunpack.c.h.s8.bf16 %v513
        %v1062 = vunpack.c.l.s8.bf16 %v514
        %v1063 = vunpack.c.l.s8.bf16 %v515
        %v1064 = vunpack.c.h.s8.bf16 %v514
        %v1065 = vunpack.c.h.s8.bf16 %v515
        %v1066 = vunpack.c.l.s8.bf16 %v516
        %v1067 = vunpack.c.l.s8.bf16 %v517
        %v1068 = vunpack.c.h.s8.bf16 %v516
        %v1069 = vunpack.c.h.s8.bf16 %v517
        %v1070 = vunpack.c.l.s8.bf16 %v518
        %v1071 = vunpack.c.l.s8.bf16 %v519
        %v1072 = vunpack.c.h.s8.bf16 %v518
        %v1073 = vunpack.c.h.s8.bf16 %v519
        %v1074 = vunpack.c.l.s8.bf16 %v520
        %v1075 = vunpack.c.l.s8.bf16 %v521
        %v1076 = vunpack.c.h.s8.bf16 %v520
        %v1077 = vunpack.c.h.s8.bf16 %v521
        %v1078 = vunpack.c.l.s8.bf16 %v522
        %v1079 = vunpack.c.l.s8.bf16 %v523
        %v1080 = vunpack.c.h.s8.bf16 %v522
        %v1081 = vunpack.c.h.s8.bf16 %v523
        %v1082 = vunpack.c.l.s8.bf16 %v524
        %v1083 = vunpack.c.l.s8.bf16 %v525
        %v1084 = vunpack.c.h.s8.bf16 %v524
        %v1085 = vunpack.c.h.s8.bf16 %v525
        %v1086 = vunpack.c.l.s8.bf16 %v526
        %v1087 = vunpack.c.l.s8.bf16 %v527
        %v1088 = vunpack.c.h.s8.bf16 %v526
        %v1089 = vunpack.c.h.s8.bf16 %v527
        %v1090 = vunpack.c.l.s8.bf16 %v528
        %v1091 = vunpack.c.l.s8.bf16 %v529
        %v1092 = vunpack.c.h.s8.bf16 %v528
        %v1093 = vunpack.c.h.s8.bf16 %v529
        %v1094 = vunpack.c.l.s8.bf16 %v530
        %v1095 = vunpack.c.l.s8.bf16 %v531
        %v1096 = vunpack.c.h.s8.bf16 %v530
        %v1097 = vunpack.c.h.s8.bf16 %v531
        %v1098 = vunpack.c.l.s8.bf16 %v532
        %v1099 = vunpack.c.l.s8.bf16 %v533
        %v1100 = vunpack.c.h.s8.bf16 %v532
        %v1101 = vunpack.c.h.s8.bf16 %v533
        %v1102 = vunpack.c.l.s8.bf16 %v534
        %v1103 = vunpack.c.l.s8.bf16 %v535
        %v1104 = vunpack.c.h.s8.bf16 %v534
        %v1105 = vunpack.c.h.s8.bf16 %v535
        %v1106 = vunpack.c.l.s8.bf16 %v536
        %v1107 = vunpack.c.l.s8.bf16 %v537
        %v1108 = vunpack.c.h.s8.bf16 %v536
        %v1109 = vunpack.c.h.s8.bf16 %v537
        %v1110 = vunpack.c.l.s8.bf16 %v538
        %v1111 = vunpack.c.l.s8.bf16 %v539
        %v1112 = vunpack.c.h.s8.bf16 %v538
        %v1113 = vunpack.c.h.s8.bf16 %v539
        %v1114 = vunpack.c.l.s8.bf16 %v540
        %v1115 = vunpack.c.l.s8.bf16 %v541
        %v1116 = vunpack.c.h.s8.bf16 %v540
        %v1117 = vunpack.c.h.s8.bf16 %v541
        %v1118 = vunpack.c.l.s8.bf16 %v542
        %v1119 = vunpack.c.l.s8.bf16 %v543
        %v1120 = vunpack.c.h.s8.bf16 %v542
        %v1121 = vunpack.c.h.s8.bf16 %v543
        %v1122 = vunpack.c.l.s8.bf16 %v544
        %v1123 = vunpack.c.l.s8.bf16 %v545
        %v1124 = vunpack.c.h.s8.bf16 %v544
        %v1125 = vunpack.c.h.s8.bf16 %v545
        %v1126 = vunpack.c.l.s8.bf16 %v546
        %v1127 = vunpack.c.l.s8.bf16 %v547
        %v1128 = vunpack.c.h.s8.bf16 %v546
        %v1129 = vunpack.c.h.s8.bf16 %v547
        %v1130 = vunpack.c.l.s8.bf16 %v548
        %v1131 = vunpack.c.l.s8.bf16 %v549
        %v1132 = vunpack.c.h.s8.bf16 %v548
        %v1133 = vunpack.c.h.s8.bf16 %v549
        %v1134 = vunpack.c.l.s8.bf16 %v550
        %v1135 = vunpack.c.l.s8.bf16 %v551
        %v1136 = vunpack.c.h.s8.bf16 %v550
        %v1137 = vunpack.c.h.s8.bf16 %v551
        %v1138 = vunpack.c.l.s8.bf16 %v552
        %v1139 = vunpack.c.l.s8.bf16 %v553
        %v1140 = vunpack.c.h.s8.bf16 %v552
        %v1141 = vunpack.c.h.s8.bf16 %v553
        %v1142 = vunpack.c.l.s8.bf16 %v554
        %v1143 = vunpack.c.l.s8.bf16 %v555
        %v1144 = vunpack.c.h.s8.bf16 %v554
        %v1145 = vunpack.c.h.s8.bf16 %v555
        %v1146 = vunpack.c.l.s8.bf16 %v556
        %v1147 = vunpack.c.l.s8.bf16 %v557
        %v1148 = vunpack.c.h.s8.bf16 %v556
        %v1149 = vunpack.c.h.s8.bf16 %v557
        %v1150 = vunpack.c.l.s8.bf16 %v558
        %v1151 = vunpack.c.l.s8.bf16 %v559
        %v1152 = vunpack.c.h.s8.bf16 %v558
        %v1153 = vunpack.c.h.s8.bf16 %v559
        %v1154 = vunpack.c.l.s8.bf16 %v560
        %v1155 = vunpack.c.l.s8.bf16 %v561
        %v1156 = vunpack.c.h.s8.bf16 %v560
        %v1157 = vunpack.c.h.s8.bf16 %v561
        %v1158 = vunpack.c.l.s8.bf16 %v562
        %v1159 = vunpack.c.l.s8.bf16 %v563
        %v1160 = vunpack.c.h.s8.bf16 %v562
        %v1161 = vunpack.c.h.s8.bf16 %v563
        %v1162 = vunpack.c.l.s8.bf16 %v564
        %v1163 = vunpack.c.l.s8.bf16 %v565
        %v1164 = vunpack.c.h.s8.bf16 %v564
        %v1165 = vunpack.c.h.s8.bf16 %v565
        %v1166 = vunpack.c.l.s8.bf16 %v566
        %v1167 = vunpack.c.l.s8.bf16 %v567
        %v1168 = vunpack.c.h.s8.bf16 %v566
        %v1169 = vunpack.c.h.s8.bf16 %v567
        %v1170 = vunpack.c.l.s8.bf16 %v568
        %v1171 = vunpack.c.l.s8.bf16 %v569
        %v1172 = vunpack.c.h.s8.bf16 %v568
        %v1173 = vunpack.c.h.s8.bf16 %v569
        %v1174 = vunpack.c.l.s8.bf16 %v570
        %v1175 = vunpack.c.l.s8.bf16 %v571
        %v1176 = vunpack.c.h.s8.bf16 %v570
        %v1177 = vunpack.c.h.s8.bf16 %v571
        %v1178 = vunpack.c.l.s8.bf16 %v572
        %v1179 = vunpack.c.l.s8.bf16 %v573
        %v1180 = vunpack.c.h.s8.bf16 %v572
        %v1181 = vunpack.c.h.s8.bf16 %v573
        %v1182 = vunpack.c.l.s8.bf16 %v574
        %v1183 = vunpack.c.l.s8.bf16 %v575
        %v1184 = vunpack.c.h.s8.bf16 %v574
        %v1185 = vunpack.c.h.s8.bf16 %v575
        %v1186 = vunpack.c.l.s8.bf16 %v576
        %v1187 = vunpack.c.l.s8.bf16 %v577
        %v1188 = vunpack.c.h.s8.bf16 %v576
        %v1189 = vunpack.c.h.s8.bf16 %v577
        %v1190 = vunpack.c.l.s8.bf16 %v578
        %v1191 = vunpack.c.l.s8.bf16 %v579
        %v1192 = vunpack.c.h.s8.bf16 %v578
        %v1193 = vunpack.c.h.s8.bf16 %v579
        %v1194 = vunpack.c.l.s8.bf16 %v580
        %v1195 = vunpack.c.l.s8.bf16 %v581
        %v1196 = vunpack.c.h.s8.bf16 %v580
        %v1197 = vunpack.c.h.s8.bf16 %v581
        %v1198 = vunpack.c.l.s8.bf16 %v582
        %v1199 = vunpack.c.l.s8.bf16 %v583
        %v1200 = vunpack.c.h.s8.bf16 %v582
        %v1201 = vunpack.c.h.s8.bf16 %v583
        %v1202 = vunpack.c.l.s8.bf16 %v584
        %v1203 = vunpack.c.l.s8.bf16 %v585
        %v1204 = vunpack.c.h.s8.bf16 %v584
        %v1205 = vunpack.c.h.s8.bf16 %v585
        %v1206 = vunpack.c.l.s8.bf16 %v586
        %v1207 = vunpack.c.l.s8.bf16 %v587
        %v1208 = vunpack.c.h.s8.bf16 %v586
        %v1209 = vunpack.c.h.s8.bf16 %v587
        %v1210 = vunpack.c.l.s8.bf16 %v588
        %v1211 = vunpack.c.l.s8.bf16 %v589
        %v1212 = vunpack.c.h.s8.bf16 %v588
        %v1213 = vunpack.c.h.s8.bf16 %v589
        %v1214 = vunpack.c.l.s8.bf16 %v590
        %v1215 = vunpack.c.l.s8.bf16 %v591
        %v1216 = vunpack.c.h.s8.bf16 %v590
        %v1217 = vunpack.c.h.s8.bf16 %v591
        %v1218 = vunpack.c.l.s8.bf16 %v592
        %v1219 = vunpack.c.l.s8.bf16 %v593
        %v1220 = vunpack.c.h.s8.bf16 %v592
        %v1221 = vunpack.c.h.s8.bf16 %v593
        %v1222 = vunpack.c.l.s8.bf16 %v594
        %v1223 = vunpack.c.l.s8.bf16 %v595
        %v1224 = vunpack.c.h.s8.bf16 %v594
        %v1225 = vunpack.c.h.s8.bf16 %v595
        %v1226 = vunpack.c.l.s8.bf16 %v596
        %v1227 = vunpack.c.l.s8.bf16 %v597
        %v1228 = vunpack.c.h.s8.bf16 %v596
        %v1229 = vunpack.c.h.s8.bf16 %v597
        %v1230 = vunpack.c.l.s8.bf16 %v598
        %v1231 = vunpack.c.l.s8.bf16 %v599
        %v1232 = vunpack.c.h.s8.bf16 %v598
        %v1233 = vunpack.c.h.s8.bf16 %v599
        %v1234 = vunpack.c.l.s8.bf16 %v600
        %v1235 = vunpack.c.l.s8.bf16 %v601
        %v1236 = vunpack.c.h.s8.bf16 %v600
        %v1237 = vunpack.c.h.s8.bf16 %v601
        %v1238 = vunpack.c.l.s8.bf16 %v602
        %v1239 = vunpack.c.l.s8.bf16 %v603
        %v1240 = vunpack.c.h.s8.bf16 %v602
        %v1241 = vunpack.c.h.s8.bf16 %v603
        %v1242 = vunpack.c.l.s8.bf16 %v604
        %v1243 = vunpack.c.l.s8.bf16 %v605
        %v1244 = vunpack.c.h.s8.bf16 %v604
        %v1245 = vunpack.c.h.s8.bf16 %v605
        %v1246 = vunpack.c.l.s8.bf16 %v606
        %v1247 = vunpack.c.l.s8.bf16 %v607
        %v1248 = vunpack.c.h.s8.bf16 %v606
        %v1249 = vunpack.c.h.s8.bf16 %v607
        %v1250 = vunpack.c.l.s8.bf16 %v608
        %v1251 = vunpack.c.l.s8.bf16 %v609
        %v1252 = vunpack.c.h.s8.bf16 %v608
        %v1253 = vunpack.c.h.s8.bf16 %v609
        %v1254 = vunpack.c.l.s8.bf16 %v610
        %v1255 = vunpack.c.l.s8.bf16 %v611
        %v1256 = vunpack.c.h.s8.bf16 %v610
        %v1257 = vunpack.c.h.s8.bf16 %v611
        %v1258 = vunpack.c.l.s8.bf16 %v612
        %v1259 = vunpack.c.l.s8.bf16 %v613
        %v1260 = vunpack.c.h.s8.bf16 %v612
        %v1261 = vunpack.c.h.s8.bf16 %v613
        %v1262 = vunpack.c.l.s8.bf16 %v614
        %v1263 = vunpack.c.l.s8.bf16 %v615
        %v1264 = vunpack.c.h.s8.bf16 %v614
        %v1265 = vunpack.c.h.s8.bf16 %v615
        %v1266 = vunpack.c.l.s8.bf16 %v616
        %v1267 = vunpack.c.l.s8.bf16 %v617
        %v1268 = vunpack.c.h.s8.bf16 %v616
        %v1269 = vunpack.c.h.s8.bf16 %v617
        %v1270 = vunpack.c.l.s8.bf16 %v618
        %v1271 = vunpack.c.l.s8.bf16 %v619
        %v1272 = vunpack.c.h.s8.bf16 %v618
        %v1273 = vunpack.c.h.s8.bf16 %v619
        %v1274 = vunpack.c.l.s8.bf16 %v620
        %v1275 = vunpack.c.l.s8.bf16 %v621
        %v1276 = vunpack.c.h.s8.bf16 %v620
        %v1277 = vunpack.c.h.s8.bf16 %v621
        %v1278 = vunpack.c.l.s8.bf16 %v622
        %v1279 = vunpack.c.l.s8.bf16 %v623
        %v1280 = vunpack.c.h.s8.bf16 %v622
        %v1281 = vunpack.c.h.s8.bf16 %v623
        %v1282 = vunpack.c.l.s8.bf16 %v624
        %v1283 = vunpack.c.l.s8.bf16 %v625
        %v1284 = vunpack.c.h.s8.bf16 %v624
        %v1285 = vunpack.c.h.s8.bf16 %v625
        %v1286 = vunpack.c.l.s8.bf16 %v626
        %v1287 = vunpack.c.l.s8.bf16 %v627
        %v1288 = vunpack.c.h.s8.bf16 %v626
        %v1289 = vunpack.c.h.s8.bf16 %v627
        %v1290 = vunpack.c.l.s8.bf16 %v628
        %v1291 = vunpack.c.l.s8.bf16 %v629
        %v1292 = vunpack.c.h.s8.bf16 %v628
        %v1293 = vunpack.c.h.s8.bf16 %v629
        %v1294 = vunpack.c.l.s8.bf16 %v630
        %v1295 = vunpack.c.l.s8.bf16 %v631
        %v1296 = vunpack.c.h.s8.bf16 %v630
        %v1297 = vunpack.c.h.s8.bf16 %v631
        %v1298 = vunpack.c.l.s8.bf16 %v632
        %v1299 = vunpack.c.l.s8.bf16 %v633
        %v1300 = vunpack.c.h.s8.bf16 %v632
        %v1301 = vunpack.c.h.s8.bf16 %v633
        %v1302 = vunpack.c.l.s8.bf16 %v634
        %v1303 = vunpack.c.l.s8.bf16 %v635
        %v1304 = vunpack.c.h.s8.bf16 %v634
        %v1305 = vunpack.c.h.s8.bf16 %v635
        %v1306 = vunpack.c.l.s8.bf16 %v636
        %v1307 = vunpack.c.l.s8.bf16 %v637
        %v1308 = vunpack.c.h.s8.bf16 %v636
        %v1309 = vunpack.c.h.s8.bf16 %v637
        %v1310 = vunpack.c.l.s8.bf16 %v638
        %v1311 = vunpack.c.l.s8.bf16 %v639
        %v1312 = vunpack.c.h.s8.bf16 %v638
        %v1313 = vunpack.c.h.s8.bf16 %v639
        %v1314 = vunpack.c.l.s8.bf16 %v640
        %v1315 = vunpack.c.l.s8.bf16 %v641
        %v1316 = vunpack.c.h.s8.bf16 %v640
        %v1317 = vunpack.c.h.s8.bf16 %v641
        %v1318 = vunpack.c.l.s8.bf16 %v642
        %v1319 = vunpack.c.l.s8.bf16 %v643
        %v1320 = vunpack.c.h.s8.bf16 %v642
        %v1321 = vunpack.c.h.s8.bf16 %v643
        %v1322 = vunpack.c.l.s8.bf16 %v644
        %v1323 = vunpack.c.l.s8.bf16 %v645
        %v1324 = vunpack.c.h.s8.bf16 %v644
        %v1325 = vunpack.c.h.s8.bf16 %v645
        %v1326 = vunpack.c.l.s8.bf16 %v646
        %v1327 = vunpack.c.l.s8.bf16 %v647
        %v1328 = vunpack.c.h.s8.bf16 %v646
        %v1329 = vunpack.c.h.s8.bf16 %v647
        %v1330 = vunpack.c.l.s8.bf16 %v648
        %v1331 = vunpack.c.l.s8.bf16 %v649
        %v1332 = vunpack.c.h.s8.bf16 %v648
        %v1333 = vunpack.c.h.s8.bf16 %v649
        %v1334 = vunpack.c.l.s8.bf16 %v650
        %v1335 = vunpack.c.l.s8.bf16 %v651
        %v1336 = vunpack.c.h.s8.bf16 %v650
        %v1337 = vunpack.c.h.s8.bf16 %v651
        %v1338 = vunpack.c.l.s8.bf16 %v652
        %v1339 = vunpack.c.l.s8.bf16 %v653
        %v1340 = vunpack.c.h.s8.bf16 %v652
        %v1341 = vunpack.c.h.s8.bf16 %v653
        %v1342 = vunpack.c.l.s8.bf16 %v654
        %v1343 = vunpack.c.l.s8.bf16 %v655
        %v1344 = vunpack.c.h.s8.bf16 %v654
        %v1345 = vunpack.c.h.s8.bf16 %v655
        %v1346 = vunpack.c.l.s8.bf16 %v656
        %v1347 = vunpack.c.l.s8.bf16 %v657
        %v1348 = vunpack.c.h.s8.bf16 %v656
        %v1349 = vunpack.c.h.s8.bf16 %v657
        %v1350 = vunpack.c.l.s8.bf16 %v658
        %v1351 = vunpack.c.l.s8.bf16 %v659
        %v1352 = vunpack.c.h.s8.bf16 %v658
        %v1353 = vunpack.c.h.s8.bf16 %v659
        %v1354 = vunpack.c.l.s8.bf16 %v660
        %v1355 = vunpack.c.l.s8.bf16 %v661
        %v1356 = vunpack.c.h.s8.bf16 %v660
        %v1357 = vunpack.c.h.s8.bf16 %v661
        %v1358 = vunpack.c.l.s8.bf16 %v662
        %v1359 = vunpack.c.l.s8.bf16 %v663
        %v1360 = vunpack.c.h.s8.bf16 %v662
        %v1361 = vunpack.c.h.s8.bf16 %v663
        %v1362 = vunpack.c.l.s8.bf16 %v664
        %v1363 = vunpack.c.l.s8.bf16 %v665
        %v1364 = vunpack.c.h.s8.bf16 %v664
        %v1365 = vunpack.c.h.s8.bf16 %v665
        %v1366 = vunpack.c.l.s8.bf16 %v666
        %v1367 = vunpack.c.l.s8.bf16 %v667
        %v1368 = vunpack.c.h.s8.bf16 %v666
        %v1369 = vunpack.c.h.s8.bf16 %v667
        %v1370 = vunpack.c.l.s8.bf16 %v668
        %v1371 = vunpack.c.l.s8.bf16 %v669
        %v1372 = vunpack.c.h.s8.bf16 %v668
        %v1373 = vunpack.c.h.s8.bf16 %v669
        %v1374 = vunpack.c.l.s8.bf16 %v670
        %v1375 = vunpack.c.l.s8.bf16 %v671
        %v1376 = vunpack.c.h.s8.bf16 %v670
        %v1377 = vunpack.c.h.s8.bf16 %v671
        %v1378 = vunpack.c.l.s8.bf16 %v672
        %v1379 = vunpack.c.l.s8.bf16 %v673
        %v1380 = vunpack.c.h.s8.bf16 %v672
        %v1381 = vunpack.c.h.s8.bf16 %v673
        %v1382 = vunpack.c.l.s8.bf16 %v674
        %v1383 = vunpack.c.l.s8.bf16 %v675
        %v1384 = vunpack.c.h.s8.bf16 %v674
        %v1385 = vunpack.c.h.s8.bf16 %v675
        %v1386 = vunpack.c.l.s8.bf16 %v676
        %v1387 = vunpack.c.l.s8.bf16 %v677
        %v1388 = vunpack.c.h.s8.bf16 %v676
        %v1389 = vunpack.c.h.s8.bf16 %v677
        %v1390 = vunpack.c.l.s8.bf16 %v678
        %v1391 = vunpack.c.l.s8.bf16 %v679
        %v1392 = vunpack.c.h.s8.bf16 %v678
        %v1393 = vunpack.c.h.s8.bf16 %v679
        %v1394 = vunpack.c.l.s8.bf16 %v680
        %v1395 = vunpack.c.l.s8.bf16 %v681
        %v1396 = vunpack.c.h.s8.bf16 %v680
        %v1397 = vunpack.c.h.s8.bf16 %v681
        %v1398 = vunpack.c.l.s8.bf16 %v682
        %v1399 = vunpack.c.l.s8.bf16 %v683
        %v1400 = vunpack.c.h.s8.bf16 %v682
        %v1401 = vunpack.c.h.s8.bf16 %v683
        %v1402 = vunpack.c.l.s8.bf16 %v684
        %v1403 = vunpack.c.l.s8.bf16 %v685
        %v1404 = vunpack.c.h.s8.bf16 %v684
        %v1405 = vunpack.c.h.s8.bf16 %v685
        %v1406 = vunpack.c.l.s8.bf16 %v686
        %v1407 = vunpack.c.l.s8.bf16 %v687
        %v1408 = vunpack.c.h.s8.bf16 %v686
        %v1409 = vunpack.c.h.s8.bf16 %v687
        %v1410 = vunpack.c.l.s8.bf16 %v688
        %v1411 = vunpack.c.l.s8.bf16 %v689
        %v1412 = vunpack.c.h.s8.bf16 %v688
        %v1413 = vunpack.c.h.s8.bf16 %v689
        %v1414 = vunpack.c.l.s8.bf16 %v690
        %v1415 = vunpack.c.l.s8.bf16 %v691
        %v1416 = vunpack.c.h.s8.bf16 %v690
        %v1417 = vunpack.c.h.s8.bf16 %v691
        %v1418 = vunpack.c.l.s8.bf16 %v692
        %v1419 = vunpack.c.l.s8.bf16 %v693
        %v1420 = vunpack.c.h.s8.bf16 %v692
        %v1421 = vunpack.c.h.s8.bf16 %v693
        %v1422 = vunpack.c.l.s8.bf16 %v694
        %v1423 = vunpack.c.l.s8.bf16 %v695
        %v1424 = vunpack.c.h.s8.bf16 %v694
        %v1425 = vunpack.c.h.s8.bf16 %v695
        %v1426 = vunpack.c.l.s8.bf16 %v696
        %v1427 = vunpack.c.l.s8.bf16 %v697
        %v1428 = vunpack.c.h.s8.bf16 %v696
        %v1429 = vunpack.c.h.s8.bf16 %v697
        %v1430 = vunpack.c.l.s8.bf16 %v698
        %v1431 = vunpack.c.l.s8.bf16 %v699
        %v1432 = vunpack.c.h.s8.bf16 %v698
        %v1433 = vunpack.c.h.s8.bf16 %v699
        %v1434 = vunpack.c.l.s8.bf16 %v700
        %v1435 = vunpack.c.l.s8.bf16 %v701
        %v1436 = vunpack.c.h.s8.bf16 %v700
        %v1437 = vunpack.c.h.s8.bf16 %v701
        %v1438 = vunpack.c.l.s8.bf16 %v702
        %v1439 = vunpack.c.l.s8.bf16 %v703
        %v1440 = vunpack.c.h.s8.bf16 %v702
        %v1441 = vunpack.c.h.s8.bf16 %v703
        %v1442 = vunpack.c.l.s8.bf16 %v704
        %v1443 = vunpack.c.l.s8.bf16 %v705
        %v1444 = vunpack.c.h.s8.bf16 %v704
        %v1445 = vunpack.c.h.s8.bf16 %v705
        %v1446 = vunpack.c.l.s8.bf16 %v706
        %v1447 = vunpack.c.l.s8.bf16 %v707
        %v1448 = vunpack.c.h.s8.bf16 %v706
        %v1449 = vunpack.c.h.s8.bf16 %v707
        %v1450 = vunpack.c.l.s8.bf16 %v708
        %v1451 = vunpack.c.l.s8.bf16 %v709
        %v1452 = vunpack.c.h.s8.bf16 %v708
        %v1453 = vunpack.c.h.s8.bf16 %v709
        %v1454 = vunpack.c.l.s8.bf16 %v710
        %v1455 = vunpack.c.l.s8.bf16 %v711
        %v1456 = vunpack.c.h.s8.bf16 %v710
        %v1457 = vunpack.c.h.s8.bf16 %v711
        %v1458 = vunpack.c.l.s8.bf16 %v712
        %v1459 = vunpack.c.l.s8.bf16 %v713
        %v1460 = vunpack.c.h.s8.bf16 %v712
        %v1461 = vunpack.c.h.s8.bf16 %v713
        %v1462 = vunpack.c.l.s8.bf16 %v714
        %v1463 = vunpack.c.l.s8.bf16 %v715
        %v1464 = vunpack.c.h.s8.bf16 %v714
        %v1465 = vunpack.c.h.s8.bf16 %v715
        %v1466 = vunpack.c.l.s8.bf16 %v716
        %v1467 = vunpack.c.l.s8.bf16 %v717
        %v1468 = vunpack.c.h.s8.bf16 %v716
        %v1469 = vunpack.c.h.s8.bf16 %v717
        %v1470 = vld [vmem:[#allocation2] sm:$0xff]
        %v1471 = vld [vmem:[#allocation2 + $0x8] sm:$0xff]
        %v1472 = vld [vmem:[%s323] sm:$0xff]
        %v1473 = vld [vmem:[%s323 + $0x8] sm:$0xff]
        %v1474 = vld [vmem:[%s323 + $0x10] sm:$0xff]
        %v1475 = vld [vmem:[%s323 + $0x18] sm:$0xff]
        %v1476 = vld [vmem:[%s323 + $0x20] sm:$0xff]
        %v1477 = vld [vmem:[%s323 + $0x28] sm:$0xff]
        %v1478 = vld [vmem:[%s323 + $0x30] sm:$0xff]
        %v1479 = vld [vmem:[%s323 + $0x38] sm:$0xff]
        %v1480 = vld [vmem:[%s323 + $0x40] sm:$0xff]
        %v1481 = vld [vmem:[%s323 + $0x48] sm:$0xff]
        %v1482 = vld [vmem:[%s323 + $0x50] sm:$0xff]
        %v1483 = vld [vmem:[%s323 + $0x58] sm:$0xff]
        %v1484 = vld [vmem:[%s323 + $0x60] sm:$0xff]
        %v1485 = vld [vmem:[%s323 + $0x68] sm:$0xff]
        %v1486 = vld [vmem:[%s323 + $0x70] sm:$0xff]
        %v1487 = vld [vmem:[%s323 + $0x78] sm:$0xff]
        %v1488 = vld [vmem:[%s323 + $0x80] sm:$0xff]
        %v1489 = vld [vmem:[%s323 + $0x88] sm:$0xff]
        %v1490 = vld [vmem:[%s323 + $0x90] sm:$0xff]
        %v1491 = vld [vmem:[%s323 + $0x98] sm:$0xff]
        %v1492 = vld [vmem:[%s323 + $0xa0] sm:$0xff]
        %v1493 = vld [vmem:[%s323 + $0xa8] sm:$0xff]
        %v1494 = vld [vmem:[%s323 + $0xb0] sm:$0xff]
        %v1495 = vld [vmem:[%s323 + $0xb8] sm:$0xf]
        %v1520 = vunpack.c.l.b16 %v1472
        %v1521 = vunpack.c.h.b16 %v1472
        %v1522 = vunpack.c.l.b16 %v1473
        %v1523 = vunpack.c.h.b16 %v1473
        %v1524 = vunpack.c.l.b16 %v1474
        %v1525 = vunpack.c.h.b16 %v1474
        %v1526 = vunpack.c.l.b16 %v1475
        %v1527 = vunpack.c.h.b16 %v1475
        %v1528 = vunpack.c.l.b16 %v1476
        %v1529 = vunpack.c.h.b16 %v1476
        %v1530 = vunpack.c.l.b16 %v1477
        %v1531 = vunpack.c.h.b16 %v1477
        %v1532 = vunpack.c.l.b16 %v1478
        %v1533 = vunpack.c.h.b16 %v1478
        %v1534 = vunpack.c.l.b16 %v1479
        %v1535 = vunpack.c.h.b16 %v1479
        %v1536 = vunpack.c.l.b16 %v1480
        %v1537 = vunpack.c.h.b16 %v1480
        %v1538 = vunpack.c.l.b16 %v1481
        %v1539 = vunpack.c.h.b16 %v1481
        %v1540 = vunpack.c.l.b16 %v1482
        %v1541 = vunpack.c.h.b16 %v1482
        %v1542 = vunpack.c.l.b16 %v1483
        %v1543 = vunpack.c.h.b16 %v1483
        %v1544 = vunpack.c.l.b16 %v1484
        %v1545 = vunpack.c.h.b16 %v1484
        %v1546 = vunpack.c.l.b16 %v1485
        %v1547 = vunpack.c.h.b16 %v1485
        %v1548 = vunpack.c.l.b16 %v1486
        %v1549 = vunpack.c.h.b16 %v1486
        %v1550 = vunpack.c.l.b16 %v1487
        %v1551 = vunpack.c.h.b16 %v1487
        %v1552 = vunpack.c.l.b16 %v1488
        %v1553 = vunpack.c.h.b16 %v1488
        %v1554 = vunpack.c.l.b16 %v1489
        %v1555 = vunpack.c.h.b16 %v1489
        %v1556 = vunpack.c.l.b16 %v1490
        %v1557 = vunpack.c.h.b16 %v1490
        %v1558 = vunpack.c.l.b16 %v1491
        %v1559 = vunpack.c.h.b16 %v1491
        %v1560 = vunpack.c.l.b16 %v1492
        %v1561 = vunpack.c.h.b16 %v1492
        %v1562 = vunpack.c.l.b16 %v1493
        %v1563 = vunpack.c.h.b16 %v1493
        %v1564 = vunpack.c.l.b16 %v1494
        %v1565 = vunpack.c.h.b16 %v1494
        %v1566 = vunpack.c.l.b16 %v1495
        %v1567 = vpack.c.b16 %v1520, %v1520
        %v1568 = vpack.c.b16 %v1521, %v1521
        %v1569 = vpack.c.b16 %v1522, %v1522
        %v1570 = vpack.c.b16 %v1523, %v1523
        %v1571 = vpack.c.b16 %v1524, %v1524
        %v1572 = vpack.c.b16 %v1525, %v1525
        %v1573 = vpack.c.b16 %v1526, %v1526
        %v1574 = vpack.c.b16 %v1527, %v1527
        %v1575 = vpack.c.b16 %v1528, %v1528
        %v1576 = vpack.c.b16 %v1529, %v1529
        %v1577 = vpack.c.b16 %v1530, %v1530
        %v1578 = vpack.c.b16 %v1531, %v1531
        %v1579 = vpack.c.b16 %v1532, %v1532
        %v1580 = vpack.c.b16 %v1533, %v1533
        %v1581 = vpack.c.b16 %v1534, %v1534
        %v1582 = vpack.c.b16 %v1535, %v1535
        %v1583 = vpack.c.b16 %v1536, %v1536
        %v1584 = vpack.c.b16 %v1537, %v1537
        %v1585 = vpack.c.b16 %v1538, %v1538
        %v1586 = vpack.c.b16 %v1539, %v1539
        %v1587 = vpack.c.b16 %v1540, %v1540
        %v1588 = vpack.c.b16 %v1541, %v1541
        %v1589 = vpack.c.b16 %v1542, %v1542
        %v1590 = vpack.c.b16 %v1543, %v1543
        %v1591 = vpack.c.b16 %v1544, %v1544
        %v1592 = vpack.c.b16 %v1545, %v1545
        %v1593 = vpack.c.b16 %v1546, %v1546
        %v1594 = vpack.c.b16 %v1547, %v1547
        %v1595 = vpack.c.b16 %v1548, %v1548
        %v1596 = vpack.c.b16 %v1549, %v1549
        %v1597 = vpack.c.b16 %v1550, %v1550
        %v1598 = vpack.c.b16 %v1551, %v1551
        %v1599 = vpack.c.b16 %v1552, %v1552
        %v1600 = vpack.c.b16 %v1553, %v1553
        %v1601 = vpack.c.b16 %v1554, %v1554
        %v1602 = vpack.c.b16 %v1555, %v1555
        %v1603 = vpack.c.b16 %v1556, %v1556
        %v1604 = vpack.c.b16 %v1557, %v1557
        %v1605 = vpack.c.b16 %v1558, %v1558
        %v1606 = vpack.c.b16 %v1559, %v1559
        %v1607 = vpack.c.b16 %v1560, %v1560
        %v1608 = vpack.c.b16 %v1561, %v1561
        %v1609 = vpack.c.b16 %v1562, %v1562
        %v1610 = vpack.c.b16 %v1563, %v1563
        %v1611 = vpack.c.b16 %v1564, %v1564
        %v1612 = vpack.c.b16 %v1565, %v1565
        %v1613 = vpack.c.b16 %v1566, %v1566
        %1661 = vmatprep.subr.bf16.mxu0 %v733
        %1662 = vmatpush1.bf16.msra.mxu0 %v732
        %1663 = vmatprep.subr.bf16.mxu0 %v731
        %1664 = vmatpush1.bf16.msra.mxu0 %v730
        %1665 = vmatprep.subr.bf16.mxu0 %v729
        %1666 = vmatpush1.bf16.msra.mxu0 %v728
        %1667 = vmatprep.subr.bf16.mxu0 %v727
        %1668 = vmatpush1.bf16.msra.mxu0 %v726
        %1669 = vmatprep.subr.bf16.mxu0 %v725
        %1670 = vmatpush1.bf16.msra.mxu0 %v724
        %1671 = vmatprep.subr.bf16.mxu0 %v723
        %1672 = vmatpush1.bf16.msra.mxu0 %v722
        %1673 = vmatprep.subr.bf16.mxu0 %v721
        %1674 = vmatpush1.bf16.msra.mxu0 %v720
        %1675 = vmatprep.subr.bf16.mxu0 %v719
        %1676 = vmatpush1.bf16.msra.mxu0 %v718
        %1677 = vmatprep.subr.bf16.mxu0 %v749
        %1678 = vmatpush2.bf16.msra.mxu0 %v748
        %1679 = vmatprep.subr.bf16.mxu0 %v747
        %1680 = vmatpush2.bf16.msra.mxu0 %v746
        %1681 = vmatprep.subr.bf16.mxu0 %v745
        %1682 = vmatpush2.bf16.msra.mxu0 %v744
        %1683 = vmatprep.subr.bf16.mxu0 %v743
        %1684 = vmatpush2.bf16.msra.mxu0 %v742
        %1685 = vmatprep.subr.bf16.mxu0 %v741
        %1686 = vmatpush2.bf16.msra.mxu0 %v740
        %1687 = vmatprep.subr.bf16.mxu0 %v739
        %1688 = vmatpush2.bf16.msra.mxu0 %v738
        %1689 = vmatprep.subr.bf16.mxu0 %v737
        %1690 = vmatpush2.bf16.msra.mxu0 %v736
        %1691 = vmatprep.subr.bf16.mxu0 %v735
        %1692 = vmatpush2.bf16.msra.mxu0 %v734
        %1693 = vmatprep.mubr.bf16.mxu0 %v1568
        %1694 = vmatmul.mubr.bf16.gmra.mxu0 %v1567
        %v1695 = vpop.f32.mrf.mxu0
        %v1696 = vadd.f32 0.0, %v1695
        %v1697 = vpop.f32.mrf.mxu0
        %v1698 = vadd.f32 0.0, %v1697
        %v1699 = vpop.f32.mrf.mxu0
        %v1700 = vpop.f32.mrf.mxu0
        %1701 = vdwg.mxu0
        %1702 = vmatprep.subr.bf16.mxu0 %v765
        %1703 = vmatpush1.bf16.msra.mxu0 %v764
        %1704 = vmatprep.subr.bf16.mxu0 %v763
        %1705 = vmatpush1.bf16.msra.mxu0 %v762
        %1706 = vmatprep.subr.bf16.mxu0 %v761
        %1707 = vmatpush1.bf16.msra.mxu0 %v760
        %1708 = vmatprep.subr.bf16.mxu0 %v759
        %1709 = vmatpush1.bf16.msra.mxu0 %v758
        %1710 = vmatprep.subr.bf16.mxu0 %v757
        %1711 = vmatpush1.bf16.msra.mxu0 %v756
        %1712 = vmatprep.subr.bf16.mxu0 %v755
        %1713 = vmatpush1.bf16.msra.mxu0 %v754
        %1714 = vmatprep.subr.bf16.mxu0 %v753
        %1715 = vmatpush1.bf16.msra.mxu0 %v752
        %1716 = vmatprep.subr.bf16.mxu0 %v751
        %1717 = vmatpush1.bf16.msra.mxu0 %v750
        %1718 = vmatprep.subr.bf16.mxu0 %v781
        %1719 = vmatpush2.bf16.msra.mxu0 %v780
        %1720 = vmatprep.subr.bf16.mxu0 %v779
        %1721 = vmatpush2.bf16.msra.mxu0 %v778
        %1722 = vmatprep.subr.bf16.mxu0 %v777
        %1723 = vmatpush2.bf16.msra.mxu0 %v776
        %1724 = vmatprep.subr.bf16.mxu0 %v775
        %1725 = vmatpush2.bf16.msra.mxu0 %v774
        %1726 = vmatprep.subr.bf16.mxu0 %v773
        %1727 = vmatpush2.bf16.msra.mxu0 %v772
        %1728 = vmatprep.subr.bf16.mxu0 %v771
        %1729 = vmatpush2.bf16.msra.mxu0 %v770
        %1730 = vmatprep.subr.bf16.mxu0 %v769
        %1731 = vmatpush2.bf16.msra.mxu0 %v768
        %1732 = vmatprep.subr.bf16.mxu0 %v767
        %1733 = vmatpush2.bf16.msra.mxu0 %v766
        %1734 = vmatprep.mubr.bf16.mxu0 %v1570
        %1735 = vmatmul.mubr.bf16.gmra.mxu0 %v1569
        %v1736 = vpop.f32.mrf.mxu0
        %v1737 = vadd.f32 %v1696, %v1736
        %v1738 = vpop.f32.mrf.mxu0
        %v1739 = vadd.f32 %v1698, %v1738
        %v1740 = vpop.f32.mrf.mxu0
        %v1741 = vpop.f32.mrf.mxu0
        %1742 = vdwg.mxu0
        %1743 = vmatprep.subr.bf16.mxu0 %v797
        %1744 = vmatpush1.bf16.msra.mxu0 %v796
        %1745 = vmatprep.subr.bf16.mxu0 %v795
        %1746 = vmatpush1.bf16.msra.mxu0 %v794
        %1747 = vmatprep.subr.bf16.mxu0 %v793
        %1748 = vmatpush1.bf16.msra.mxu0 %v792
        %1749 = vmatprep.subr.bf16.mxu0 %v791
        %1750 = vmatpush1.bf16.msra.mxu0 %v790
        %1751 = vmatprep.subr.bf16.mxu0 %v789
        %1752 = vmatpush1.bf16.msra.mxu0 %v788
        %1753 = vmatprep.subr.bf16.mxu0 %v787
        %1754 = vmatpush1.bf16.msra.mxu0 %v786
        %1755 = vmatprep.subr.bf16.mxu0 %v785
        %1756 = vmatpush1.bf16.msra.mxu0 %v784
        %1757 = vmatprep.subr.bf16.mxu0 %v783
        %1758 = vmatpush1.bf16.msra.mxu0 %v782
        %1759 = vmatprep.subr.bf16.mxu0 %v813
        %1760 = vmatpush2.bf16.msra.mxu0 %v812
        %1761 = vmatprep.subr.bf16.mxu0 %v811
        %1762 = vmatpush2.bf16.msra.mxu0 %v810
        %1763 = vmatprep.subr.bf16.mxu0 %v809
        %1764 = vmatpush2.bf16.msra.mxu0 %v808
        %1765 = vmatprep.subr.bf16.mxu0 %v807
        %1766 = vmatpush2.bf16.msra.mxu0 %v806
        %1767 = vmatprep.subr.bf16.mxu0 %v805
        %1768 = vmatpush2.bf16.msra.mxu0 %v804
        %1769 = vmatprep.subr.bf16.mxu0 %v803
        %1770 = vmatpush2.bf16.msra.mxu0 %v802
        %1771 = vmatprep.subr.bf16.mxu0 %v801
        %1772 = vmatpush2.bf16.msra.mxu0 %v800
        %1773 = vmatprep.subr.bf16.mxu0 %v799
        %1774 = vmatpush2.bf16.msra.mxu0 %v798
        %1775 = vmatprep.mubr.bf16.mxu0 %v1572
        %1776 = vmatmul.mubr.bf16.gmra.mxu0 %v1571
        %v1777 = vpop.f32.mrf.mxu0
        %v1778 = vadd.f32 %v1737, %v1777
        %v1779 = vpop.f32.mrf.mxu0
        %v1780 = vadd.f32 %v1739, %v1779
        %v1781 = vpop.f32.mrf.mxu0
        %v1782 = vpop.f32.mrf.mxu0
        %1783 = vdwg.mxu0
        %1784 = vmatprep.subr.bf16.mxu0 %v829
        %1785 = vmatpush1.bf16.msra.mxu0 %v828
        %1786 = vmatprep.subr.bf16.mxu0 %v827
        %1787 = vmatpush1.bf16.msra.mxu0 %v826
        %1788 = vmatprep.subr.bf16.mxu0 %v825
        %1789 = vmatpush1.bf16.msra.mxu0 %v824
        %1790 = vmatprep.subr.bf16.mxu0 %v823
        %1791 = vmatpush1.bf16.msra.mxu0 %v822
        %1792 = vmatprep.subr.bf16.mxu0 %v821
        %1793 = vmatpush1.bf16.msra.mxu0 %v820
        %1794 = vmatprep.subr.bf16.mxu0 %v819
        %1795 = vmatpush1.bf16.msra.mxu0 %v818
        %1796 = vmatprep.subr.bf16.mxu0 %v817
        %1797 = vmatpush1.bf16.msra.mxu0 %v816
        %1798 = vmatprep.subr.bf16.mxu0 %v815
        %1799 = vmatpush1.bf16.msra.mxu0 %v814
        %1800 = vmatprep.subr.bf16.mxu0 %v845
        %1801 = vmatpush2.bf16.msra.mxu0 %v844
        %1802 = vmatprep.subr.bf16.mxu0 %v843
        %1803 = vmatpush2.bf16.msra.mxu0 %v842
        %1804 = vmatprep.subr.bf16.mxu0 %v841
        %1805 = vmatpush2.bf16.msra.mxu0 %v840
        %1806 = vmatprep.subr.bf16.mxu0 %v839
        %1807 = vmatpush2.bf16.msra.mxu0 %v838
        %1808 = vmatprep.subr.bf16.mxu0 %v837
        %1809 = vmatpush2.bf16.msra.mxu0 %v836
        %1810 = vmatprep.subr.bf16.mxu0 %v835
        %1811 = vmatpush2.bf16.msra.mxu0 %v834
        %1812 = vmatprep.subr.bf16.mxu0 %v833
        %1813 = vmatpush2.bf16.msra.mxu0 %v832
        %1814 = vmatprep.subr.bf16.mxu0 %v831
        %1815 = vmatpush2.bf16.msra.mxu0 %v830
        %1816 = vmatprep.mubr.bf16.mxu0 %v1574
        %1817 = vmatmul.mubr.bf16.gmra.mxu0 %v1573
        %v1818 = vpop.f32.mrf.mxu0
        %v1819 = vadd.f32 %v1778, %v1818
        %v1820 = vpop.f32.mrf.mxu0
        %v1821 = vadd.f32 %v1780, %v1820
        %v1822 = vpop.f32.mrf.mxu0
        %v1823 = vpop.f32.mrf.mxu0
        %1824 = vdwg.mxu0
        %1825 = vmatprep.subr.bf16.mxu0 %v861
        %1826 = vmatpush1.bf16.msra.mxu0 %v860
        %1827 = vmatprep.subr.bf16.mxu0 %v859
        %1828 = vmatpush1.bf16.msra.mxu0 %v858
        %1829 = vmatprep.subr.bf16.mxu0 %v857
        %1830 = vmatpush1.bf16.msra.mxu0 %v856
        %1831 = vmatprep.subr.bf16.mxu0 %v855
        %1832 = vmatpush1.bf16.msra.mxu0 %v854
        %1833 = vmatprep.subr.bf16.mxu0 %v853
        %1834 = vmatpush1.bf16.msra.mxu0 %v852
        %1835 = vmatprep.subr.bf16.mxu0 %v851
        %1836 = vmatpush1.bf16.msra.mxu0 %v850
        %1837 = vmatprep.subr.bf16.mxu0 %v849
        %1838 = vmatpush1.bf16.msra.mxu0 %v848
        %1839 = vmatprep.subr.bf16.mxu0 %v847
        %1840 = vmatpush1.bf16.msra.mxu0 %v846
        %1841 = vmatprep.subr.bf16.mxu0 %v877
        %1842 = vmatpush2.bf16.msra.mxu0 %v876
        %1843 = vmatprep.subr.bf16.mxu0 %v875
        %1844 = vmatpush2.bf16.msra.mxu0 %v874
        %1845 = vmatprep.subr.bf16.mxu0 %v873
        %1846 = vmatpush2.bf16.msra.mxu0 %v872
        %1847 = vmatprep.subr.bf16.mxu0 %v871
        %1848 = vmatpush2.bf16.msra.mxu0 %v870
        %1849 = vmatprep.subr.bf16.mxu0 %v869
        %1850 = vmatpush2.bf16.msra.mxu0 %v868
        %1851 = vmatprep.subr.bf16.mxu0 %v867
        %1852 = vmatpush2.bf16.msra.mxu0 %v866
        %1853 = vmatprep.subr.bf16.mxu0 %v865
        %1854 = vmatpush2.bf16.msra.mxu0 %v864
        %1855 = vmatprep.subr.bf16.mxu0 %v863
        %1856 = vmatpush2.bf16.msra.mxu0 %v862
        %1857 = vmatprep.mubr.bf16.mxu0 %v1576
        %1858 = vmatmul.mubr.bf16.gmra.mxu0 %v1575
        %v1859 = vpop.f32.mrf.mxu0
        %v1860 = vadd.f32 %v1819, %v1859
        %v1861 = vpop.f32.mrf.mxu0
        %v1862 = vadd.f32 %v1821, %v1861
        %v1863 = vpop.f32.mrf.mxu0
        %v1864 = vpop.f32.mrf.mxu0
        %1865 = vdwg.mxu0
        %1866 = vmatprep.subr.bf16.mxu0 %v893
        %1867 = vmatpush1.bf16.msra.mxu0 %v892
        %1868 = vmatprep.subr.bf16.mxu0 %v891
        %1869 = vmatpush1.bf16.msra.mxu0 %v890
        %1870 = vmatprep.subr.bf16.mxu0 %v889
        %1871 = vmatpush1.bf16.msra.mxu0 %v888
        %1872 = vmatprep.subr.bf16.mxu0 %v887
        %1873 = vmatpush1.bf16.msra.mxu0 %v886
        %1874 = vmatprep.subr.bf16.mxu0 %v885
        %1875 = vmatpush1.bf16.msra.mxu0 %v884
        %1876 = vmatprep.subr.bf16.mxu0 %v883
        %1877 = vmatpush1.bf16.msra.mxu0 %v882
        %1878 = vmatprep.subr.bf16.mxu0 %v881
        %1879 = vmatpush1.bf16.msra.mxu0 %v880
        %1880 = vmatprep.subr.bf16.mxu0 %v879
        %1881 = vmatpush1.bf16.msra.mxu0 %v878
        %1882 = vmatprep.subr.bf16.mxu0 %v909
        %1883 = vmatpush2.bf16.msra.mxu0 %v908
        %1884 = vmatprep.subr.bf16.mxu0 %v907
        %1885 = vmatpush2.bf16.msra.mxu0 %v906
        %1886 = vmatprep.subr.bf16.mxu0 %v905
        %1887 = vmatpush2.bf16.msra.mxu0 %v904
        %1888 = vmatprep.subr.bf16.mxu0 %v903
        %1889 = vmatpush2.bf16.msra.mxu0 %v902
        %1890 = vmatprep.subr.bf16.mxu0 %v901
        %1891 = vmatpush2.bf16.msra.mxu0 %v900
        %1892 = vmatprep.subr.bf16.mxu0 %v899
        %1893 = vmatpush2.bf16.msra.mxu0 %v898
        %1894 = vmatprep.subr.bf16.mxu0 %v897
        %1895 = vmatpush2.bf16.msra.mxu0 %v896
        %1896 = vmatprep.subr.bf16.mxu0 %v895
        %1897 = vmatpush2.bf16.msra.mxu0 %v894
        %1898 = vmatprep.mubr.bf16.mxu0 %v1578
        %1899 = vmatmul.mubr.bf16.gmra.mxu0 %v1577
        %v1900 = vpop.f32.mrf.mxu0
        %v1901 = vadd.f32 %v1860, %v1900
        %v1902 = vpop.f32.mrf.mxu0
        %v1903 = vadd.f32 %v1862, %v1902
        %v1904 = vpop.f32.mrf.mxu0
        %v1905 = vpop.f32.mrf.mxu0
        %1906 = vdwg.mxu0
        %1907 = vmatprep.subr.bf16.mxu0 %v925
        %1908 = vmatpush1.bf16.msra.mxu0 %v924
        %1909 = vmatprep.subr.bf16.mxu0 %v923
        %1910 = vmatpush1.bf16.msra.mxu0 %v922
        %1911 = vmatprep.subr.bf16.mxu0 %v921
        %1912 = vmatpush1.bf16.msra.mxu0 %v920
        %1913 = vmatprep.subr.bf16.mxu0 %v919
        %1914 = vmatpush1.bf16.msra.mxu0 %v918
        %1915 = vmatprep.subr.bf16.mxu0 %v917
        %1916 = vmatpush1.bf16.msra.mxu0 %v916
        %1917 = vmatprep.subr.bf16.mxu0 %v915
        %1918 = vmatpush1.bf16.msra.mxu0 %v914
        %1919 = vmatprep.subr.bf16.mxu0 %v913
        %1920 = vmatpush1.bf16.msra.mxu0 %v912
        %1921 = vmatprep.subr.bf16.mxu0 %v911
        %1922 = vmatpush1.bf16.msra.mxu0 %v910
        %1923 = vmatprep.subr.bf16.mxu0 %v941
        %1924 = vmatpush2.bf16.msra.mxu0 %v940
        %1925 = vmatprep.subr.bf16.mxu0 %v939
        %1926 = vmatpush2.bf16.msra.mxu0 %v938
        %1927 = vmatprep.subr.bf16.mxu0 %v937
        %1928 = vmatpush2.bf16.msra.mxu0 %v936
        %1929 = vmatprep.subr.bf16.mxu0 %v935
        %1930 = vmatpush2.bf16.msra.mxu0 %v934
        %1931 = vmatprep.subr.bf16.mxu0 %v933
        %1932 = vmatpush2.bf16.msra.mxu0 %v932
        %1933 = vmatprep.subr.bf16.mxu0 %v931
        %1934 = vmatpush2.bf16.msra.mxu0 %v930
        %1935 = vmatprep.subr.bf16.mxu0 %v929
        %1936 = vmatpush2.bf16.msra.mxu0 %v928
        %1937 = vmatprep.subr.bf16.mxu0 %v927
        %1938 = vmatpush2.bf16.msra.mxu0 %v926
        %1939 = vmatprep.mubr.bf16.mxu0 %v1580
        %1940 = vmatmul.mubr.bf16.gmra.mxu0 %v1579
        %v1941 = vpop.f32.mrf.mxu0
        %v1942 = vadd.f32 %v1901, %v1941
        %v1943 = vpop.f32.mrf.mxu0
        %v1944 = vadd.f32 %v1903, %v1943
        %v1945 = vpop.f32.mrf.mxu0
        %v1946 = vpop.f32.mrf.mxu0
        %1947 = vdwg.mxu0
        %1948 = vmatprep.subr.bf16.mxu0 %v957
        %1949 = vmatpush1.bf16.msra.mxu0 %v956
        %1950 = vmatprep.subr.bf16.mxu0 %v955
        %1951 = vmatpush1.bf16.msra.mxu0 %v954
        %1952 = vmatprep.subr.bf16.mxu0 %v953
        %1953 = vmatpush1.bf16.msra.mxu0 %v952
        %1954 = vmatprep.subr.bf16.mxu0 %v951
        %1955 = vmatpush1.bf16.msra.mxu0 %v950
        %1956 = vmatprep.subr.bf16.mxu0 %v949
        %1957 = vmatpush1.bf16.msra.mxu0 %v948
        %1958 = vmatprep.subr.bf16.mxu0 %v947
        %1959 = vmatpush1.bf16.msra.mxu0 %v946
        %1960 = vmatprep.subr.bf16.mxu0 %v945
        %1961 = vmatpush1.bf16.msra.mxu0 %v944
        %1962 = vmatprep.subr.bf16.mxu0 %v943
        %1963 = vmatpush1.bf16.msra.mxu0 %v942
        %1964 = vmatprep.subr.bf16.mxu0 %v973
        %1965 = vmatpush2.bf16.msra.mxu0 %v972
        %1966 = vmatprep.subr.bf16.mxu0 %v971
        %1967 = vmatpush2.bf16.msra.mxu0 %v970
        %1968 = vmatprep.subr.bf16.mxu0 %v969
        %1969 = vmatpush2.bf16.msra.mxu0 %v968
        %1970 = vmatprep.subr.bf16.mxu0 %v967
        %1971 = vmatpush2.bf16.msra.mxu0 %v966
        %1972 = vmatprep.subr.bf16.mxu0 %v965
        %1973 = vmatpush2.bf16.msra.mxu0 %v964
        %1974 = vmatprep.subr.bf16.mxu0 %v963
        %1975 = vmatpush2.bf16.msra.mxu0 %v962
        %1976 = vmatprep.subr.bf16.mxu0 %v961
        %1977 = vmatpush2.bf16.msra.mxu0 %v960
        %1978 = vmatprep.subr.bf16.mxu0 %v959
        %1979 = vmatpush2.bf16.msra.mxu0 %v958
        %1980 = vmatprep.mubr.bf16.mxu0 %v1582
        %1981 = vmatmul.mubr.bf16.gmra.mxu0 %v1581
        %v1982 = vpop.f32.mrf.mxu0
        %v1983 = vadd.f32 %v1942, %v1982
        %v1984 = vpop.f32.mrf.mxu0
        %v1985 = vadd.f32 %v1944, %v1984
        %v1986 = vpop.f32.mrf.mxu0
        %v1987 = vpop.f32.mrf.mxu0
        %1988 = vdwg.mxu0
        %1989 = vmatprep.subr.bf16.mxu0 %v989
        %1990 = vmatpush1.bf16.msra.mxu0 %v988
        %1991 = vmatprep.subr.bf16.mxu0 %v987
        %1992 = vmatpush1.bf16.msra.mxu0 %v986
        %1993 = vmatprep.subr.bf16.mxu0 %v985
        %1994 = vmatpush1.bf16.msra.mxu0 %v984
        %1995 = vmatprep.subr.bf16.mxu0 %v983
        %1996 = vmatpush1.bf16.msra.mxu0 %v982
        %1997 = vmatprep.subr.bf16.mxu0 %v981
        %1998 = vmatpush1.bf16.msra.mxu0 %v980
        %1999 = vmatprep.subr.bf16.mxu0 %v979
        %2000 = vmatpush1.bf16.msra.mxu0 %v978
        %2001 = vmatprep.subr.bf16.mxu0 %v977
        %2002 = vmatpush1.bf16.msra.mxu0 %v976
        %2003 = vmatprep.subr.bf16.mxu0 %v975
        %2004 = vmatpush1.bf16.msra.mxu0 %v974
        %2005 = vmatprep.subr.bf16.mxu0 %v1005
        %2006 = vmatpush2.bf16.msra.mxu0 %v1004
        %2007 = vmatprep.subr.bf16.mxu0 %v1003
        %2008 = vmatpush2.bf16.msra.mxu0 %v1002
        %2009 = vmatprep.subr.bf16.mxu0 %v1001
        %2010 = vmatpush2.bf16.msra.mxu0 %v1000
        %2011 = vmatprep.subr.bf16.mxu0 %v999
        %2012 = vmatpush2.bf16.msra.mxu0 %v998
        %2013 = vmatprep.subr.bf16.mxu0 %v997
        %2014 = vmatpush2.bf16.msra.mxu0 %v996
        %2015 = vmatprep.subr.bf16.mxu0 %v995
        %2016 = vmatpush2.bf16.msra.mxu0 %v994
        %2017 = vmatprep.subr.bf16.mxu0 %v993
        %2018 = vmatpush2.bf16.msra.mxu0 %v992
        %2019 = vmatprep.subr.bf16.mxu0 %v991
        %2020 = vmatpush2.bf16.msra.mxu0 %v990
        %2021 = vmatprep.mubr.bf16.mxu0 %v1584
        %2022 = vmatmul.mubr.bf16.gmra.mxu0 %v1583
        %v2023 = vpop.f32.mrf.mxu0
        %v2024 = vadd.f32 %v1983, %v2023
        %v2025 = vpop.f32.mrf.mxu0
        %v2026 = vadd.f32 %v1985, %v2025
        %v2027 = vpop.f32.mrf.mxu0
        %v2028 = vpop.f32.mrf.mxu0
        %2029 = vdwg.mxu0
        %2030 = vmatprep.subr.bf16.mxu0 %v1021
        %2031 = vmatpush1.bf16.msra.mxu0 %v1020
        %2032 = vmatprep.subr.bf16.mxu0 %v1019
        %2033 = vmatpush1.bf16.msra.mxu0 %v1018
        %2034 = vmatprep.subr.bf16.mxu0 %v1017
        %2035 = vmatpush1.bf16.msra.mxu0 %v1016
        %2036 = vmatprep.subr.bf16.mxu0 %v1015
        %2037 = vmatpush1.bf16.msra.mxu0 %v1014
        %2038 = vmatprep.subr.bf16.mxu0 %v1013
        %2039 = vmatpush1.bf16.msra.mxu0 %v1012
        %2040 = vmatprep.subr.bf16.mxu0 %v1011
        %2041 = vmatpush1.bf16.msra.mxu0 %v1010
        %2042 = vmatprep.subr.bf16.mxu0 %v1009
        %2043 = vmatpush1.bf16.msra.mxu0 %v1008
        %2044 = vmatprep.subr.bf16.mxu0 %v1007
        %2045 = vmatpush1.bf16.msra.mxu0 %v1006
        %2046 = vmatprep.subr.bf16.mxu0 %v1037
        %2047 = vmatpush2.bf16.msra.mxu0 %v1036
        %2048 = vmatprep.subr.bf16.mxu0 %v1035
        %2049 = vmatpush2.bf16.msra.mxu0 %v1034
        %2050 = vmatprep.subr.bf16.mxu0 %v1033
        %2051 = vmatpush2.bf16.msra.mxu0 %v1032
        %2052 = vmatprep.subr.bf16.mxu0 %v1031
        %2053 = vmatpush2.bf16.msra.mxu0 %v1030
        %2054 = vmatprep.subr.bf16.mxu0 %v1029
        %2055 = vmatpush2.bf16.msra.mxu0 %v1028
        %2056 = vmatprep.subr.bf16.mxu0 %v1027
        %2057 = vmatpush2.bf16.msra.mxu0 %v1026
        %2058 = vmatprep.subr.bf16.mxu0 %v1025
        %2059 = vmatpush2.bf16.msra.mxu0 %v1024
        %2060 = vmatprep.subr.bf16.mxu0 %v1023
        %2061 = vmatpush2.bf16.msra.mxu0 %v1022
        %2062 = vmatprep.mubr.bf16.mxu0 %v1586
        %2063 = vmatmul.mubr.bf16.gmra.mxu0 %v1585
        %v2064 = vpop.f32.mrf.mxu0
        %v2065 = vadd.f32 %v2024, %v2064
        %v2066 = vpop.f32.mrf.mxu0
        %v2067 = vadd.f32 %v2026, %v2066
        %v2068 = vpop.f32.mrf.mxu0
        %v2069 = vpop.f32.mrf.mxu0
        %2070 = vdwg.mxu0
        %2071 = vmatprep.subr.bf16.mxu0 %v1053
        %2072 = vmatpush1.bf16.msra.mxu0 %v1052
        %2073 = vmatprep.subr.bf16.mxu0 %v1051
        %2074 = vmatpush1.bf16.msra.mxu0 %v1050
        %2075 = vmatprep.subr.bf16.mxu0 %v1049
        %2076 = vmatpush1.bf16.msra.mxu0 %v1048
        %2077 = vmatprep.subr.bf16.mxu0 %v1047
        %2078 = vmatpush1.bf16.msra.mxu0 %v1046
        %2079 = vmatprep.subr.bf16.mxu0 %v1045
        %2080 = vmatpush1.bf16.msra.mxu0 %v1044
        %2081 = vmatprep.subr.bf16.mxu0 %v1043
        %2082 = vmatpush1.bf16.msra.mxu0 %v1042
        %2083 = vmatprep.subr.bf16.mxu0 %v1041
        %2084 = vmatpush1.bf16.msra.mxu0 %v1040
        %2085 = vmatprep.subr.bf16.mxu0 %v1039
        %2086 = vmatpush1.bf16.msra.mxu0 %v1038
        %2087 = vmatprep.subr.bf16.mxu0 %v1069
        %2088 = vmatpush2.bf16.msra.mxu0 %v1068
        %2089 = vmatprep.subr.bf16.mxu0 %v1067
        %2090 = vmatpush2.bf16.msra.mxu0 %v1066
        %2091 = vmatprep.subr.bf16.mxu0 %v1065
        %2092 = vmatpush2.bf16.msra.mxu0 %v1064
        %2093 = vmatprep.subr.bf16.mxu0 %v1063
        %2094 = vmatpush2.bf16.msra.mxu0 %v1062
        %2095 = vmatprep.subr.bf16.mxu0 %v1061
        %2096 = vmatpush2.bf16.msra.mxu0 %v1060
        %2097 = vmatprep.subr.bf16.mxu0 %v1059
        %2098 = vmatpush2.bf16.msra.mxu0 %v1058
        %2099 = vmatprep.subr.bf16.mxu0 %v1057
        %2100 = vmatpush2.bf16.msra.mxu0 %v1056
        %2101 = vmatprep.subr.bf16.mxu0 %v1055
        %2102 = vmatpush2.bf16.msra.mxu0 %v1054
        %2103 = vmatprep.mubr.bf16.mxu0 %v1588
        %2104 = vmatmul.mubr.bf16.gmra.mxu0 %v1587
        %v2105 = vpop.f32.mrf.mxu0
        %v2106 = vadd.f32 %v2065, %v2105
        %v2107 = vpop.f32.mrf.mxu0
        %v2108 = vadd.f32 %v2067, %v2107
        %v2109 = vpop.f32.mrf.mxu0
        %v2110 = vpop.f32.mrf.mxu0
        %2111 = vdwg.mxu0
        %2112 = vmatprep.subr.bf16.mxu0 %v1085
        %2113 = vmatpush1.bf16.msra.mxu0 %v1084
        %2114 = vmatprep.subr.bf16.mxu0 %v1083
        %2115 = vmatpush1.bf16.msra.mxu0 %v1082
        %2116 = vmatprep.subr.bf16.mxu0 %v1081
        %2117 = vmatpush1.bf16.msra.mxu0 %v1080
        %2118 = vmatprep.subr.bf16.mxu0 %v1079
        %2119 = vmatpush1.bf16.msra.mxu0 %v1078
        %2120 = vmatprep.subr.bf16.mxu0 %v1077
        %2121 = vmatpush1.bf16.msra.mxu0 %v1076
        %2122 = vmatprep.subr.bf16.mxu0 %v1075
        %2123 = vmatpush1.bf16.msra.mxu0 %v1074
        %2124 = vmatprep.subr.bf16.mxu0 %v1073
        %2125 = vmatpush1.bf16.msra.mxu0 %v1072
        %2126 = vmatprep.subr.bf16.mxu0 %v1071
        %2127 = vmatpush1.bf16.msra.mxu0 %v1070
        %2128 = vmatprep.subr.bf16.mxu0 %v1101
        %2129 = vmatpush2.bf16.msra.mxu0 %v1100
        %2130 = vmatprep.subr.bf16.mxu0 %v1099
        %2131 = vmatpush2.bf16.msra.mxu0 %v1098
        %2132 = vmatprep.subr.bf16.mxu0 %v1097
        %2133 = vmatpush2.bf16.msra.mxu0 %v1096
        %2134 = vmatprep.subr.bf16.mxu0 %v1095
        %2135 = vmatpush2.bf16.msra.mxu0 %v1094
        %2136 = vmatprep.subr.bf16.mxu0 %v1093
        %2137 = vmatpush2.bf16.msra.mxu0 %v1092
        %2138 = vmatprep.subr.bf16.mxu0 %v1091
        %2139 = vmatpush2.bf16.msra.mxu0 %v1090
        %2140 = vmatprep.subr.bf16.mxu0 %v1089
        %2141 = vmatpush2.bf16.msra.mxu0 %v1088
        %2142 = vmatprep.subr.bf16.mxu0 %v1087
        %2143 = vmatpush2.bf16.msra.mxu0 %v1086
        %2144 = vmatprep.mubr.bf16.mxu0 %v1590
        %2145 = vmatmul.mubr.bf16.gmra.mxu0 %v1589
        %v2146 = vpop.f32.mrf.mxu0
        %v2147 = vadd.f32 %v2106, %v2146
        %v2148 = vpop.f32.mrf.mxu0
        %v2149 = vadd.f32 %v2108, %v2148
        %v2150 = vpop.f32.mrf.mxu0
        %v2151 = vpop.f32.mrf.mxu0
        %2152 = vdwg.mxu0
        %2153 = vmatprep.subr.bf16.mxu0 %v1117
        %2154 = vmatpush1.bf16.msra.mxu0 %v1116
        %2155 = vmatprep.subr.bf16.mxu0 %v1115
        %2156 = vmatpush1.bf16.msra.mxu0 %v1114
        %2157 = vmatprep.subr.bf16.mxu0 %v1113
        %2158 = vmatpush1.bf16.msra.mxu0 %v1112
        %2159 = vmatprep.subr.bf16.mxu0 %v1111
        %2160 = vmatpush1.bf16.msra.mxu0 %v1110
        %2161 = vmatprep.subr.bf16.mxu0 %v1109
        %2162 = vmatpush1.bf16.msra.mxu0 %v1108
        %2163 = vmatprep.subr.bf16.mxu0 %v1107
        %2164 = vmatpush1.bf16.msra.mxu0 %v1106
        %2165 = vmatprep.subr.bf16.mxu0 %v1105
        %2166 = vmatpush1.bf16.msra.mxu0 %v1104
        %2167 = vmatprep.subr.bf16.mxu0 %v1103
        %2168 = vmatpush1.bf16.msra.mxu0 %v1102
        %2169 = vmatprep.subr.bf16.mxu0 %v1133
        %2170 = vmatpush2.bf16.msra.mxu0 %v1132
        %2171 = vmatprep.subr.bf16.mxu0 %v1131
        %2172 = vmatpush2.bf16.msra.mxu0 %v1130
        %2173 = vmatprep.subr.bf16.mxu0 %v1129
        %2174 = vmatpush2.bf16.msra.mxu0 %v1128
        %2175 = vmatprep.subr.bf16.mxu0 %v1127
        %2176 = vmatpush2.bf16.msra.mxu0 %v1126
        %2177 = vmatprep.subr.bf16.mxu0 %v1125
        %2178 = vmatpush2.bf16.msra.mxu0 %v1124
        %2179 = vmatprep.subr.bf16.mxu0 %v1123
        %2180 = vmatpush2.bf16.msra.mxu0 %v1122
        %2181 = vmatprep.subr.bf16.mxu0 %v1121
        %2182 = vmatpush2.bf16.msra.mxu0 %v1120
        %2183 = vmatprep.subr.bf16.mxu0 %v1119
        %2184 = vmatpush2.bf16.msra.mxu0 %v1118
        %2185 = vmatprep.mubr.bf16.mxu0 %v1592
        %2186 = vmatmul.mubr.bf16.gmra.mxu0 %v1591
        %v2187 = vpop.f32.mrf.mxu0
        %v2188 = vadd.f32 %v2147, %v2187
        %v2189 = vpop.f32.mrf.mxu0
        %v2190 = vadd.f32 %v2149, %v2189
        %v2191 = vpop.f32.mrf.mxu0
        %v2192 = vpop.f32.mrf.mxu0
        %2193 = vdwg.mxu0
        %2194 = vmatprep.subr.bf16.mxu0 %v1149
        %2195 = vmatpush1.bf16.msra.mxu0 %v1148
        %2196 = vmatprep.subr.bf16.mxu0 %v1147
        %2197 = vmatpush1.bf16.msra.mxu0 %v1146
        %2198 = vmatprep.subr.bf16.mxu0 %v1145
        %2199 = vmatpush1.bf16.msra.mxu0 %v1144
        %2200 = vmatprep.subr.bf16.mxu0 %v1143
        %2201 = vmatpush1.bf16.msra.mxu0 %v1142
        %2202 = vmatprep.subr.bf16.mxu0 %v1141
        %2203 = vmatpush1.bf16.msra.mxu0 %v1140
        %2204 = vmatprep.subr.bf16.mxu0 %v1139
        %2205 = vmatpush1.bf16.msra.mxu0 %v1138
        %2206 = vmatprep.subr.bf16.mxu0 %v1137
        %2207 = vmatpush1.bf16.msra.mxu0 %v1136
        %2208 = vmatprep.subr.bf16.mxu0 %v1135
        %2209 = vmatpush1.bf16.msra.mxu0 %v1134
        %2210 = vmatprep.subr.bf16.mxu0 %v1165
        %2211 = vmatpush2.bf16.msra.mxu0 %v1164
        %2212 = vmatprep.subr.bf16.mxu0 %v1163
        %2213 = vmatpush2.bf16.msra.mxu0 %v1162
        %2214 = vmatprep.subr.bf16.mxu0 %v1161
        %2215 = vmatpush2.bf16.msra.mxu0 %v1160
        %2216 = vmatprep.subr.bf16.mxu0 %v1159
        %2217 = vmatpush2.bf16.msra.mxu0 %v1158
        %2218 = vmatprep.subr.bf16.mxu0 %v1157
        %2219 = vmatpush2.bf16.msra.mxu0 %v1156
        %2220 = vmatprep.subr.bf16.mxu0 %v1155
        %2221 = vmatpush2.bf16.msra.mxu0 %v1154
        %2222 = vmatprep.subr.bf16.mxu0 %v1153
        %2223 = vmatpush2.bf16.msra.mxu0 %v1152
        %2224 = vmatprep.subr.bf16.mxu0 %v1151
        %2225 = vmatpush2.bf16.msra.mxu0 %v1150
        %2226 = vmatprep.mubr.bf16.mxu0 %v1594
        %2227 = vmatmul.mubr.bf16.gmra.mxu0 %v1593
        %v2228 = vpop.f32.mrf.mxu0
        %v2229 = vadd.f32 %v2188, %v2228
        %v2230 = vpop.f32.mrf.mxu0
        %v2231 = vadd.f32 %v2190, %v2230
        %v2232 = vpop.f32.mrf.mxu0
        %v2233 = vpop.f32.mrf.mxu0
        %2234 = vdwg.mxu0
        %2235 = vmatprep.subr.bf16.mxu0 %v1181
        %2236 = vmatpush1.bf16.msra.mxu0 %v1180
        %2237 = vmatprep.subr.bf16.mxu0 %v1179
        %2238 = vmatpush1.bf16.msra.mxu0 %v1178
        %2239 = vmatprep.subr.bf16.mxu0 %v1177
        %2240 = vmatpush1.bf16.msra.mxu0 %v1176
        %2241 = vmatprep.subr.bf16.mxu0 %v1175
        %2242 = vmatpush1.bf16.msra.mxu0 %v1174
        %2243 = vmatprep.subr.bf16.mxu0 %v1173
        %2244 = vmatpush1.bf16.msra.mxu0 %v1172
        %2245 = vmatprep.subr.bf16.mxu0 %v1171
        %2246 = vmatpush1.bf16.msra.mxu0 %v1170
        %2247 = vmatprep.subr.bf16.mxu0 %v1169
        %2248 = vmatpush1.bf16.msra.mxu0 %v1168
        %2249 = vmatprep.subr.bf16.mxu0 %v1167
        %2250 = vmatpush1.bf16.msra.mxu0 %v1166
        %2251 = vmatprep.subr.bf16.mxu0 %v1197
        %2252 = vmatpush2.bf16.msra.mxu0 %v1196
        %2253 = vmatprep.subr.bf16.mxu0 %v1195
        %2254 = vmatpush2.bf16.msra.mxu0 %v1194
        %2255 = vmatprep.subr.bf16.mxu0 %v1193
        %2256 = vmatpush2.bf16.msra.mxu0 %v1192
        %2257 = vmatprep.subr.bf16.mxu0 %v1191
        %2258 = vmatpush2.bf16.msra.mxu0 %v1190
        %2259 = vmatprep.subr.bf16.mxu0 %v1189
        %2260 = vmatpush2.bf16.msra.mxu0 %v1188
        %2261 = vmatprep.subr.bf16.mxu0 %v1187
        %2262 = vmatpush2.bf16.msra.mxu0 %v1186
        %2263 = vmatprep.subr.bf16.mxu0 %v1185
        %2264 = vmatpush2.bf16.msra.mxu0 %v1184
        %2265 = vmatprep.subr.bf16.mxu0 %v1183
        %2266 = vmatpush2.bf16.msra.mxu0 %v1182
        %2267 = vmatprep.mubr.bf16.mxu0 %v1596
        %2268 = vmatmul.mubr.bf16.gmra.mxu0 %v1595
        %v2269 = vpop.f32.mrf.mxu0
        %v2270 = vadd.f32 %v2229, %v2269
        %v2271 = vpop.f32.mrf.mxu0
        %v2272 = vadd.f32 %v2231, %v2271
        %v2273 = vpop.f32.mrf.mxu0
        %v2274 = vpop.f32.mrf.mxu0
        %2275 = vdwg.mxu0
        %2276 = vmatprep.subr.bf16.mxu0 %v1213
        %2277 = vmatpush1.bf16.msra.mxu0 %v1212
        %2278 = vmatprep.subr.bf16.mxu0 %v1211
        %2279 = vmatpush1.bf16.msra.mxu0 %v1210
        %2280 = vmatprep.subr.bf16.mxu0 %v1209
        %2281 = vmatpush1.bf16.msra.mxu0 %v1208
        %2282 = vmatprep.subr.bf16.mxu0 %v1207
        %2283 = vmatpush1.bf16.msra.mxu0 %v1206
        %2284 = vmatprep.subr.bf16.mxu0 %v1205
        %2285 = vmatpush1.bf16.msra.mxu0 %v1204
        %2286 = vmatprep.subr.bf16.mxu0 %v1203
        %2287 = vmatpush1.bf16.msra.mxu0 %v1202
        %2288 = vmatprep.subr.bf16.mxu0 %v1201
        %2289 = vmatpush1.bf16.msra.mxu0 %v1200
        %2290 = vmatprep.subr.bf16.mxu0 %v1199
        %2291 = vmatpush1.bf16.msra.mxu0 %v1198
        %2292 = vmatprep.subr.bf16.mxu0 %v1229
        %2293 = vmatpush2.bf16.msra.mxu0 %v1228
        %2294 = vmatprep.subr.bf16.mxu0 %v1227
        %2295 = vmatpush2.bf16.msra.mxu0 %v1226
        %2296 = vmatprep.subr.bf16.mxu0 %v1225
        %2297 = vmatpush2.bf16.msra.mxu0 %v1224
        %2298 = vmatprep.subr.bf16.mxu0 %v1223
        %2299 = vmatpush2.bf16.msra.mxu0 %v1222
        %2300 = vmatprep.subr.bf16.mxu0 %v1221
        %2301 = vmatpush2.bf16.msra.mxu0 %v1220
        %2302 = vmatprep.subr.bf16.mxu0 %v1219
        %2303 = vmatpush2.bf16.msra.mxu0 %v1218
        %2304 = vmatprep.subr.bf16.mxu0 %v1217
        %2305 = vmatpush2.bf16.msra.mxu0 %v1216
        %2306 = vmatprep.subr.bf16.mxu0 %v1215
        %2307 = vmatpush2.bf16.msra.mxu0 %v1214
        %2308 = vmatprep.mubr.bf16.mxu0 %v1598
        %2309 = vmatmul.mubr.bf16.gmra.mxu0 %v1597
        %v2310 = vpop.f32.mrf.mxu0
        %v2311 = vadd.f32 %v2270, %v2310
        %v2312 = vpop.f32.mrf.mxu0
        %v2313 = vadd.f32 %v2272, %v2312
        %v2314 = vpop.f32.mrf.mxu0
        %v2315 = vpop.f32.mrf.mxu0
        %2316 = vdwg.mxu0
        %2317 = vmatprep.subr.bf16.mxu0 %v1245
        %2318 = vmatpush1.bf16.msra.mxu0 %v1244
        %2319 = vmatprep.subr.bf16.mxu0 %v1243
        %2320 = vmatpush1.bf16.msra.mxu0 %v1242
        %2321 = vmatprep.subr.bf16.mxu0 %v1241
        %2322 = vmatpush1.bf16.msra.mxu0 %v1240
        %2323 = vmatprep.subr.bf16.mxu0 %v1239
        %2324 = vmatpush1.bf16.msra.mxu0 %v1238
        %2325 = vmatprep.subr.bf16.mxu0 %v1237
        %2326 = vmatpush1.bf16.msra.mxu0 %v1236
        %2327 = vmatprep.subr.bf16.mxu0 %v1235
        %2328 = vmatpush1.bf16.msra.mxu0 %v1234
        %2329 = vmatprep.subr.bf16.mxu0 %v1233
        %2330 = vmatpush1.bf16.msra.mxu0 %v1232
        %2331 = vmatprep.subr.bf16.mxu0 %v1231
        %2332 = vmatpush1.bf16.msra.mxu0 %v1230
        %2333 = vmatprep.subr.bf16.mxu0 %v1261
        %2334 = vmatpush2.bf16.msra.mxu0 %v1260
        %2335 = vmatprep.subr.bf16.mxu0 %v1259
        %2336 = vmatpush2.bf16.msra.mxu0 %v1258
        %2337 = vmatprep.subr.bf16.mxu0 %v1257
        %2338 = vmatpush2.bf16.msra.mxu0 %v1256
        %2339 = vmatprep.subr.bf16.mxu0 %v1255
        %2340 = vmatpush2.bf16.msra.mxu0 %v1254
        %2341 = vmatprep.subr.bf16.mxu0 %v1253
        %2342 = vmatpush2.bf16.msra.mxu0 %v1252
        %2343 = vmatprep.subr.bf16.mxu0 %v1251
        %2344 = vmatpush2.bf16.msra.mxu0 %v1250
        %2345 = vmatprep.subr.bf16.mxu0 %v1249
        %2346 = vmatpush2.bf16.msra.mxu0 %v1248
        %2347 = vmatprep.subr.bf16.mxu0 %v1247
        %2348 = vmatpush2.bf16.msra.mxu0 %v1246
        %2349 = vmatprep.mubr.bf16.mxu0 %v1600
        %2350 = vmatmul.mubr.bf16.gmra.mxu0 %v1599
        %v2351 = vpop.f32.mrf.mxu0
        %v2352 = vadd.f32 %v2311, %v2351
        %v2353 = vpop.f32.mrf.mxu0
        %v2354 = vadd.f32 %v2313, %v2353
        %v2355 = vpop.f32.mrf.mxu0
        %v2356 = vpop.f32.mrf.mxu0
        %2357 = vdwg.mxu0
        %2358 = vmatprep.subr.bf16.mxu0 %v1277
        %2359 = vmatpush1.bf16.msra.mxu0 %v1276
        %2360 = vmatprep.subr.bf16.mxu0 %v1275
        %2361 = vmatpush1.bf16.msra.mxu0 %v1274
        %2362 = vmatprep.subr.bf16.mxu0 %v1273
        %2363 = vmatpush1.bf16.msra.mxu0 %v1272
        %2364 = vmatprep.subr.bf16.mxu0 %v1271
        %2365 = vmatpush1.bf16.msra.mxu0 %v1270
        %2366 = vmatprep.subr.bf16.mxu0 %v1269
        %2367 = vmatpush1.bf16.msra.mxu0 %v1268
        %2368 = vmatprep.subr.bf16.mxu0 %v1267
        %2369 = vmatpush1.bf16.msra.mxu0 %v1266
        %2370 = vmatprep.subr.bf16.mxu0 %v1265
        %2371 = vmatpush1.bf16.msra.mxu0 %v1264
        %2372 = vmatprep.subr.bf16.mxu0 %v1263
        %2373 = vmatpush1.bf16.msra.mxu0 %v1262
        %2374 = vmatprep.subr.bf16.mxu0 %v1293
        %2375 = vmatpush2.bf16.msra.mxu0 %v1292
        %2376 = vmatprep.subr.bf16.mxu0 %v1291
        %2377 = vmatpush2.bf16.msra.mxu0 %v1290
        %2378 = vmatprep.subr.bf16.mxu0 %v1289
        %2379 = vmatpush2.bf16.msra.mxu0 %v1288
        %2380 = vmatprep.subr.bf16.mxu0 %v1287
        %2381 = vmatpush2.bf16.msra.mxu0 %v1286
        %2382 = vmatprep.subr.bf16.mxu0 %v1285
        %2383 = vmatpush2.bf16.msra.mxu0 %v1284
        %2384 = vmatprep.subr.bf16.mxu0 %v1283
        %2385 = vmatpush2.bf16.msra.mxu0 %v1282
        %2386 = vmatprep.subr.bf16.mxu0 %v1281
        %2387 = vmatpush2.bf16.msra.mxu0 %v1280
        %2388 = vmatprep.subr.bf16.mxu0 %v1279
        %2389 = vmatpush2.bf16.msra.mxu0 %v1278
        %2390 = vmatprep.mubr.bf16.mxu0 %v1602
        %2391 = vmatmul.mubr.bf16.gmra.mxu0 %v1601
        %v2392 = vpop.f32.mrf.mxu0
        %v2393 = vadd.f32 %v2352, %v2392
        %v2394 = vpop.f32.mrf.mxu0
        %v2395 = vadd.f32 %v2354, %v2394
        %v2396 = vpop.f32.mrf.mxu0
        %v2397 = vpop.f32.mrf.mxu0
        %2398 = vdwg.mxu0
        %2399 = vmatprep.subr.bf16.mxu0 %v1309
        %2400 = vmatpush1.bf16.msra.mxu0 %v1308
        %2401 = vmatprep.subr.bf16.mxu0 %v1307
        %2402 = vmatpush1.bf16.msra.mxu0 %v1306
        %2403 = vmatprep.subr.bf16.mxu0 %v1305
        %2404 = vmatpush1.bf16.msra.mxu0 %v1304
        %2405 = vmatprep.subr.bf16.mxu0 %v1303
        %2406 = vmatpush1.bf16.msra.mxu0 %v1302
        %2407 = vmatprep.subr.bf16.mxu0 %v1301
        %2408 = vmatpush1.bf16.msra.mxu0 %v1300
        %2409 = vmatprep.subr.bf16.mxu0 %v1299
        %2410 = vmatpush1.bf16.msra.mxu0 %v1298
        %2411 = vmatprep.subr.bf16.mxu0 %v1297
        %2412 = vmatpush1.bf16.msra.mxu0 %v1296
        %2413 = vmatprep.subr.bf16.mxu0 %v1295
        %2414 = vmatpush1.bf16.msra.mxu0 %v1294
        %2415 = vmatprep.subr.bf16.mxu0 %v1325
        %2416 = vmatpush2.bf16.msra.mxu0 %v1324
        %2417 = vmatprep.subr.bf16.mxu0 %v1323
        %2418 = vmatpush2.bf16.msra.mxu0 %v1322
        %2419 = vmatprep.subr.bf16.mxu0 %v1321
        %2420 = vmatpush2.bf16.msra.mxu0 %v1320
        %2421 = vmatprep.subr.bf16.mxu0 %v1319
        %2422 = vmatpush2.bf16.msra.mxu0 %v1318
        %2423 = vmatprep.subr.bf16.mxu0 %v1317
        %2424 = vmatpush2.bf16.msra.mxu0 %v1316
        %2425 = vmatprep.subr.bf16.mxu0 %v1315
        %2426 = vmatpush2.bf16.msra.mxu0 %v1314
        %2427 = vmatprep.subr.bf16.mxu0 %v1313
        %2428 = vmatpush2.bf16.msra.mxu0 %v1312
        %2429 = vmatprep.subr.bf16.mxu0 %v1311
        %2430 = vmatpush2.bf16.msra.mxu0 %v1310
        %2431 = vmatprep.mubr.bf16.mxu0 %v1604
        %2432 = vmatmul.mubr.bf16.gmra.mxu0 %v1603
        %v2433 = vpop.f32.mrf.mxu0
        %v2434 = vadd.f32 %v2393, %v2433
        %v2435 = vpop.f32.mrf.mxu0
        %v2436 = vadd.f32 %v2395, %v2435
        %v2437 = vpop.f32.mrf.mxu0
        %v2438 = vpop.f32.mrf.mxu0
        %2439 = vdwg.mxu0
        %2440 = vmatprep.subr.bf16.mxu0 %v1341
        %2441 = vmatpush1.bf16.msra.mxu0 %v1340
        %2442 = vmatprep.subr.bf16.mxu0 %v1339
        %2443 = vmatpush1.bf16.msra.mxu0 %v1338
        %2444 = vmatprep.subr.bf16.mxu0 %v1337
        %2445 = vmatpush1.bf16.msra.mxu0 %v1336
        %2446 = vmatprep.subr.bf16.mxu0 %v1335
        %2447 = vmatpush1.bf16.msra.mxu0 %v1334
        %2448 = vmatprep.subr.bf16.mxu0 %v1333
        %2449 = vmatpush1.bf16.msra.mxu0 %v1332
        %2450 = vmatprep.subr.bf16.mxu0 %v1331
        %2451 = vmatpush1.bf16.msra.mxu0 %v1330
        %2452 = vmatprep.subr.bf16.mxu0 %v1329
        %2453 = vmatpush1.bf16.msra.mxu0 %v1328
        %2454 = vmatprep.subr.bf16.mxu0 %v1327
        %2455 = vmatpush1.bf16.msra.mxu0 %v1326
        %2456 = vmatprep.subr.bf16.mxu0 %v1357
        %2457 = vmatpush2.bf16.msra.mxu0 %v1356
        %2458 = vmatprep.subr.bf16.mxu0 %v1355
        %2459 = vmatpush2.bf16.msra.mxu0 %v1354
        %2460 = vmatprep.subr.bf16.mxu0 %v1353
        %2461 = vmatpush2.bf16.msra.mxu0 %v1352
        %2462 = vmatprep.subr.bf16.mxu0 %v1351
        %2463 = vmatpush2.bf16.msra.mxu0 %v1350
        %2464 = vmatprep.subr.bf16.mxu0 %v1349
        %2465 = vmatpush2.bf16.msra.mxu0 %v1348
        %2466 = vmatprep.subr.bf16.mxu0 %v1347
        %2467 = vmatpush2.bf16.msra.mxu0 %v1346
        %2468 = vmatprep.subr.bf16.mxu0 %v1345
        %2469 = vmatpush2.bf16.msra.mxu0 %v1344
        %2470 = vmatprep.subr.bf16.mxu0 %v1343
        %2471 = vmatpush2.bf16.msra.mxu0 %v1342
        %2472 = vmatprep.mubr.bf16.mxu0 %v1606
        %2473 = vmatmul.mubr.bf16.gmra.mxu0 %v1605
        %v2474 = vpop.f32.mrf.mxu0
        %v2475 = vadd.f32 %v2434, %v2474
        %v2476 = vpop.f32.mrf.mxu0
        %v2477 = vadd.f32 %v2436, %v2476
        %v2478 = vpop.f32.mrf.mxu0
        %v2479 = vpop.f32.mrf.mxu0
        %2480 = vdwg.mxu0
        %2481 = vmatprep.subr.bf16.mxu0 %v1373
        %2482 = vmatpush1.bf16.msra.mxu0 %v1372
        %2483 = vmatprep.subr.bf16.mxu0 %v1371
        %2484 = vmatpush1.bf16.msra.mxu0 %v1370
        %2485 = vmatprep.subr.bf16.mxu0 %v1369
        %2486 = vmatpush1.bf16.msra.mxu0 %v1368
        %2487 = vmatprep.subr.bf16.mxu0 %v1367
        %2488 = vmatpush1.bf16.msra.mxu0 %v1366
        %2489 = vmatprep.subr.bf16.mxu0 %v1365
        %2490 = vmatpush1.bf16.msra.mxu0 %v1364
        %2491 = vmatprep.subr.bf16.mxu0 %v1363
        %2492 = vmatpush1.bf16.msra.mxu0 %v1362
        %2493 = vmatprep.subr.bf16.mxu0 %v1361
        %2494 = vmatpush1.bf16.msra.mxu0 %v1360
        %2495 = vmatprep.subr.bf16.mxu0 %v1359
        %2496 = vmatpush1.bf16.msra.mxu0 %v1358
        %2497 = vmatprep.subr.bf16.mxu0 %v1389
        %2498 = vmatpush2.bf16.msra.mxu0 %v1388
        %2499 = vmatprep.subr.bf16.mxu0 %v1387
        %2500 = vmatpush2.bf16.msra.mxu0 %v1386
        %2501 = vmatprep.subr.bf16.mxu0 %v1385
        %2502 = vmatpush2.bf16.msra.mxu0 %v1384
        %2503 = vmatprep.subr.bf16.mxu0 %v1383
        %2504 = vmatpush2.bf16.msra.mxu0 %v1382
        %2505 = vmatprep.subr.bf16.mxu0 %v1381
        %2506 = vmatpush2.bf16.msra.mxu0 %v1380
        %2507 = vmatprep.subr.bf16.mxu0 %v1379
        %2508 = vmatpush2.bf16.msra.mxu0 %v1378
        %2509 = vmatprep.subr.bf16.mxu0 %v1377
        %2510 = vmatpush2.bf16.msra.mxu0 %v1376
        %2511 = vmatprep.subr.bf16.mxu0 %v1375
        %2512 = vmatpush2.bf16.msra.mxu0 %v1374
        %2513 = vmatprep.mubr.bf16.mxu0 %v1608
        %2514 = vmatmul.mubr.bf16.gmra.mxu0 %v1607
        %v2515 = vpop.f32.mrf.mxu0
        %v2516 = vadd.f32 %v2475, %v2515
        %v2517 = vpop.f32.mrf.mxu0
        %v2518 = vadd.f32 %v2477, %v2517
        %v2519 = vpop.f32.mrf.mxu0
        %v2520 = vpop.f32.mrf.mxu0
        %2521 = vdwg.mxu0
        %2522 = vmatprep.subr.bf16.mxu0 %v1405
        %2523 = vmatpush1.bf16.msra.mxu0 %v1404
        %2524 = vmatprep.subr.bf16.mxu0 %v1403
        %2525 = vmatpush1.bf16.msra.mxu0 %v1402
        %2526 = vmatprep.subr.bf16.mxu0 %v1401
        %2527 = vmatpush1.bf16.msra.mxu0 %v1400
        %2528 = vmatprep.subr.bf16.mxu0 %v1399
        %2529 = vmatpush1.bf16.msra.mxu0 %v1398
        %2530 = vmatprep.subr.bf16.mxu0 %v1397
        %2531 = vmatpush1.bf16.msra.mxu0 %v1396
        %2532 = vmatprep.subr.bf16.mxu0 %v1395
        %2533 = vmatpush1.bf16.msra.mxu0 %v1394
        %2534 = vmatprep.subr.bf16.mxu0 %v1393
        %2535 = vmatpush1.bf16.msra.mxu0 %v1392
        %2536 = vmatprep.subr.bf16.mxu0 %v1391
        %2537 = vmatpush1.bf16.msra.mxu0 %v1390
        %2538 = vmatprep.subr.bf16.mxu0 %v1421
        %2539 = vmatpush2.bf16.msra.mxu0 %v1420
        %2540 = vmatprep.subr.bf16.mxu0 %v1419
        %2541 = vmatpush2.bf16.msra.mxu0 %v1418
        %2542 = vmatprep.subr.bf16.mxu0 %v1417
        %2543 = vmatpush2.bf16.msra.mxu0 %v1416
        %2544 = vmatprep.subr.bf16.mxu0 %v1415
        %2545 = vmatpush2.bf16.msra.mxu0 %v1414
        %2546 = vmatprep.subr.bf16.mxu0 %v1413
        %2547 = vmatpush2.bf16.msra.mxu0 %v1412
        %2548 = vmatprep.subr.bf16.mxu0 %v1411
        %2549 = vmatpush2.bf16.msra.mxu0 %v1410
        %2550 = vmatprep.subr.bf16.mxu0 %v1409
        %2551 = vmatpush2.bf16.msra.mxu0 %v1408
        %2552 = vmatprep.subr.bf16.mxu0 %v1407
        %2553 = vmatpush2.bf16.msra.mxu0 %v1406
        %2554 = vmatprep.mubr.bf16.mxu0 %v1610
        %2555 = vmatmul.mubr.bf16.gmra.mxu0 %v1609
        %v2556 = vpop.f32.mrf.mxu0
        %v2557 = vadd.f32 %v2516, %v2556
        %v2558 = vpop.f32.mrf.mxu0
        %v2559 = vadd.f32 %v2518, %v2558
        %v2560 = vpop.f32.mrf.mxu0
        %v2561 = vpop.f32.mrf.mxu0
        %2562 = vdwg.mxu0
        %2563 = vmatprep.subr.bf16.mxu0 %v1437
        %2564 = vmatpush1.bf16.msra.mxu0 %v1436
        %2565 = vmatprep.subr.bf16.mxu0 %v1435
        %2566 = vmatpush1.bf16.msra.mxu0 %v1434
        %2567 = vmatprep.subr.bf16.mxu0 %v1433
        %2568 = vmatpush1.bf16.msra.mxu0 %v1432
        %2569 = vmatprep.subr.bf16.mxu0 %v1431
        %2570 = vmatpush1.bf16.msra.mxu0 %v1430
        %2571 = vmatprep.subr.bf16.mxu0 %v1429
        %2572 = vmatpush1.bf16.msra.mxu0 %v1428
        %2573 = vmatprep.subr.bf16.mxu0 %v1427
        %2574 = vmatpush1.bf16.msra.mxu0 %v1426
        %2575 = vmatprep.subr.bf16.mxu0 %v1425
        %2576 = vmatpush1.bf16.msra.mxu0 %v1424
        %2577 = vmatprep.subr.bf16.mxu0 %v1423
        %2578 = vmatpush1.bf16.msra.mxu0 %v1422
        %2579 = vmatprep.subr.bf16.mxu0 %v1453
        %2580 = vmatpush2.bf16.msra.mxu0 %v1452
        %2581 = vmatprep.subr.bf16.mxu0 %v1451
        %2582 = vmatpush2.bf16.msra.mxu0 %v1450
        %2583 = vmatprep.subr.bf16.mxu0 %v1449
        %2584 = vmatpush2.bf16.msra.mxu0 %v1448
        %2585 = vmatprep.subr.bf16.mxu0 %v1447
        %2586 = vmatpush2.bf16.msra.mxu0 %v1446
        %2587 = vmatprep.subr.bf16.mxu0 %v1445
        %2588 = vmatpush2.bf16.msra.mxu0 %v1444
        %2589 = vmatprep.subr.bf16.mxu0 %v1443
        %2590 = vmatpush2.bf16.msra.mxu0 %v1442
        %2591 = vmatprep.subr.bf16.mxu0 %v1441
        %2592 = vmatpush2.bf16.msra.mxu0 %v1440
        %2593 = vmatprep.subr.bf16.mxu0 %v1439
        %2594 = vmatpush2.bf16.msra.mxu0 %v1438
        %2595 = vmatprep.mubr.bf16.mxu0 %v1612
        %2596 = vmatmul.mubr.bf16.gmra.mxu0 %v1611
        %v2597 = vpop.f32.mrf.mxu0
        %v2598 = vadd.f32 %v2557, %v2597
        %v2599 = vpop.f32.mrf.mxu0
        %v2600 = vadd.f32 %v2559, %v2599
        %v2601 = vpop.f32.mrf.mxu0
        %v2602 = vpop.f32.mrf.mxu0
        %2603 = vdwg.mxu0
        %2604 = vmatprep.subr.bf16.mxu0 %v1469
        %2605 = vmatpush1.bf16.msra.mxu0 %v1468
        %2606 = vmatprep.subr.bf16.mxu0 %v1467
        %2607 = vmatpush1.bf16.msra.mxu0 %v1466
        %2608 = vmatprep.subr.bf16.mxu0 %v1465
        %2609 = vmatpush1.bf16.msra.mxu0 %v1464
        %2610 = vmatprep.subr.bf16.mxu0 %v1463
        %2611 = vmatpush1.bf16.msra.mxu0 %v1462
        %2612 = vmatprep.subr.bf16.mxu0 %v1461
        %2613 = vmatpush1.bf16.msra.mxu0 %v1460
        %2614 = vmatprep.subr.bf16.mxu0 %v1459
        %2615 = vmatpush1.bf16.msra.mxu0 %v1458
        %2616 = vmatprep.subr.bf16.mxu0 %v1457
        %2617 = vmatpush1.bf16.msra.mxu0 %v1456
        %2618 = vmatprep.subr.bf16.mxu0 %v1455
        %2619 = vmatpush1.bf16.msra.mxu0 %v1454
        %2620 = vmatprep.subr.bf16.mxu0 0
        %2621 = vmatpush2.bf16.msra.mxu0 0
        %2622 = vmatprep.subr.bf16.mxu0 0
        %2623 = vmatpush2.bf16.msra.mxu0 0
        %2624 = vmatprep.subr.bf16.mxu0 0
        %2625 = vmatpush2.bf16.msra.mxu0 0
        %2626 = vmatprep.subr.bf16.mxu0 0
        %2627 = vmatpush2.bf16.msra.mxu0 0
        %2628 = vmatprep.subr.bf16.mxu0 0
        %2629 = vmatpush2.bf16.msra.mxu0 0
        %2630 = vmatprep.subr.bf16.mxu0 0
        %2631 = vmatpush2.bf16.msra.mxu0 0
        %2632 = vmatprep.subr.bf16.mxu0 0
        %2633 = vmatpush2.bf16.msra.mxu0 0
        %2634 = vmatprep.subr.bf16.mxu0 0
        %2635 = vmatpush2.bf16.msra.mxu0 0
        %2636 = vmatprep.mubr.bf16.mxu0 0
        %2637 = vmatmul.mubr.bf16.gmra.mxu0 %v1613
        %v2638 = vpop.f32.mrf.mxu0
        %v2639 = vadd.f32 %v2598, %v2638
        %v2640 = vpop.f32.mrf.mxu0
        %v2641 = vadd.f32 %v2600, %v2640
        %v2642 = vpop.f32.mrf.mxu0
        %v2643 = vpop.f32.mrf.mxu0
        %2644 = vdwg.mxu0
        %v2645 = vadd.f32 %v1470, %v2639
        %v2646 = vadd.f32 %v1471, %v2641
        %2647 = vst [vmem:[#allocation2] sm:$0xff] %v2645
        %2648 = vst [vmem:[#allocation2 + $0x8] sm:$0xff] %v2646
        %p2649 = scmp.eq.s32.totalorder %s26, 4
        // Predicated region
        $region53: #{dense2hidden_tiny_forward.2} parent=35 // pred_check
          %p2650 = pneg %p2649
        $region54: #{dense2hidden_tiny_forward.2} parent=35 // pred_check_branch
          %2652 = sbr.rel (%p2650) target = $region56
        $region55: #{dense2hidden_tiny_forward.2} parent=35 // pred_region
          %v2653 = vld [vmem:[#allocation2] sm:$0xff]
          %v2654 = vld [vmem:[#allocation2 + $0x8] sm:$0xff]
          %v2655 = vld [vmem:[%s270] sm:$0x3]
          %v2657 = vlaneseq
          %v2658 = vshrl.u32 %v2657, 7
          %v2659 = vsub.s32 0, %v2658
          %v2660 = vrot.slane %v2655, %v2659
          %v2661 = vlaneseq
          %v2662 = vshrl.u32 %v2661, 7
          %v2663 = vsub.s32 1, %v2662
          %v2664 = vrot.slane %v2655, %v2663
          %v2667 = vmul.f32 %v2653, %v2660
          %v2668 = vmul.f32 %v2654, %v2664
          %v2669 = vld [vmem:[%s279] sm:$0x3]
          %v2671 = vlaneseq
          %v2672 = vshrl.u32 %v2671, 7
          %v2673 = vsub.s32 0, %v2672
          %v2674 = vrot.slane %v2669, %v2673
          %v2675 = vlaneseq
          %v2676 = vshrl.u32 %v2675, 7
          %v2677 = vsub.s32 1, %v2676
          %v2678 = vrot.slane %v2669, %v2677
          %v2681 = vadd.f32 %v2667, %v2674
          %v2682 = vadd.f32 %v2668, %v2678
          %2683 = vst [vmem:[%s333] sm:$0xff] %v2681
          %2684 = vst [vmem:[%s333 + $0x8] sm:$0xff] %v2682
        $region56: #{dense2hidden_tiny_forward.2} parent=35 // pred_fallthru
          _
        %s2685 = smul.u32 2, %s25
        %p2686 = scmp.lt.s32.totalorder %s2685, 3
        %s2687 = scalar_select %p2686, %s2685, 3
        %s2688 = smul.addr %s2687, 8
        %s2689 = scalar_lea.vmem %s4, %s2688
        // Predicated region
        $region57: #{dense2hidden_tiny_forward.2} parent=35 // pred_check
          %p2690 = pneg %p157
        $region58: #{dense2hidden_tiny_forward.2} parent=35 // pred_check_branch
          %2692 = sbr.rel (%p2690) target = $region60
        $region59: #{dense2hidden_tiny_forward.2} parent=35 // pred_region
          %s2693 = smul.u32 2, %s25
        $region60: #{dense2hidden_tiny_forward.2} parent=35 // pred_fallthru
          _
      $region36: #{dense2hidden_tiny_forward.2} parent=5 // pred_fallthru
        _
      %p2694 = scmp.le.s32.totalorder 2, %s16
      // Predicated region
      $region61: #{dense2hidden_tiny_forward.2} parent=5 // pred_check
        %p2695 = pneg %p2694
      $region62: #{dense2hidden_tiny_forward.2} parent=5 // pred_check_branch
        %2697 = sbr.rel (%p2695) target = $region64
      $region63: #{dense2hidden_tiny_forward.2} parent=5 // pred_region
        %s2698 = ssub.s32 %s16, 2
        // Predicated region
        $region65: #{dense2hidden_tiny_forward.2} parent=63 // pred_check
          %p2699 = pneg %p163
        $region66: #{dense2hidden_tiny_forward.2} parent=63 // pred_check_branch
          %2701 = sbr.rel (%p2699) target = $region68
        $region67: #{dense2hidden_tiny_forward.2} parent=63 // pred_region
          %s2702 = smul.u32 2, %s27
          %p2703 = scmp.lt.s32.totalorder %s2702, 3
          %s2704 = scalar_select %p2703, %s2702, 3
          %s2705 = smul.addr %s2704, 8
          %s2706 = scalar_lea.vmem %s4, %s2705
        $region68: #{dense2hidden_tiny_forward.2} parent=63 // pred_fallthru
          _
      $region64: #{dense2hidden_tiny_forward.2} parent=5 // pred_fallthru
        _
    $region6: #{dense2hidden_tiny_forward.2} parent=1 // loop_footer
      %s20 = sadd.s32 1, %s16
    $region7: #{dense2hidden_tiny_forward.2} parent=1 // loop_footer_branch
      %15 = sbr.rel target = $region3
    $region8: #{dense2hidden_tiny_forward.2} parent=1 // loop_exit
      _
    %2707 = vsyncpa [#allocation4], 1
    %s2708 = scalar_lea.sflag [#allocation4], 1
    %2709 = vsyncpa %s2708, 1
    %2710 = vsyncpa [#allocation6], 1
    %s2711 = scalar_lea.sflag [#allocation6], 1
    %2712 = vsyncpa %s2711, 1

</llo_original>
